<compile_context>
chip_gen: v7x
topology: tpu7x:2x2x1
jax: 0.10.0
libtpu: 0.0.40
codegen_flags: <defaults>
</compile_context>

<pallas_src>
import functools
import math

import jax
import jax.numpy as jnp
from jax.experimental import pallas as pl
from jax.experimental.pallas import tpu as pltpu


# -------------------- small BERT config --------------------
VOCAB = 100
TYPE_VOCAB = 2
MAX_POS = 16
HIDDEN = 64
NUM_HEADS = 4
HEAD_DIM = HIDDEN // NUM_HEADS
INTERMEDIATE = 128
NUM_LAYERS = 2
N_CLASSES = 3
LN_EPS = 1e-12
FC_PAD = 128  # lane-dense padded width for the classifier output


# -------------------- fused Pallas kernel --------------------
def _bert_fused_kernel(
    x_ref, mask_ref,
    emb_g_ref, emb_b_ref,
    wqkv_ref, bqkv_ref, wo_ref, bo_ref, ln1g_ref, ln1b_ref,
    w1_ref, b1_ref, w2_ref, b2_ref, ln2g_ref, ln2b_ref,
    wp_ref, bp_ref, wfc_ref, bfc_ref,
    o_ref,
    ctx_ref,
    *, batch, seq, num_heads, head_dim, eps,
):
    hidden = num_heads * head_dim
    scale = 1.0 / math.sqrt(head_dim)

    def layernorm(x, g, b):
        mu = jnp.mean(x, axis=-1, keepdims=True)
        var = jnp.mean(jnp.square(x - mu), axis=-1, keepdims=True)
        return (x - mu) * jax.lax.rsqrt(var + eps) * g + b

    def dense(x, w, b):
        # bf16 operands, f32 accumulation on the MXU.
        return jnp.dot(x.astype(w.dtype), w, preferred_element_type=jnp.float32) + b

    # ----- embeddings LayerNorm (no fake residual) -----
    x = layernorm(x_ref[...], emb_g_ref[...], emb_b_ref[...])

    # Precompute per-batch additive mask bias from the raw (B, S) mask.
    mask_bias = [
        (1.0 - mask_ref[pl.ds(b, 1), :]) * jnp.float32(-1e9) for b in range(batch)
    ]

    # ----- encoder layers (statically unrolled; weights resident in VMEM) -----
    n_layers = wqkv_ref.shape[0]
    for l in range(n_layers):
        # Fused QKV projection: one matmul with N = 3*hidden.
        qkv = dense(x, wqkv_ref[l], bqkv_ref[l])  # (B*S, 3*hidden) f32

        # Per-(batch, head) attention; context written into VMEM scratch.
        for b in range(batch):
            rows = pl.ds(b * seq, seq)
            bias_b = mask_bias[b]                                   # (1, S)
            for h in range(num_heads):
                q = qkv[b * seq:(b + 1) * seq, h * head_dim:(h + 1) * head_dim]
                k = qkv[b * seq:(b + 1) * seq,
                        hidden + h * head_dim: hidden + (h + 1) * head_dim]
                v = qkv[b * seq:(b + 1) * seq,
                        2 * hidden + h * head_dim: 2 * hidden + (h + 1) * head_dim]
                s = jax.lax.dot_general(
                    q.astype(jnp.bfloat16), k.astype(jnp.bfloat16),
                    (((1,), (1,)), ((), ())),
                    preferred_element_type=jnp.float32)             # (S, S)
                s = s * scale + bias_b
                m = jnp.max(s, axis=-1, keepdims=True)
                p = jnp.exp(s - m)
                p = p * pl.reciprocal(jnp.sum(p, axis=-1, keepdims=True), approx=True)
                ctx_bh = jnp.dot(p.astype(jnp.bfloat16), v.astype(jnp.bfloat16),
                                 preferred_element_type=jnp.float32)
                ctx_ref[rows, pl.ds(h * head_dim, head_dim)] = ctx_bh

        # Attention output projection + residual + LN.
        attn_out = dense(ctx_ref[...], wo_ref[l], bo_ref[l])
        x = layernorm(attn_out + x, ln1g_ref[l], ln1b_ref[l])

        # Feed-forward.
        h1 = dense(x, w1_ref[l], b1_ref[l])
        # TODO(synk): HF BERT uses exact erf-based GELU; tanh approximation used here.
        h1 = 0.5 * h1 * (1.0 + jnp.tanh(
            0.7978845608028654 * (h1 + 0.044715 * h1 * h1 * h1)))
        h2 = dense(h1, w2_ref[l], b2_ref[l])
        x = layernorm(h2 + x, ln2g_ref[l], ln2b_ref[l])

    # ----- pooler + classifier (lane-dense padded output, sliced in JAX) -----
    for b in range(batch):
        cls = x[b * seq:b * seq + 1, :]                             # (1, hidden)
        pooled = jnp.tanh(dense(cls, wp_ref[...], bp_ref[...]))     # (1, hidden)
        logits = dense(pooled, wfc_ref[...], bfc_ref[...])          # (1, FC_PAD)
        o_ref[pl.ds(b, 1), :] = logits.astype(o_ref.dtype)


# -------------------- parameters (deterministic synthetic init) --------------------
def init_params(key):
    keys = iter(jax.random.split(key, 256))

    def normal(shape):
        return 0.02 * jax.random.normal(next(keys), shape, dtype=jnp.float32)

    params = {
        "word_emb": normal((VOCAB, HIDDEN)),
        "pos_emb": normal((MAX_POS, HIDDEN)),
        "type_emb": normal((TYPE_VOCAB, HIDDEN)),
        "emb_ln_g": jnp.ones((HIDDEN,), jnp.float32),
        "emb_ln_b": jnp.zeros((HIDDEN,), jnp.float32),
        "layers": [],
        "wp": normal((HIDDEN, HIDDEN)),            # pooler dense
        "bp": jnp.zeros((HIDDEN,), jnp.float32),
        "wfc": normal((HIDDEN, N_CLASSES)),        # classification head
        "bfc": jnp.zeros((N_CLASSES,), jnp.float32),
    }
    for _ in range(NUM_LAYERS):
        params["layers"].append({
            "wq": normal((HIDDEN, HIDDEN)), "bq": jnp.zeros((HIDDEN,), jnp.float32),
            "wk": normal((HIDDEN, HIDDEN)), "bk": jnp.zeros((HIDDEN,), jnp.float32),
            "wv": normal((HIDDEN, HIDDEN)), "bv": jnp.zeros((HIDDEN,), jnp.float32),
            "wo": normal((HIDDEN, HIDDEN)), "bo": jnp.zeros((HIDDEN,), jnp.float32),
            "ln1_g": jnp.ones((HIDDEN,), jnp.float32),
            "ln1_b": jnp.zeros((HIDDEN,), jnp.float32),
            "w1": normal((HIDDEN, INTERMEDIATE)), "b1": jnp.zeros((INTERMEDIATE,), jnp.float32),
            "w2": normal((INTERMEDIATE, HIDDEN)), "b2": jnp.zeros((HIDDEN,), jnp.float32),
            "ln2_g": jnp.ones((HIDDEN,), jnp.float32),
            "ln2_b": jnp.zeros((HIDDEN,), jnp.float32),
        })
    return params


def pack_params(params):
    """Stack per-layer weights, fuse QKV, cast matmul weights to bf16, pad classifier."""
    layers = params["layers"]

    def stack(name):
        return jnp.stack([lyr[name] for lyr in layers])

    wqkv = jnp.stack([
        jnp.concatenate([lyr["wq"], lyr["wk"], lyr["wv"]], axis=1) for lyr in layers
    ]).astype(jnp.bfloat16)                                          # (L, H, 3H)
    bqkv = jnp.stack([
        jnp.concatenate([lyr["bq"], lyr["bk"], lyr["bv"]]) for lyr in layers
    ])[:, None, :]                                                   # (L, 1, 3H)

    wfc_pad = jnp.zeros((HIDDEN, FC_PAD), jnp.float32).at[:, :N_CLASSES].set(params["wfc"])
    bfc_pad = jnp.zeros((1, FC_PAD), jnp.float32).at[0, :N_CLASSES].set(params["bfc"])

    return (
        params["emb_ln_g"][None, :], params["emb_ln_b"][None, :],
        wqkv, bqkv,
        stack("wo").astype(jnp.bfloat16), stack("bo")[:, None, :],
        stack("ln1_g")[:, None, :], stack("ln1_b")[:, None, :],
        stack("w1").astype(jnp.bfloat16), stack("b1")[:, None, :],
        stack("w2").astype(jnp.bfloat16), stack("b2")[:, None, :],
        stack("ln2_g")[:, None, :], stack("ln2_b")[:, None, :],
        params["wp"].astype(jnp.bfloat16), params["bp"][None, :],
        wfc_pad.astype(jnp.bfloat16), bfc_pad,
    )


# -------------------- forward pass --------------------
def bert_forward(params, ids, mask, token_type_ids):
    B, S = ids.shape

    # Embedding gathers stay in plain JAX (glue); sum word + pos + type.
    pos = jnp.arange(S)
    emb = (params["word_emb"][ids]
           + params["pos_emb"][pos][None, :, :]
           + params["type_emb"][token_type_ids])
    x = emb.reshape(B * S, HIDDEN).astype(jnp.float32)
    mask_f = mask.astype(jnp.float32)                    # raw (B, S) mask

    packed = pack_params(params)

    kernel = functools.partial(
        _bert_fused_kernel,
        batch=B, seq=S, num_heads=NUM_HEADS, head_dim=HEAD_DIM, eps=LN_EPS)

    out_padded = pl.pallas_call(
        kernel,
        out_shape=jax.ShapeDtypeStruct((B, FC_PAD), jnp.float32),
        scratch_shapes=[pltpu.VMEM((B * S, HIDDEN), jnp.float32)],   # attention ctx
    )(x, mask_f, *packed)

    return out_padded[:, :N_CLASSES]


# -------------------- main --------------------
if __name__ == "__main__":
    B, S = 2, 8
    key = jax.random.PRNGKey(0)
    k_params, k_ids, k_type = jax.random.split(key, 3)

    params = init_params(k_params)

    ids = jax.random.randint(k_ids, (B, S), 0, VOCAB, dtype=jnp.int32)
    token_type_ids = jax.random.randint(k_type, (B, S), 0, TYPE_VOCAB, dtype=jnp.int32)
    # second sequence has its last 3 tokens padded/masked out
    mask = jnp.array([[1] * S, [1] * (S - 3) + [0] * 3], dtype=jnp.int32)

    logits = bert_forward(params, ids, mask, token_type_ids)
    jax.block_until_ready(logits)
    assert logits.shape == (B, N_CLASSES)
    assert bool(jnp.all(jnp.isfinite(logits)))
    print("KERNEL_OK")
</pallas_src>

<mosaic_0001>
module attributes {stable_mosaic.version = 11 : i64} {
  func.func @_bert_fused_kernel(%arg0: memref<16x64xf32, #tpu.memory_space<vmem>>, %arg1: memref<2x8xf32, #tpu.memory_space<vmem>>, %arg2: memref<1x64xf32, #tpu.memory_space<vmem>>, %arg3: memref<1x64xf32, #tpu.memory_space<vmem>>, %arg4: memref<2x64x192xbf16, #tpu.memory_space<vmem>>, %arg5: memref<2x1x192xf32, #tpu.memory_space<vmem>>, %arg6: memref<2x64x64xbf16, #tpu.memory_space<vmem>>, %arg7: memref<2x1x64xf32, #tpu.memory_space<vmem>>, %arg8: memref<2x1x64xf32, #tpu.memory_space<vmem>>, %arg9: memref<2x1x64xf32, #tpu.memory_space<vmem>>, %arg10: memref<2x64x128xbf16, #tpu.memory_space<vmem>>, %arg11: memref<2x1x128xf32, #tpu.memory_space<vmem>>, %arg12: memref<2x128x64xbf16, #tpu.memory_space<vmem>>, %arg13: memref<2x1x64xf32, #tpu.memory_space<vmem>>, %arg14: memref<2x1x64xf32, #tpu.memory_space<vmem>>, %arg15: memref<2x1x64xf32, #tpu.memory_space<vmem>>, %arg16: memref<64x64xbf16, #tpu.memory_space<vmem>>, %arg17: memref<1x64xf32, #tpu.memory_space<vmem>>, %arg18: memref<64x128xbf16, #tpu.memory_space<vmem>>, %arg19: memref<1x128xf32, #tpu.memory_space<vmem>>, %arg20: memref<2x128xf32, #tpu.memory_space<vmem>>, %arg21: memref<16x64xf32, #tpu.memory_space<vmem>>) attributes {dimension_semantics = [], scalar_prefetch = 0 : i64, scratch_operands = 1 : i64, tpu.core_type = #tpu.core_type<tc>} {
    %c0 = arith.constant 0 : index
    %c0_0 = arith.constant 0 : index
    %0 = vector.load %arg0[%c0, %c0_0] : memref<16x64xf32, #tpu.memory_space<vmem>>, vector<16x64xf32>
    %c0_1 = arith.constant 0 : index
    %c0_2 = arith.constant 0 : index
    %1 = vector.load %arg2[%c0_1, %c0_2] : memref<1x64xf32, #tpu.memory_space<vmem>>, vector<1x64xf32>
    %c0_3 = arith.constant 0 : index
    %c0_4 = arith.constant 0 : index
    %2 = vector.load %arg3[%c0_3, %c0_4] : memref<1x64xf32, #tpu.memory_space<vmem>>, vector<1x64xf32>
    %cst = arith.constant dense<0.000000e+00> : vector<16xf32>
    %3 = vector.multi_reduction <add>, %0, %cst [1] : vector<16x64xf32> to vector<16xf32>
    %4 = vector.shape_cast %3 : vector<16xf32> to vector<16x1xf32>
    %cst_5 = arith.constant 6.400000e+01 : f32
    %5 = vector.broadcast %cst_5 : f32 to vector<16x1xf32>
    %6 = arith.divf %4, %5 : vector<16x1xf32>
    %7 = vector.broadcast %6 : vector<16x1xf32> to vector<16x64xf32>
    %8 = arith.subf %0, %7 : vector<16x64xf32>
    %9 = arith.mulf %8, %8 : vector<16x64xf32>
    %cst_6 = arith.constant dense<0.000000e+00> : vector<16xf32>
    %10 = vector.multi_reduction <add>, %9, %cst_6 [1] : vector<16x64xf32> to vector<16xf32>
    %11 = vector.shape_cast %10 : vector<16xf32> to vector<16x1xf32>
    %cst_7 = arith.constant 6.400000e+01 : f32
    %12 = vector.broadcast %cst_7 : f32 to vector<16x1xf32>
    %13 = arith.divf %11, %12 : vector<16x1xf32>
    %14 = vector.broadcast %6 : vector<16x1xf32> to vector<16x64xf32>
    %15 = arith.subf %0, %14 : vector<16x64xf32>
    %cst_8 = arith.constant 9.99999996E-13 : f32
    %16 = vector.broadcast %cst_8 : f32 to vector<16x1xf32>
    %17 = arith.addf %13, %16 : vector<16x1xf32>
    %18 = math.rsqrt %17 : vector<16x1xf32>
    %19 = vector.broadcast %18 : vector<16x1xf32> to vector<16x64xf32>
    %20 = arith.mulf %15, %19 : vector<16x64xf32>
    %21 = vector.broadcast %1 : vector<1x64xf32> to vector<16x64xf32>
    %22 = arith.mulf %20, %21 : vector<16x64xf32>
    %23 = vector.broadcast %2 : vector<1x64xf32> to vector<16x64xf32>
    %24 = arith.addf %22, %23 : vector<16x64xf32>
    %c0_9 = arith.constant 0 : index
    %c0_10 = arith.constant 0 : index
    %25 = vector.load %arg1[%c0_9, %c0_10] : memref<2x8xf32, #tpu.memory_space<vmem>>, vector<1x8xf32>
    %cst_11 = arith.constant 1.000000e+00 : f32
    %26 = vector.broadcast %cst_11 : f32 to vector<1x8xf32>
    %27 = arith.subf %26, %25 : vector<1x8xf32>
    %cst_12 = arith.constant -1.000000e+09 : f32
    %28 = vector.broadcast %cst_12 : f32 to vector<1x8xf32>
    %29 = arith.mulf %27, %28 : vector<1x8xf32>
    %c1 = arith.constant 1 : index
    %c0_13 = arith.constant 0 : index
    %30 = vector.load %arg1[%c1, %c0_13] : memref<2x8xf32, #tpu.memory_space<vmem>>, vector<1x8xf32>
    %cst_14 = arith.constant 1.000000e+00 : f32
    %31 = vector.broadcast %cst_14 : f32 to vector<1x8xf32>
    %32 = arith.subf %31, %30 : vector<1x8xf32>
    %cst_15 = arith.constant -1.000000e+09 : f32
    %33 = vector.broadcast %cst_15 : f32 to vector<1x8xf32>
    %34 = arith.mulf %32, %33 : vector<1x8xf32>
    %c0_16 = arith.constant 0 : index
    %c0_17 = arith.constant 0 : index
    %c0_18 = arith.constant 0 : index
    %35 = vector.load %arg4[%c0_16, %c0_17, %c0_18] : memref<2x64x192xbf16, #tpu.memory_space<vmem>>, vector<1x64x192xbf16>
    %36 = vector.shape_cast %35 : vector<1x64x192xbf16> to vector<64x192xbf16>
    %c0_19 = arith.constant 0 : index
    %c0_20 = arith.constant 0 : index
    %c0_21 = arith.constant 0 : index
    %37 = vector.load %arg5[%c0_19, %c0_20, %c0_21] : memref<2x1x192xf32, #tpu.memory_space<vmem>>, vector<1x1x192xf32>
    %38 = vector.shape_cast %37 : vector<1x1x192xf32> to vector<1x192xf32>
    %39 = arith.truncf %24 : vector<16x64xf32> to vector<16x64xbf16>
    %cst_22 = arith.constant dense<0.000000e+00> : vector<16x192xf32>
    %40 = tpu.matmul %39, %36, %cst_22 {dimension_numbers = #tpu.dot_dimension_numbers<[1], [0], [0], [1], [0, 0, 1, 1], [], []>} : vector<16x64xbf16>, vector<64x192xbf16>, vector<16x192xf32> -> vector<16x192xf32>
    %41 = vector.broadcast %38 : vector<1x192xf32> to vector<16x192xf32>
    %42 = arith.addf %40, %41 : vector<16x192xf32>
    %43 = vector.extract_strided_slice %42 {offsets = [0, 0], sizes = [8, 16], strides = [1, 1]} : vector<16x192xf32> to vector<8x16xf32>
    %44 = vector.extract_strided_slice %42 {offsets = [0, 64], sizes = [8, 16], strides = [1, 1]} : vector<16x192xf32> to vector<8x16xf32>
    %45 = vector.extract_strided_slice %42 {offsets = [0, 128], sizes = [8, 16], strides = [1, 1]} : vector<16x192xf32> to vector<8x16xf32>
    %46 = arith.truncf %43 : vector<8x16xf32> to vector<8x16xbf16>
    %47 = arith.truncf %44 : vector<8x16xf32> to vector<8x16xbf16>
    %cst_23 = arith.constant dense<0.000000e+00> : vector<8x8xf32>
    %48 = tpu.matmul %46, %47, %cst_23 {dimension_numbers = #tpu.dot_dimension_numbers<[1], [1], [0], [0], [0, 0, 1, 0], [], []>} : vector<8x16xbf16>, vector<8x16xbf16>, vector<8x8xf32> -> vector<8x8xf32>
    %cst_24 = arith.constant 2.500000e-01 : f32
    %49 = vector.broadcast %cst_24 : f32 to vector<8x8xf32>
    %50 = arith.mulf %48, %49 : vector<8x8xf32>
    %51 = vector.broadcast %29 : vector<1x8xf32> to vector<8x8xf32>
    %52 = arith.addf %50, %51 : vector<8x8xf32>
    %cst_25 = arith.constant dense<0xFF800000> : vector<8xf32>
    %53 = vector.multi_reduction <maximumf>, %52, %cst_25 [1] : vector<8x8xf32> to vector<8xf32>
    %54 = vector.shape_cast %53 : vector<8xf32> to vector<8x1xf32>
    %55 = vector.broadcast %54 : vector<8x1xf32> to vector<8x8xf32>
    %56 = arith.subf %52, %55 : vector<8x8xf32>
    %57 = math.exp %56 : vector<8x8xf32>
    %cst_26 = arith.constant dense<0.000000e+00> : vector<8xf32>
    %58 = vector.multi_reduction <add>, %57, %cst_26 [1] : vector<8x8xf32> to vector<8xf32>
    %59 = vector.shape_cast %58 : vector<8xf32> to vector<8x1xf32>
    %60 = tpu.reciprocal %59 {approx = true} : vector<8x1xf32> -> vector<8x1xf32>
    %61 = vector.broadcast %60 : vector<8x1xf32> to vector<8x8xf32>
    %62 = arith.mulf %57, %61 : vector<8x8xf32>
    %63 = arith.truncf %62 : vector<8x8xf32> to vector<8x8xbf16>
    %64 = arith.truncf %45 : vector<8x16xf32> to vector<8x16xbf16>
    %cst_27 = arith.constant dense<0.000000e+00> : vector<8x16xf32>
    %65 = tpu.matmul %63, %64, %cst_27 {dimension_numbers = #tpu.dot_dimension_numbers<[1], [0], [0], [1], [0, 0, 1, 1], [], []>} : vector<8x8xbf16>, vector<8x16xbf16>, vector<8x16xf32> -> vector<8x16xf32>
    %c0_28 = arith.constant 0 : index
    %c0_29 = arith.constant 0 : index
    %66 = vector.load %arg21[%c0_28, %c0_29] : memref<16x64xf32, #tpu.memory_space<vmem>>, vector<8x16xf32>
    tpu.vector_store %arg21[%c0_28, %c0_29], %65 {strides = array<i32>} : memref<16x64xf32, #tpu.memory_space<vmem>>, vector<8x16xf32>,
    %67 = vector.extract_strided_slice %42 {offsets = [0, 16], sizes = [8, 16], strides = [1, 1]} : vector<16x192xf32> to vector<8x16xf32>
    %68 = vector.extract_strided_slice %42 {offsets = [0, 80], sizes = [8, 16], strides = [1, 1]} : vector<16x192xf32> to vector<8x16xf32>
    %69 = vector.extract_strided_slice %42 {offsets = [0, 144], sizes = [8, 16], strides = [1, 1]} : vector<16x192xf32> to vector<8x16xf32>
    %70 = arith.truncf %67 : vector<8x16xf32> to vector<8x16xbf16>
    %71 = arith.truncf %68 : vector<8x16xf32> to vector<8x16xbf16>
    %cst_30 = arith.constant dense<0.000000e+00> : vector<8x8xf32>
    %72 = tpu.matmul %70, %71, %cst_30 {dimension_numbers = #tpu.dot_dimension_numbers<[1], [1], [0], [0], [0, 0, 1, 0], [], []>} : vector<8x16xbf16>, vector<8x16xbf16>, vector<8x8xf32> -> vector<8x8xf32>
    %cst_31 = arith.constant 2.500000e-01 : f32
    %73 = vector.broadcast %cst_31 : f32 to vector<8x8xf32>
    %74 = arith.mulf %72, %73 : vector<8x8xf32>
    %75 = vector.broadcast %29 : vector<1x8xf32> to vector<8x8xf32>
    %76 = arith.addf %74, %75 : vector<8x8xf32>
    %cst_32 = arith.constant dense<0xFF800000> : vector<8xf32>
    %77 = vector.multi_reduction <maximumf>, %76, %cst_32 [1] : vector<8x8xf32> to vector<8xf32>
    %78 = vector.shape_cast %77 : vector<8xf32> to vector<8x1xf32>
    %79 = vector.broadcast %78 : vector<8x1xf32> to vector<8x8xf32>
    %80 = arith.subf %76, %79 : vector<8x8xf32>
    %81 = math.exp %80 : vector<8x8xf32>
    %cst_33 = arith.constant dense<0.000000e+00> : vector<8xf32>
    %82 = vector.multi_reduction <add>, %81, %cst_33 [1] : vector<8x8xf32> to vector<8xf32>
    %83 = vector.shape_cast %82 : vector<8xf32> to vector<8x1xf32>
    %84 = tpu.reciprocal %83 {approx = true} : vector<8x1xf32> -> vector<8x1xf32>
    %85 = vector.broadcast %84 : vector<8x1xf32> to vector<8x8xf32>
    %86 = arith.mulf %81, %85 : vector<8x8xf32>
    %87 = arith.truncf %86 : vector<8x8xf32> to vector<8x8xbf16>
    %88 = arith.truncf %69 : vector<8x16xf32> to vector<8x16xbf16>
    %cst_34 = arith.constant dense<0.000000e+00> : vector<8x16xf32>
    %89 = tpu.matmul %87, %88, %cst_34 {dimension_numbers = #tpu.dot_dimension_numbers<[1], [0], [0], [1], [0, 0, 1, 1], [], []>} : vector<8x8xbf16>, vector<8x16xbf16>, vector<8x16xf32> -> vector<8x16xf32>
    %c0_35 = arith.constant 0 : index
    %c16 = arith.constant 16 : index
    %90 = vector.load %arg21[%c0_35, %c16] : memref<16x64xf32, #tpu.memory_space<vmem>>, vector<8x16xf32>
    tpu.vector_store %arg21[%c0_35, %c16], %89 {strides = array<i32>} : memref<16x64xf32, #tpu.memory_space<vmem>>, vector<8x16xf32>,
    %91 = vector.extract_strided_slice %42 {offsets = [0, 32], sizes = [8, 16], strides = [1, 1]} : vector<16x192xf32> to vector<8x16xf32>
    %92 = vector.extract_strided_slice %42 {offsets = [0, 96], sizes = [8, 16], strides = [1, 1]} : vector<16x192xf32> to vector<8x16xf32>
    %93 = vector.extract_strided_slice %42 {offsets = [0, 160], sizes = [8, 16], strides = [1, 1]} : vector<16x192xf32> to vector<8x16xf32>
    %94 = arith.truncf %91 : vector<8x16xf32> to vector<8x16xbf16>
    %95 = arith.truncf %92 : vector<8x16xf32> to vector<8x16xbf16>
    %cst_36 = arith.constant dense<0.000000e+00> : vector<8x8xf32>
    %96 = tpu.matmul %94, %95, %cst_36 {dimension_numbers = #tpu.dot_dimension_numbers<[1], [1], [0], [0], [0, 0, 1, 0], [], []>} : vector<8x16xbf16>, vector<8x16xbf16>, vector<8x8xf32> -> vector<8x8xf32>
    %cst_37 = arith.constant 2.500000e-01 : f32
    %97 = vector.broadcast %cst_37 : f32 to vector<8x8xf32>
    %98 = arith.mulf %96, %97 : vector<8x8xf32>
    %99 = vector.broadcast %29 : vector<1x8xf32> to vector<8x8xf32>
    %100 = arith.addf %98, %99 : vector<8x8xf32>
    %cst_38 = arith.constant dense<0xFF800000> : vector<8xf32>
    %101 = vector.multi_reduction <maximumf>, %100, %cst_38 [1] : vector<8x8xf32> to vector<8xf32>
    %102 = vector.shape_cast %101 : vector<8xf32> to vector<8x1xf32>
    %103 = vector.broadcast %102 : vector<8x1xf32> to vector<8x8xf32>
    %104 = arith.subf %100, %103 : vector<8x8xf32>
    %105 = math.exp %104 : vector<8x8xf32>
    %cst_39 = arith.constant dense<0.000000e+00> : vector<8xf32>
    %106 = vector.multi_reduction <add>, %105, %cst_39 [1] : vector<8x8xf32> to vector<8xf32>
    %107 = vector.shape_cast %106 : vector<8xf32> to vector<8x1xf32>
    %108 = tpu.reciprocal %107 {approx = true} : vector<8x1xf32> -> vector<8x1xf32>
    %109 = vector.broadcast %108 : vector<8x1xf32> to vector<8x8xf32>
    %110 = arith.mulf %105, %109 : vector<8x8xf32>
    %111 = arith.truncf %110 : vector<8x8xf32> to vector<8x8xbf16>
    %112 = arith.truncf %93 : vector<8x16xf32> to vector<8x16xbf16>
    %cst_40 = arith.constant dense<0.000000e+00> : vector<8x16xf32>
    %113 = tpu.matmul %111, %112, %cst_40 {dimension_numbers = #tpu.dot_dimension_numbers<[1], [0], [0], [1], [0, 0, 1, 1], [], []>} : vector<8x8xbf16>, vector<8x16xbf16>, vector<8x16xf32> -> vector<8x16xf32>
    %c0_41 = arith.constant 0 : index
    %c32 = arith.constant 32 : index
    %114 = vector.load %arg21[%c0_41, %c32] : memref<16x64xf32, #tpu.memory_space<vmem>>, vector<8x16xf32>
    tpu.vector_store %arg21[%c0_41, %c32], %113 {strides = array<i32>} : memref<16x64xf32, #tpu.memory_space<vmem>>, vector<8x16xf32>,
    %115 = vector.extract_strided_slice %42 {offsets = [0, 48], sizes = [8, 16], strides = [1, 1]} : vector<16x192xf32> to vector<8x16xf32>
    %116 = vector.extract_strided_slice %42 {offsets = [0, 112], sizes = [8, 16], strides = [1, 1]} : vector<16x192xf32> to vector<8x16xf32>
    %117 = vector.extract_strided_slice %42 {offsets = [0, 176], sizes = [8, 16], strides = [1, 1]} : vector<16x192xf32> to vector<8x16xf32>
    %118 = arith.truncf %115 : vector<8x16xf32> to vector<8x16xbf16>
    %119 = arith.truncf %116 : vector<8x16xf32> to vector<8x16xbf16>
    %cst_42 = arith.constant dense<0.000000e+00> : vector<8x8xf32>
    %120 = tpu.matmul %118, %119, %cst_42 {dimension_numbers = #tpu.dot_dimension_numbers<[1], [1], [0], [0], [0, 0, 1, 0], [], []>} : vector<8x16xbf16>, vector<8x16xbf16>, vector<8x8xf32> -> vector<8x8xf32>
    %cst_43 = arith.constant 2.500000e-01 : f32
    %121 = vector.broadcast %cst_43 : f32 to vector<8x8xf32>
    %122 = arith.mulf %120, %121 : vector<8x8xf32>
    %123 = vector.broadcast %29 : vector<1x8xf32> to vector<8x8xf32>
    %124 = arith.addf %122, %123 : vector<8x8xf32>
    %cst_44 = arith.constant dense<0xFF800000> : vector<8xf32>
    %125 = vector.multi_reduction <maximumf>, %124, %cst_44 [1] : vector<8x8xf32> to vector<8xf32>
    %126 = vector.shape_cast %125 : vector<8xf32> to vector<8x1xf32>
    %127 = vector.broadcast %126 : vector<8x1xf32> to vector<8x8xf32>
    %128 = arith.subf %124, %127 : vector<8x8xf32>
    %129 = math.exp %128 : vector<8x8xf32>
    %cst_45 = arith.constant dense<0.000000e+00> : vector<8xf32>
    %130 = vector.multi_reduction <add>, %129, %cst_45 [1] : vector<8x8xf32> to vector<8xf32>
    %131 = vector.shape_cast %130 : vector<8xf32> to vector<8x1xf32>
    %132 = tpu.reciprocal %131 {approx = true} : vector<8x1xf32> -> vector<8x1xf32>
    %133 = vector.broadcast %132 : vector<8x1xf32> to vector<8x8xf32>
    %134 = arith.mulf %129, %133 : vector<8x8xf32>
    %135 = arith.truncf %134 : vector<8x8xf32> to vector<8x8xbf16>
    %136 = arith.truncf %117 : vector<8x16xf32> to vector<8x16xbf16>
    %cst_46 = arith.constant dense<0.000000e+00> : vector<8x16xf32>
    %137 = tpu.matmul %135, %136, %cst_46 {dimension_numbers = #tpu.dot_dimension_numbers<[1], [0], [0], [1], [0, 0, 1, 1], [], []>} : vector<8x8xbf16>, vector<8x16xbf16>, vector<8x16xf32> -> vector<8x16xf32>
    %c0_47 = arith.constant 0 : index
    %c48 = arith.constant 48 : index
    %138 = vector.load %arg21[%c0_47, %c48] : memref<16x64xf32, #tpu.memory_space<vmem>>, vector<8x16xf32>
    tpu.vector_store %arg21[%c0_47, %c48], %137 {strides = array<i32>} : memref<16x64xf32, #tpu.memory_space<vmem>>, vector<8x16xf32>,
    %139 = vector.extract_strided_slice %42 {offsets = [8, 0], sizes = [8, 16], strides = [1, 1]} : vector<16x192xf32> to vector<8x16xf32>
    %140 = vector.extract_strided_slice %42 {offsets = [8, 64], sizes = [8, 16], strides = [1, 1]} : vector<16x192xf32> to vector<8x16xf32>
    %141 = vector.extract_strided_slice %42 {offsets = [8, 128], sizes = [8, 16], strides = [1, 1]} : vector<16x192xf32> to vector<8x16xf32>
    %142 = arith.truncf %139 : vector<8x16xf32> to vector<8x16xbf16>
    %143 = arith.truncf %140 : vector<8x16xf32> to vector<8x16xbf16>
    %cst_48 = arith.constant dense<0.000000e+00> : vector<8x8xf32>
    %144 = tpu.matmul %142, %143, %cst_48 {dimension_numbers = #tpu.dot_dimension_numbers<[1], [1], [0], [0], [0, 0, 1, 0], [], []>} : vector<8x16xbf16>, vector<8x16xbf16>, vector<8x8xf32> -> vector<8x8xf32>
    %cst_49 = arith.constant 2.500000e-01 : f32
    %145 = vector.broadcast %cst_49 : f32 to vector<8x8xf32>
    %146 = arith.mulf %144, %145 : vector<8x8xf32>
    %147 = vector.broadcast %34 : vector<1x8xf32> to vector<8x8xf32>
    %148 = arith.addf %146, %147 : vector<8x8xf32>
    %cst_50 = arith.constant dense<0xFF800000> : vector<8xf32>
    %149 = vector.multi_reduction <maximumf>, %148, %cst_50 [1] : vector<8x8xf32> to vector<8xf32>
    %150 = vector.shape_cast %149 : vector<8xf32> to vector<8x1xf32>
    %151 = vector.broadcast %150 : vector<8x1xf32> to vector<8x8xf32>
    %152 = arith.subf %148, %151 : vector<8x8xf32>
    %153 = math.exp %152 : vector<8x8xf32>
    %cst_51 = arith.constant dense<0.000000e+00> : vector<8xf32>
    %154 = vector.multi_reduction <add>, %153, %cst_51 [1] : vector<8x8xf32> to vector<8xf32>
    %155 = vector.shape_cast %154 : vector<8xf32> to vector<8x1xf32>
    %156 = tpu.reciprocal %155 {approx = true} : vector<8x1xf32> -> vector<8x1xf32>
    %157 = vector.broadcast %156 : vector<8x1xf32> to vector<8x8xf32>
    %158 = arith.mulf %153, %157 : vector<8x8xf32>
    %159 = arith.truncf %158 : vector<8x8xf32> to vector<8x8xbf16>
    %160 = arith.truncf %141 : vector<8x16xf32> to vector<8x16xbf16>
    %cst_52 = arith.constant dense<0.000000e+00> : vector<8x16xf32>
    %161 = tpu.matmul %159, %160, %cst_52 {dimension_numbers = #tpu.dot_dimension_numbers<[1], [0], [0], [1], [0, 0, 1, 1], [], []>} : vector<8x8xbf16>, vector<8x16xbf16>, vector<8x16xf32> -> vector<8x16xf32>
    %c8 = arith.constant 8 : index
    %c0_53 = arith.constant 0 : index
    %162 = vector.load %arg21[%c8, %c0_53] : memref<16x64xf32, #tpu.memory_space<vmem>>, vector<8x16xf32>
    tpu.vector_store %arg21[%c8, %c0_53], %161 {strides = array<i32>} : memref<16x64xf32, #tpu.memory_space<vmem>>, vector<8x16xf32>,
    %163 = vector.extract_strided_slice %42 {offsets = [8, 16], sizes = [8, 16], strides = [1, 1]} : vector<16x192xf32> to vector<8x16xf32>
    %164 = vector.extract_strided_slice %42 {offsets = [8, 80], sizes = [8, 16], strides = [1, 1]} : vector<16x192xf32> to vector<8x16xf32>
    %165 = vector.extract_strided_slice %42 {offsets = [8, 144], sizes = [8, 16], strides = [1, 1]} : vector<16x192xf32> to vector<8x16xf32>
    %166 = arith.truncf %163 : vector<8x16xf32> to vector<8x16xbf16>
    %167 = arith.truncf %164 : vector<8x16xf32> to vector<8x16xbf16>
    %cst_54 = arith.constant dense<0.000000e+00> : vector<8x8xf32>
    %168 = tpu.matmul %166, %167, %cst_54 {dimension_numbers = #tpu.dot_dimension_numbers<[1], [1], [0], [0], [0, 0, 1, 0], [], []>} : vector<8x16xbf16>, vector<8x16xbf16>, vector<8x8xf32> -> vector<8x8xf32>
    %cst_55 = arith.constant 2.500000e-01 : f32
    %169 = vector.broadcast %cst_55 : f32 to vector<8x8xf32>
    %170 = arith.mulf %168, %169 : vector<8x8xf32>
    %171 = vector.broadcast %34 : vector<1x8xf32> to vector<8x8xf32>
    %172 = arith.addf %170, %171 : vector<8x8xf32>
    %cst_56 = arith.constant dense<0xFF800000> : vector<8xf32>
    %173 = vector.multi_reduction <maximumf>, %172, %cst_56 [1] : vector<8x8xf32> to vector<8xf32>
    %174 = vector.shape_cast %173 : vector<8xf32> to vector<8x1xf32>
    %175 = vector.broadcast %174 : vector<8x1xf32> to vector<8x8xf32>
    %176 = arith.subf %172, %175 : vector<8x8xf32>
    %177 = math.exp %176 : vector<8x8xf32>
    %cst_57 = arith.constant dense<0.000000e+00> : vector<8xf32>
    %178 = vector.multi_reduction <add>, %177, %cst_57 [1] : vector<8x8xf32> to vector<8xf32>
    %179 = vector.shape_cast %178 : vector<8xf32> to vector<8x1xf32>
    %180 = tpu.reciprocal %179 {approx = true} : vector<8x1xf32> -> vector<8x1xf32>
    %181 = vector.broadcast %180 : vector<8x1xf32> to vector<8x8xf32>
    %182 = arith.mulf %177, %181 : vector<8x8xf32>
    %183 = arith.truncf %182 : vector<8x8xf32> to vector<8x8xbf16>
    %184 = arith.truncf %165 : vector<8x16xf32> to vector<8x16xbf16>
    %cst_58 = arith.constant dense<0.000000e+00> : vector<8x16xf32>
    %185 = tpu.matmul %183, %184, %cst_58 {dimension_numbers = #tpu.dot_dimension_numbers<[1], [0], [0], [1], [0, 0, 1, 1], [], []>} : vector<8x8xbf16>, vector<8x16xbf16>, vector<8x16xf32> -> vector<8x16xf32>
    %c8_59 = arith.constant 8 : index
    %c16_60 = arith.constant 16 : index
    %186 = vector.load %arg21[%c8_59, %c16_60] : memref<16x64xf32, #tpu.memory_space<vmem>>, vector<8x16xf32>
    tpu.vector_store %arg21[%c8_59, %c16_60], %185 {strides = array<i32>} : memref<16x64xf32, #tpu.memory_space<vmem>>, vector<8x16xf32>,
    %187 = vector.extract_strided_slice %42 {offsets = [8, 32], sizes = [8, 16], strides = [1, 1]} : vector<16x192xf32> to vector<8x16xf32>
    %188 = vector.extract_strided_slice %42 {offsets = [8, 96], sizes = [8, 16], strides = [1, 1]} : vector<16x192xf32> to vector<8x16xf32>
    %189 = vector.extract_strided_slice %42 {offsets = [8, 160], sizes = [8, 16], strides = [1, 1]} : vector<16x192xf32> to vector<8x16xf32>
    %190 = arith.truncf %187 : vector<8x16xf32> to vector<8x16xbf16>
    %191 = arith.truncf %188 : vector<8x16xf32> to vector<8x16xbf16>
    %cst_61 = arith.constant dense<0.000000e+00> : vector<8x8xf32>
    %192 = tpu.matmul %190, %191, %cst_61 {dimension_numbers = #tpu.dot_dimension_numbers<[1], [1], [0], [0], [0, 0, 1, 0], [], []>} : vector<8x16xbf16>, vector<8x16xbf16>, vector<8x8xf32> -> vector<8x8xf32>
    %cst_62 = arith.constant 2.500000e-01 : f32
    %193 = vector.broadcast %cst_62 : f32 to vector<8x8xf32>
    %194 = arith.mulf %192, %193 : vector<8x8xf32>
    %195 = vector.broadcast %34 : vector<1x8xf32> to vector<8x8xf32>
    %196 = arith.addf %194, %195 : vector<8x8xf32>
    %cst_63 = arith.constant dense<0xFF800000> : vector<8xf32>
    %197 = vector.multi_reduction <maximumf>, %196, %cst_63 [1] : vector<8x8xf32> to vector<8xf32>
    %198 = vector.shape_cast %197 : vector<8xf32> to vector<8x1xf32>
    %199 = vector.broadcast %198 : vector<8x1xf32> to vector<8x8xf32>
    %200 = arith.subf %196, %199 : vector<8x8xf32>
    %201 = math.exp %200 : vector<8x8xf32>
    %cst_64 = arith.constant dense<0.000000e+00> : vector<8xf32>
    %202 = vector.multi_reduction <add>, %201, %cst_64 [1] : vector<8x8xf32> to vector<8xf32>
    %203 = vector.shape_cast %202 : vector<8xf32> to vector<8x1xf32>
    %204 = tpu.reciprocal %203 {approx = true} : vector<8x1xf32> -> vector<8x1xf32>
    %205 = vector.broadcast %204 : vector<8x1xf32> to vector<8x8xf32>
    %206 = arith.mulf %201, %205 : vector<8x8xf32>
    %207 = arith.truncf %206 : vector<8x8xf32> to vector<8x8xbf16>
    %208 = arith.truncf %189 : vector<8x16xf32> to vector<8x16xbf16>
    %cst_65 = arith.constant dense<0.000000e+00> : vector<8x16xf32>
    %209 = tpu.matmul %207, %208, %cst_65 {dimension_numbers = #tpu.dot_dimension_numbers<[1], [0], [0], [1], [0, 0, 1, 1], [], []>} : vector<8x8xbf16>, vector<8x16xbf16>, vector<8x16xf32> -> vector<8x16xf32>
    %c8_66 = arith.constant 8 : index
    %c32_67 = arith.constant 32 : index
    %210 = vector.load %arg21[%c8_66, %c32_67] : memref<16x64xf32, #tpu.memory_space<vmem>>, vector<8x16xf32>
    tpu.vector_store %arg21[%c8_66, %c32_67], %209 {strides = array<i32>} : memref<16x64xf32, #tpu.memory_space<vmem>>, vector<8x16xf32>,
    %211 = vector.extract_strided_slice %42 {offsets = [8, 48], sizes = [8, 16], strides = [1, 1]} : vector<16x192xf32> to vector<8x16xf32>
    %212 = vector.extract_strided_slice %42 {offsets = [8, 112], sizes = [8, 16], strides = [1, 1]} : vector<16x192xf32> to vector<8x16xf32>
    %213 = vector.extract_strided_slice %42 {offsets = [8, 176], sizes = [8, 16], strides = [1, 1]} : vector<16x192xf32> to vector<8x16xf32>
    %214 = arith.truncf %211 : vector<8x16xf32> to vector<8x16xbf16>
    %215 = arith.truncf %212 : vector<8x16xf32> to vector<8x16xbf16>
    %cst_68 = arith.constant dense<0.000000e+00> : vector<8x8xf32>
    %216 = tpu.matmul %214, %215, %cst_68 {dimension_numbers = #tpu.dot_dimension_numbers<[1], [1], [0], [0], [0, 0, 1, 0], [], []>} : vector<8x16xbf16>, vector<8x16xbf16>, vector<8x8xf32> -> vector<8x8xf32>
    %cst_69 = arith.constant 2.500000e-01 : f32
    %217 = vector.broadcast %cst_69 : f32 to vector<8x8xf32>
    %218 = arith.mulf %216, %217 : vector<8x8xf32>
    %219 = vector.broadcast %34 : vector<1x8xf32> to vector<8x8xf32>
    %220 = arith.addf %218, %219 : vector<8x8xf32>
    %cst_70 = arith.constant dense<0xFF800000> : vector<8xf32>
    %221 = vector.multi_reduction <maximumf>, %220, %cst_70 [1] : vector<8x8xf32> to vector<8xf32>
    %222 = vector.shape_cast %221 : vector<8xf32> to vector<8x1xf32>
    %223 = vector.broadcast %222 : vector<8x1xf32> to vector<8x8xf32>
    %224 = arith.subf %220, %223 : vector<8x8xf32>
    %225 = math.exp %224 : vector<8x8xf32>
    %cst_71 = arith.constant dense<0.000000e+00> : vector<8xf32>
    %226 = vector.multi_reduction <add>, %225, %cst_71 [1] : vector<8x8xf32> to vector<8xf32>
    %227 = vector.shape_cast %226 : vector<8xf32> to vector<8x1xf32>
    %228 = tpu.reciprocal %227 {approx = true} : vector<8x1xf32> -> vector<8x1xf32>
    %229 = vector.broadcast %228 : vector<8x1xf32> to vector<8x8xf32>
    %230 = arith.mulf %225, %229 : vector<8x8xf32>
    %231 = arith.truncf %230 : vector<8x8xf32> to vector<8x8xbf16>
    %232 = arith.truncf %213 : vector<8x16xf32> to vector<8x16xbf16>
    %cst_72 = arith.constant dense<0.000000e+00> : vector<8x16xf32>
    %233 = tpu.matmul %231, %232, %cst_72 {dimension_numbers = #tpu.dot_dimension_numbers<[1], [0], [0], [1], [0, 0, 1, 1], [], []>} : vector<8x8xbf16>, vector<8x16xbf16>, vector<8x16xf32> -> vector<8x16xf32>
    %c8_73 = arith.constant 8 : index
    %c48_74 = arith.constant 48 : index
    %234 = vector.load %arg21[%c8_73, %c48_74] : memref<16x64xf32, #tpu.memory_space<vmem>>, vector<8x16xf32>
    tpu.vector_store %arg21[%c8_73, %c48_74], %233 {strides = array<i32>} : memref<16x64xf32, #tpu.memory_space<vmem>>, vector<8x16xf32>,
    %c0_75 = arith.constant 0 : index
    %c0_76 = arith.constant 0 : index
    %235 = vector.load %arg21[%c0_75, %c0_76] : memref<16x64xf32, #tpu.memory_space<vmem>>, vector<16x64xf32>
    %c0_77 = arith.constant 0 : index
    %c0_78 = arith.constant 0 : index
    %c0_79 = arith.constant 0 : index
    %236 = vector.load %arg6[%c0_77, %c0_78, %c0_79] : memref<2x64x64xbf16, #tpu.memory_space<vmem>>, vector<1x64x64xbf16>
    %237 = vector.shape_cast %236 : vector<1x64x64xbf16> to vector<64x64xbf16>
    %c0_80 = arith.constant 0 : index
    %c0_81 = arith.constant 0 : index
    %c0_82 = arith.constant 0 : index
    %238 = vector.load %arg7[%c0_80, %c0_81, %c0_82] : memref<2x1x64xf32, #tpu.memory_space<vmem>>, vector<1x1x64xf32>
    %239 = vector.shape_cast %238 : vector<1x1x64xf32> to vector<1x64xf32>
    %240 = arith.truncf %235 : vector<16x64xf32> to vector<16x64xbf16>
    %cst_83 = arith.constant dense<0.000000e+00> : vector<16x64xf32>
    %241 = tpu.matmul %240, %237, %cst_83 {dimension_numbers = #tpu.dot_dimension_numbers<[1], [0], [0], [1], [0, 0, 1, 1], [], []>} : vector<16x64xbf16>, vector<64x64xbf16>, vector<16x64xf32> -> vector<16x64xf32>
    %242 = vector.broadcast %239 : vector<1x64xf32> to vector<16x64xf32>
    %243 = arith.addf %241, %242 : vector<16x64xf32>
    %244 = arith.addf %243, %24 : vector<16x64xf32>
    %c0_84 = arith.constant 0 : index
    %c0_85 = arith.constant 0 : index
    %c0_86 = arith.constant 0 : index
    %245 = vector.load %arg8[%c0_84, %c0_85, %c0_86] : memref<2x1x64xf32, #tpu.memory_space<vmem>>, vector<1x1x64xf32>
    %246 = vector.shape_cast %245 : vector<1x1x64xf32> to vector<1x64xf32>
    %c0_87 = arith.constant 0 : index
    %c0_88 = arith.constant 0 : index
    %c0_89 = arith.constant 0 : index
    %247 = vector.load %arg9[%c0_87, %c0_88, %c0_89] : memref<2x1x64xf32, #tpu.memory_space<vmem>>, vector<1x1x64xf32>
    %248 = vector.shape_cast %247 : vector<1x1x64xf32> to vector<1x64xf32>
    %cst_90 = arith.constant dense<0.000000e+00> : vector<16xf32>
    %249 = vector.multi_reduction <add>, %244, %cst_90 [1] : vector<16x64xf32> to vector<16xf32>
    %250 = vector.shape_cast %249 : vector<16xf32> to vector<16x1xf32>
    %cst_91 = arith.constant 6.400000e+01 : f32
    %251 = vector.broadcast %cst_91 : f32 to vector<16x1xf32>
    %252 = arith.divf %250, %251 : vector<16x1xf32>
    %253 = vector.broadcast %252 : vector<16x1xf32> to vector<16x64xf32>
    %254 = arith.subf %244, %253 : vector<16x64xf32>
    %255 = arith.mulf %254, %254 : vector<16x64xf32>
    %cst_92 = arith.constant dense<0.000000e+00> : vector<16xf32>
    %256 = vector.multi_reduction <add>, %255, %cst_92 [1] : vector<16x64xf32> to vector<16xf32>
    %257 = vector.shape_cast %256 : vector<16xf32> to vector<16x1xf32>
    %cst_93 = arith.constant 6.400000e+01 : f32
    %258 = vector.broadcast %cst_93 : f32 to vector<16x1xf32>
    %259 = arith.divf %257, %258 : vector<16x1xf32>
    %260 = vector.broadcast %252 : vector<16x1xf32> to vector<16x64xf32>
    %261 = arith.subf %244, %260 : vector<16x64xf32>
    %cst_94 = arith.constant 9.99999996E-13 : f32
    %262 = vector.broadcast %cst_94 : f32 to vector<16x1xf32>
    %263 = arith.addf %259, %262 : vector<16x1xf32>
    %264 = math.rsqrt %263 : vector<16x1xf32>
    %265 = vector.broadcast %264 : vector<16x1xf32> to vector<16x64xf32>
    %266 = arith.mulf %261, %265 : vector<16x64xf32>
    %267 = vector.broadcast %246 : vector<1x64xf32> to vector<16x64xf32>
    %268 = arith.mulf %266, %267 : vector<16x64xf32>
    %269 = vector.broadcast %248 : vector<1x64xf32> to vector<16x64xf32>
    %270 = arith.addf %268, %269 : vector<16x64xf32>
    %c0_95 = arith.constant 0 : index
    %c0_96 = arith.constant 0 : index
    %c0_97 = arith.constant 0 : index
    %271 = vector.load %arg10[%c0_95, %c0_96, %c0_97] : memref<2x64x128xbf16, #tpu.memory_space<vmem>>, vector<1x64x128xbf16>
    %272 = vector.shape_cast %271 : vector<1x64x128xbf16> to vector<64x128xbf16>
    %c0_98 = arith.constant 0 : index
    %c0_99 = arith.constant 0 : index
    %c0_100 = arith.constant 0 : index
    %273 = vector.load %arg11[%c0_98, %c0_99, %c0_100] : memref<2x1x128xf32, #tpu.memory_space<vmem>>, vector<1x1x128xf32>
    %274 = vector.shape_cast %273 : vector<1x1x128xf32> to vector<1x128xf32>
    %275 = arith.truncf %270 : vector<16x64xf32> to vector<16x64xbf16>
    %cst_101 = arith.constant dense<0.000000e+00> : vector<16x128xf32>
    %276 = tpu.matmul %275, %272, %cst_101 {dimension_numbers = #tpu.dot_dimension_numbers<[1], [0], [0], [1], [0, 0, 1, 1], [], []>} : vector<16x64xbf16>, vector<64x128xbf16>, vector<16x128xf32> -> vector<16x128xf32>
    %277 = vector.broadcast %274 : vector<1x128xf32> to vector<16x128xf32>
    %278 = arith.addf %276, %277 : vector<16x128xf32>
    %cst_102 = arith.constant 5.000000e-01 : f32
    %279 = vector.broadcast %cst_102 : f32 to vector<16x128xf32>
    %280 = arith.mulf %279, %278 : vector<16x128xf32>
    %cst_103 = arith.constant 4.471500e-02 : f32
    %281 = vector.broadcast %cst_103 : f32 to vector<16x128xf32>
    %282 = arith.mulf %281, %278 : vector<16x128xf32>
    %283 = arith.mulf %282, %278 : vector<16x128xf32>
    %284 = arith.mulf %283, %278 : vector<16x128xf32>
    %285 = arith.addf %278, %284 : vector<16x128xf32>
    %cst_104 = arith.constant 0.797884583 : f32
    %286 = vector.broadcast %cst_104 : f32 to vector<16x128xf32>
    %287 = arith.mulf %286, %285 : vector<16x128xf32>
    %288 = math.tanh %287 : vector<16x128xf32>
    %cst_105 = arith.constant 1.000000e+00 : f32
    %289 = vector.broadcast %cst_105 : f32 to vector<16x128xf32>
    %290 = arith.addf %289, %288 : vector<16x128xf32>
    %291 = arith.mulf %280, %290 : vector<16x128xf32>
    %c0_106 = arith.constant 0 : index
    %c0_107 = arith.constant 0 : index
    %c0_108 = arith.constant 0 : index
    %292 = vector.load %arg12[%c0_106, %c0_107, %c0_108] : memref<2x128x64xbf16, #tpu.memory_space<vmem>>, vector<1x128x64xbf16>
    %293 = vector.shape_cast %292 : vector<1x128x64xbf16> to vector<128x64xbf16>
    %c0_109 = arith.constant 0 : index
    %c0_110 = arith.constant 0 : index
    %c0_111 = arith.constant 0 : index
    %294 = vector.load %arg13[%c0_109, %c0_110, %c0_111] : memref<2x1x64xf32, #tpu.memory_space<vmem>>, vector<1x1x64xf32>
    %295 = vector.shape_cast %294 : vector<1x1x64xf32> to vector<1x64xf32>
    %296 = arith.truncf %291 : vector<16x128xf32> to vector<16x128xbf16>
    %cst_112 = arith.constant dense<0.000000e+00> : vector<16x64xf32>
    %297 = tpu.matmul %296, %293, %cst_112 {dimension_numbers = #tpu.dot_dimension_numbers<[1], [0], [0], [1], [0, 0, 1, 1], [], []>} : vector<16x128xbf16>, vector<128x64xbf16>, vector<16x64xf32> -> vector<16x64xf32>
    %298 = vector.broadcast %295 : vector<1x64xf32> to vector<16x64xf32>
    %299 = arith.addf %297, %298 : vector<16x64xf32>
    %300 = arith.addf %299, %270 : vector<16x64xf32>
    %c0_113 = arith.constant 0 : index
    %c0_114 = arith.constant 0 : index
    %c0_115 = arith.constant 0 : index
    %301 = vector.load %arg14[%c0_113, %c0_114, %c0_115] : memref<2x1x64xf32, #tpu.memory_space<vmem>>, vector<1x1x64xf32>
    %302 = vector.shape_cast %301 : vector<1x1x64xf32> to vector<1x64xf32>
    %c0_116 = arith.constant 0 : index
    %c0_117 = arith.constant 0 : index
    %c0_118 = arith.constant 0 : index
    %303 = vector.load %arg15[%c0_116, %c0_117, %c0_118] : memref<2x1x64xf32, #tpu.memory_space<vmem>>, vector<1x1x64xf32>
    %304 = vector.shape_cast %303 : vector<1x1x64xf32> to vector<1x64xf32>
    %cst_119 = arith.constant dense<0.000000e+00> : vector<16xf32>
    %305 = vector.multi_reduction <add>, %300, %cst_119 [1] : vector<16x64xf32> to vector<16xf32>
    %306 = vector.shape_cast %305 : vector<16xf32> to vector<16x1xf32>
    %cst_120 = arith.constant 6.400000e+01 : f32
    %307 = vector.broadcast %cst_120 : f32 to vector<16x1xf32>
    %308 = arith.divf %306, %307 : vector<16x1xf32>
    %309 = vector.broadcast %308 : vector<16x1xf32> to vector<16x64xf32>
    %310 = arith.subf %300, %309 : vector<16x64xf32>
    %311 = arith.mulf %310, %310 : vector<16x64xf32>
    %cst_121 = arith.constant dense<0.000000e+00> : vector<16xf32>
    %312 = vector.multi_reduction <add>, %311, %cst_121 [1] : vector<16x64xf32> to vector<16xf32>
    %313 = vector.shape_cast %312 : vector<16xf32> to vector<16x1xf32>
    %cst_122 = arith.constant 6.400000e+01 : f32
    %314 = vector.broadcast %cst_122 : f32 to vector<16x1xf32>
    %315 = arith.divf %313, %314 : vector<16x1xf32>
    %316 = vector.broadcast %308 : vector<16x1xf32> to vector<16x64xf32>
    %317 = arith.subf %300, %316 : vector<16x64xf32>
    %cst_123 = arith.constant 9.99999996E-13 : f32
    %318 = vector.broadcast %cst_123 : f32 to vector<16x1xf32>
    %319 = arith.addf %315, %318 : vector<16x1xf32>
    %320 = math.rsqrt %319 : vector<16x1xf32>
    %321 = vector.broadcast %320 : vector<16x1xf32> to vector<16x64xf32>
    %322 = arith.mulf %317, %321 : vector<16x64xf32>
    %323 = vector.broadcast %302 : vector<1x64xf32> to vector<16x64xf32>
    %324 = arith.mulf %322, %323 : vector<16x64xf32>
    %325 = vector.broadcast %304 : vector<1x64xf32> to vector<16x64xf32>
    %326 = arith.addf %324, %325 : vector<16x64xf32>
    %c1_124 = arith.constant 1 : index
    %c0_125 = arith.constant 0 : index
    %c0_126 = arith.constant 0 : index
    %327 = vector.load %arg4[%c1_124, %c0_125, %c0_126] : memref<2x64x192xbf16, #tpu.memory_space<vmem>>, vector<1x64x192xbf16>
    %328 = vector.shape_cast %327 : vector<1x64x192xbf16> to vector<64x192xbf16>
    %c1_127 = arith.constant 1 : index
    %c0_128 = arith.constant 0 : index
    %c0_129 = arith.constant 0 : index
    %329 = vector.load %arg5[%c1_127, %c0_128, %c0_129] : memref<2x1x192xf32, #tpu.memory_space<vmem>>, vector<1x1x192xf32>
    %330 = vector.shape_cast %329 : vector<1x1x192xf32> to vector<1x192xf32>
    %331 = arith.truncf %326 : vector<16x64xf32> to vector<16x64xbf16>
    %cst_130 = arith.constant dense<0.000000e+00> : vector<16x192xf32>
    %332 = tpu.matmul %331, %328, %cst_130 {dimension_numbers = #tpu.dot_dimension_numbers<[1], [0], [0], [1], [0, 0, 1, 1], [], []>} : vector<16x64xbf16>, vector<64x192xbf16>, vector<16x192xf32> -> vector<16x192xf32>
    %333 = vector.broadcast %330 : vector<1x192xf32> to vector<16x192xf32>
    %334 = arith.addf %332, %333 : vector<16x192xf32>
    %335 = vector.extract_strided_slice %334 {offsets = [0, 0], sizes = [8, 16], strides = [1, 1]} : vector<16x192xf32> to vector<8x16xf32>
    %336 = vector.extract_strided_slice %334 {offsets = [0, 64], sizes = [8, 16], strides = [1, 1]} : vector<16x192xf32> to vector<8x16xf32>
    %337 = vector.extract_strided_slice %334 {offsets = [0, 128], sizes = [8, 16], strides = [1, 1]} : vector<16x192xf32> to vector<8x16xf32>
    %338 = arith.truncf %335 : vector<8x16xf32> to vector<8x16xbf16>
    %339 = arith.truncf %336 : vector<8x16xf32> to vector<8x16xbf16>
    %cst_131 = arith.constant dense<0.000000e+00> : vector<8x8xf32>
    %340 = tpu.matmul %338, %339, %cst_131 {dimension_numbers = #tpu.dot_dimension_numbers<[1], [1], [0], [0], [0, 0, 1, 0], [], []>} : vector<8x16xbf16>, vector<8x16xbf16>, vector<8x8xf32> -> vector<8x8xf32>
    %cst_132 = arith.constant 2.500000e-01 : f32
    %341 = vector.broadcast %cst_132 : f32 to vector<8x8xf32>
    %342 = arith.mulf %340, %341 : vector<8x8xf32>
    %343 = vector.broadcast %29 : vector<1x8xf32> to vector<8x8xf32>
    %344 = arith.addf %342, %343 : vector<8x8xf32>
    %cst_133 = arith.constant dense<0xFF800000> : vector<8xf32>
    %345 = vector.multi_reduction <maximumf>, %344, %cst_133 [1] : vector<8x8xf32> to vector<8xf32>
    %346 = vector.shape_cast %345 : vector<8xf32> to vector<8x1xf32>
    %347 = vector.broadcast %346 : vector<8x1xf32> to vector<8x8xf32>
    %348 = arith.subf %344, %347 : vector<8x8xf32>
    %349 = math.exp %348 : vector<8x8xf32>
    %cst_134 = arith.constant dense<0.000000e+00> : vector<8xf32>
    %350 = vector.multi_reduction <add>, %349, %cst_134 [1] : vector<8x8xf32> to vector<8xf32>
    %351 = vector.shape_cast %350 : vector<8xf32> to vector<8x1xf32>
    %352 = tpu.reciprocal %351 {approx = true} : vector<8x1xf32> -> vector<8x1xf32>
    %353 = vector.broadcast %352 : vector<8x1xf32> to vector<8x8xf32>
    %354 = arith.mulf %349, %353 : vector<8x8xf32>
    %355 = arith.truncf %354 : vector<8x8xf32> to vector<8x8xbf16>
    %356 = arith.truncf %337 : vector<8x16xf32> to vector<8x16xbf16>
    %cst_135 = arith.constant dense<0.000000e+00> : vector<8x16xf32>
    %357 = tpu.matmul %355, %356, %cst_135 {dimension_numbers = #tpu.dot_dimension_numbers<[1], [0], [0], [1], [0, 0, 1, 1], [], []>} : vector<8x8xbf16>, vector<8x16xbf16>, vector<8x16xf32> -> vector<8x16xf32>
    %c0_136 = arith.constant 0 : index
    %c0_137 = arith.constant 0 : index
    %358 = vector.load %arg21[%c0_136, %c0_137] : memref<16x64xf32, #tpu.memory_space<vmem>>, vector<8x16xf32>
    tpu.vector_store %arg21[%c0_136, %c0_137], %357 {strides = array<i32>} : memref<16x64xf32, #tpu.memory_space<vmem>>, vector<8x16xf32>,
    %359 = vector.extract_strided_slice %334 {offsets = [0, 16], sizes = [8, 16], strides = [1, 1]} : vector<16x192xf32> to vector<8x16xf32>
    %360 = vector.extract_strided_slice %334 {offsets = [0, 80], sizes = [8, 16], strides = [1, 1]} : vector<16x192xf32> to vector<8x16xf32>
    %361 = vector.extract_strided_slice %334 {offsets = [0, 144], sizes = [8, 16], strides = [1, 1]} : vector<16x192xf32> to vector<8x16xf32>
    %362 = arith.truncf %359 : vector<8x16xf32> to vector<8x16xbf16>
    %363 = arith.truncf %360 : vector<8x16xf32> to vector<8x16xbf16>
    %cst_138 = arith.constant dense<0.000000e+00> : vector<8x8xf32>
    %364 = tpu.matmul %362, %363, %cst_138 {dimension_numbers = #tpu.dot_dimension_numbers<[1], [1], [0], [0], [0, 0, 1, 0], [], []>} : vector<8x16xbf16>, vector<8x16xbf16>, vector<8x8xf32> -> vector<8x8xf32>
    %cst_139 = arith.constant 2.500000e-01 : f32
    %365 = vector.broadcast %cst_139 : f32 to vector<8x8xf32>
    %366 = arith.mulf %364, %365 : vector<8x8xf32>
    %367 = vector.broadcast %29 : vector<1x8xf32> to vector<8x8xf32>
    %368 = arith.addf %366, %367 : vector<8x8xf32>
    %cst_140 = arith.constant dense<0xFF800000> : vector<8xf32>
    %369 = vector.multi_reduction <maximumf>, %368, %cst_140 [1] : vector<8x8xf32> to vector<8xf32>
    %370 = vector.shape_cast %369 : vector<8xf32> to vector<8x1xf32>
    %371 = vector.broadcast %370 : vector<8x1xf32> to vector<8x8xf32>
    %372 = arith.subf %368, %371 : vector<8x8xf32>
    %373 = math.exp %372 : vector<8x8xf32>
    %cst_141 = arith.constant dense<0.000000e+00> : vector<8xf32>
    %374 = vector.multi_reduction <add>, %373, %cst_141 [1] : vector<8x8xf32> to vector<8xf32>
    %375 = vector.shape_cast %374 : vector<8xf32> to vector<8x1xf32>
    %376 = tpu.reciprocal %375 {approx = true} : vector<8x1xf32> -> vector<8x1xf32>
    %377 = vector.broadcast %376 : vector<8x1xf32> to vector<8x8xf32>
    %378 = arith.mulf %373, %377 : vector<8x8xf32>
    %379 = arith.truncf %378 : vector<8x8xf32> to vector<8x8xbf16>
    %380 = arith.truncf %361 : vector<8x16xf32> to vector<8x16xbf16>
    %cst_142 = arith.constant dense<0.000000e+00> : vector<8x16xf32>
    %381 = tpu.matmul %379, %380, %cst_142 {dimension_numbers = #tpu.dot_dimension_numbers<[1], [0], [0], [1], [0, 0, 1, 1], [], []>} : vector<8x8xbf16>, vector<8x16xbf16>, vector<8x16xf32> -> vector<8x16xf32>
    %c0_143 = arith.constant 0 : index
    %c16_144 = arith.constant 16 : index
    %382 = vector.load %arg21[%c0_143, %c16_144] : memref<16x64xf32, #tpu.memory_space<vmem>>, vector<8x16xf32>
    tpu.vector_store %arg21[%c0_143, %c16_144], %381 {strides = array<i32>} : memref<16x64xf32, #tpu.memory_space<vmem>>, vector<8x16xf32>,
    %383 = vector.extract_strided_slice %334 {offsets = [0, 32], sizes = [8, 16], strides = [1, 1]} : vector<16x192xf32> to vector<8x16xf32>
    %384 = vector.extract_strided_slice %334 {offsets = [0, 96], sizes = [8, 16], strides = [1, 1]} : vector<16x192xf32> to vector<8x16xf32>
    %385 = vector.extract_strided_slice %334 {offsets = [0, 160], sizes = [8, 16], strides = [1, 1]} : vector<16x192xf32> to vector<8x16xf32>
    %386 = arith.truncf %383 : vector<8x16xf32> to vector<8x16xbf16>
    %387 = arith.truncf %384 : vector<8x16xf32> to vector<8x16xbf16>
    %cst_145 = arith.constant dense<0.000000e+00> : vector<8x8xf32>
    %388 = tpu.matmul %386, %387, %cst_145 {dimension_numbers = #tpu.dot_dimension_numbers<[1], [1], [0], [0], [0, 0, 1, 0], [], []>} : vector<8x16xbf16>, vector<8x16xbf16>, vector<8x8xf32> -> vector<8x8xf32>
    %cst_146 = arith.constant 2.500000e-01 : f32
    %389 = vector.broadcast %cst_146 : f32 to vector<8x8xf32>
    %390 = arith.mulf %388, %389 : vector<8x8xf32>
    %391 = vector.broadcast %29 : vector<1x8xf32> to vector<8x8xf32>
    %392 = arith.addf %390, %391 : vector<8x8xf32>
    %cst_147 = arith.constant dense<0xFF800000> : vector<8xf32>
    %393 = vector.multi_reduction <maximumf>, %392, %cst_147 [1] : vector<8x8xf32> to vector<8xf32>
    %394 = vector.shape_cast %393 : vector<8xf32> to vector<8x1xf32>
    %395 = vector.broadcast %394 : vector<8x1xf32> to vector<8x8xf32>
    %396 = arith.subf %392, %395 : vector<8x8xf32>
    %397 = math.exp %396 : vector<8x8xf32>
    %cst_148 = arith.constant dense<0.000000e+00> : vector<8xf32>
    %398 = vector.multi_reduction <add>, %397, %cst_148 [1] : vector<8x8xf32> to vector<8xf32>
    %399 = vector.shape_cast %398 : vector<8xf32> to vector<8x1xf32>
    %400 = tpu.reciprocal %399 {approx = true} : vector<8x1xf32> -> vector<8x1xf32>
    %401 = vector.broadcast %400 : vector<8x1xf32> to vector<8x8xf32>
    %402 = arith.mulf %397, %401 : vector<8x8xf32>
    %403 = arith.truncf %402 : vector<8x8xf32> to vector<8x8xbf16>
    %404 = arith.truncf %385 : vector<8x16xf32> to vector<8x16xbf16>
    %cst_149 = arith.constant dense<0.000000e+00> : vector<8x16xf32>
    %405 = tpu.matmul %403, %404, %cst_149 {dimension_numbers = #tpu.dot_dimension_numbers<[1], [0], [0], [1], [0, 0, 1, 1], [], []>} : vector<8x8xbf16>, vector<8x16xbf16>, vector<8x16xf32> -> vector<8x16xf32>
    %c0_150 = arith.constant 0 : index
    %c32_151 = arith.constant 32 : index
    %406 = vector.load %arg21[%c0_150, %c32_151] : memref<16x64xf32, #tpu.memory_space<vmem>>, vector<8x16xf32>
    tpu.vector_store %arg21[%c0_150, %c32_151], %405 {strides = array<i32>} : memref<16x64xf32, #tpu.memory_space<vmem>>, vector<8x16xf32>,
    %407 = vector.extract_strided_slice %334 {offsets = [0, 48], sizes = [8, 16], strides = [1, 1]} : vector<16x192xf32> to vector<8x16xf32>
    %408 = vector.extract_strided_slice %334 {offsets = [0, 112], sizes = [8, 16], strides = [1, 1]} : vector<16x192xf32> to vector<8x16xf32>
    %409 = vector.extract_strided_slice %334 {offsets = [0, 176], sizes = [8, 16], strides = [1, 1]} : vector<16x192xf32> to vector<8x16xf32>
    %410 = arith.truncf %407 : vector<8x16xf32> to vector<8x16xbf16>
    %411 = arith.truncf %408 : vector<8x16xf32> to vector<8x16xbf16>
    %cst_152 = arith.constant dense<0.000000e+00> : vector<8x8xf32>
    %412 = tpu.matmul %410, %411, %cst_152 {dimension_numbers = #tpu.dot_dimension_numbers<[1], [1], [0], [0], [0, 0, 1, 0], [], []>} : vector<8x16xbf16>, vector<8x16xbf16>, vector<8x8xf32> -> vector<8x8xf32>
    %cst_153 = arith.constant 2.500000e-01 : f32
    %413 = vector.broadcast %cst_153 : f32 to vector<8x8xf32>
    %414 = arith.mulf %412, %413 : vector<8x8xf32>
    %415 = vector.broadcast %29 : vector<1x8xf32> to vector<8x8xf32>
    %416 = arith.addf %414, %415 : vector<8x8xf32>
    %cst_154 = arith.constant dense<0xFF800000> : vector<8xf32>
    %417 = vector.multi_reduction <maximumf>, %416, %cst_154 [1] : vector<8x8xf32> to vector<8xf32>
    %418 = vector.shape_cast %417 : vector<8xf32> to vector<8x1xf32>
    %419 = vector.broadcast %418 : vector<8x1xf32> to vector<8x8xf32>
    %420 = arith.subf %416, %419 : vector<8x8xf32>
    %421 = math.exp %420 : vector<8x8xf32>
    %cst_155 = arith.constant dense<0.000000e+00> : vector<8xf32>
    %422 = vector.multi_reduction <add>, %421, %cst_155 [1] : vector<8x8xf32> to vector<8xf32>
    %423 = vector.shape_cast %422 : vector<8xf32> to vector<8x1xf32>
    %424 = tpu.reciprocal %423 {approx = true} : vector<8x1xf32> -> vector<8x1xf32>
    %425 = vector.broadcast %424 : vector<8x1xf32> to vector<8x8xf32>
    %426 = arith.mulf %421, %425 : vector<8x8xf32>
    %427 = arith.truncf %426 : vector<8x8xf32> to vector<8x8xbf16>
    %428 = arith.truncf %409 : vector<8x16xf32> to vector<8x16xbf16>
    %cst_156 = arith.constant dense<0.000000e+00> : vector<8x16xf32>
    %429 = tpu.matmul %427, %428, %cst_156 {dimension_numbers = #tpu.dot_dimension_numbers<[1], [0], [0], [1], [0, 0, 1, 1], [], []>} : vector<8x8xbf16>, vector<8x16xbf16>, vector<8x16xf32> -> vector<8x16xf32>
    %c0_157 = arith.constant 0 : index
    %c48_158 = arith.constant 48 : index
    %430 = vector.load %arg21[%c0_157, %c48_158] : memref<16x64xf32, #tpu.memory_space<vmem>>, vector<8x16xf32>
    tpu.vector_store %arg21[%c0_157, %c48_158], %429 {strides = array<i32>} : memref<16x64xf32, #tpu.memory_space<vmem>>, vector<8x16xf32>,
    %431 = vector.extract_strided_slice %334 {offsets = [8, 0], sizes = [8, 16], strides = [1, 1]} : vector<16x192xf32> to vector<8x16xf32>
    %432 = vector.extract_strided_slice %334 {offsets = [8, 64], sizes = [8, 16], strides = [1, 1]} : vector<16x192xf32> to vector<8x16xf32>
    %433 = vector.extract_strided_slice %334 {offsets = [8, 128], sizes = [8, 16], strides = [1, 1]} : vector<16x192xf32> to vector<8x16xf32>
    %434 = arith.truncf %431 : vector<8x16xf32> to vector<8x16xbf16>
    %435 = arith.truncf %432 : vector<8x16xf32> to vector<8x16xbf16>
    %cst_159 = arith.constant dense<0.000000e+00> : vector<8x8xf32>
    %436 = tpu.matmul %434, %435, %cst_159 {dimension_numbers = #tpu.dot_dimension_numbers<[1], [1], [0], [0], [0, 0, 1, 0], [], []>} : vector<8x16xbf16>, vector<8x16xbf16>, vector<8x8xf32> -> vector<8x8xf32>
    %cst_160 = arith.constant 2.500000e-01 : f32
    %437 = vector.broadcast %cst_160 : f32 to vector<8x8xf32>
    %438 = arith.mulf %436, %437 : vector<8x8xf32>
    %439 = vector.broadcast %34 : vector<1x8xf32> to vector<8x8xf32>
    %440 = arith.addf %438, %439 : vector<8x8xf32>
    %cst_161 = arith.constant dense<0xFF800000> : vector<8xf32>
    %441 = vector.multi_reduction <maximumf>, %440, %cst_161 [1] : vector<8x8xf32> to vector<8xf32>
    %442 = vector.shape_cast %441 : vector<8xf32> to vector<8x1xf32>
    %443 = vector.broadcast %442 : vector<8x1xf32> to vector<8x8xf32>
    %444 = arith.subf %440, %443 : vector<8x8xf32>
    %445 = math.exp %444 : vector<8x8xf32>
    %cst_162 = arith.constant dense<0.000000e+00> : vector<8xf32>
    %446 = vector.multi_reduction <add>, %445, %cst_162 [1] : vector<8x8xf32> to vector<8xf32>
    %447 = vector.shape_cast %446 : vector<8xf32> to vector<8x1xf32>
    %448 = tpu.reciprocal %447 {approx = true} : vector<8x1xf32> -> vector<8x1xf32>
    %449 = vector.broadcast %448 : vector<8x1xf32> to vector<8x8xf32>
    %450 = arith.mulf %445, %449 : vector<8x8xf32>
    %451 = arith.truncf %450 : vector<8x8xf32> to vector<8x8xbf16>
    %452 = arith.truncf %433 : vector<8x16xf32> to vector<8x16xbf16>
    %cst_163 = arith.constant dense<0.000000e+00> : vector<8x16xf32>
    %453 = tpu.matmul %451, %452, %cst_163 {dimension_numbers = #tpu.dot_dimension_numbers<[1], [0], [0], [1], [0, 0, 1, 1], [], []>} : vector<8x8xbf16>, vector<8x16xbf16>, vector<8x16xf32> -> vector<8x16xf32>
    %c8_164 = arith.constant 8 : index
    %c0_165 = arith.constant 0 : index
    %454 = vector.load %arg21[%c8_164, %c0_165] : memref<16x64xf32, #tpu.memory_space<vmem>>, vector<8x16xf32>
    tpu.vector_store %arg21[%c8_164, %c0_165], %453 {strides = array<i32>} : memref<16x64xf32, #tpu.memory_space<vmem>>, vector<8x16xf32>,
    %455 = vector.extract_strided_slice %334 {offsets = [8, 16], sizes = [8, 16], strides = [1, 1]} : vector<16x192xf32> to vector<8x16xf32>
    %456 = vector.extract_strided_slice %334 {offsets = [8, 80], sizes = [8, 16], strides = [1, 1]} : vector<16x192xf32> to vector<8x16xf32>
    %457 = vector.extract_strided_slice %334 {offsets = [8, 144], sizes = [8, 16], strides = [1, 1]} : vector<16x192xf32> to vector<8x16xf32>
    %458 = arith.truncf %455 : vector<8x16xf32> to vector<8x16xbf16>
    %459 = arith.truncf %456 : vector<8x16xf32> to vector<8x16xbf16>
    %cst_166 = arith.constant dense<0.000000e+00> : vector<8x8xf32>
    %460 = tpu.matmul %458, %459, %cst_166 {dimension_numbers = #tpu.dot_dimension_numbers<[1], [1], [0], [0], [0, 0, 1, 0], [], []>} : vector<8x16xbf16>, vector<8x16xbf16>, vector<8x8xf32> -> vector<8x8xf32>
    %cst_167 = arith.constant 2.500000e-01 : f32
    %461 = vector.broadcast %cst_167 : f32 to vector<8x8xf32>
    %462 = arith.mulf %460, %461 : vector<8x8xf32>
    %463 = vector.broadcast %34 : vector<1x8xf32> to vector<8x8xf32>
    %464 = arith.addf %462, %463 : vector<8x8xf32>
    %cst_168 = arith.constant dense<0xFF800000> : vector<8xf32>
    %465 = vector.multi_reduction <maximumf>, %464, %cst_168 [1] : vector<8x8xf32> to vector<8xf32>
    %466 = vector.shape_cast %465 : vector<8xf32> to vector<8x1xf32>
    %467 = vector.broadcast %466 : vector<8x1xf32> to vector<8x8xf32>
    %468 = arith.subf %464, %467 : vector<8x8xf32>
    %469 = math.exp %468 : vector<8x8xf32>
    %cst_169 = arith.constant dense<0.000000e+00> : vector<8xf32>
    %470 = vector.multi_reduction <add>, %469, %cst_169 [1] : vector<8x8xf32> to vector<8xf32>
    %471 = vector.shape_cast %470 : vector<8xf32> to vector<8x1xf32>
    %472 = tpu.reciprocal %471 {approx = true} : vector<8x1xf32> -> vector<8x1xf32>
    %473 = vector.broadcast %472 : vector<8x1xf32> to vector<8x8xf32>
    %474 = arith.mulf %469, %473 : vector<8x8xf32>
    %475 = arith.truncf %474 : vector<8x8xf32> to vector<8x8xbf16>
    %476 = arith.truncf %457 : vector<8x16xf32> to vector<8x16xbf16>
    %cst_170 = arith.constant dense<0.000000e+00> : vector<8x16xf32>
    %477 = tpu.matmul %475, %476, %cst_170 {dimension_numbers = #tpu.dot_dimension_numbers<[1], [0], [0], [1], [0, 0, 1, 1], [], []>} : vector<8x8xbf16>, vector<8x16xbf16>, vector<8x16xf32> -> vector<8x16xf32>
    %c8_171 = arith.constant 8 : index
    %c16_172 = arith.constant 16 : index
    %478 = vector.load %arg21[%c8_171, %c16_172] : memref<16x64xf32, #tpu.memory_space<vmem>>, vector<8x16xf32>
    tpu.vector_store %arg21[%c8_171, %c16_172], %477 {strides = array<i32>} : memref<16x64xf32, #tpu.memory_space<vmem>>, vector<8x16xf32>,
    %479 = vector.extract_strided_slice %334 {offsets = [8, 32], sizes = [8, 16], strides = [1, 1]} : vector<16x192xf32> to vector<8x16xf32>
    %480 = vector.extract_strided_slice %334 {offsets = [8, 96], sizes = [8, 16], strides = [1, 1]} : vector<16x192xf32> to vector<8x16xf32>
    %481 = vector.extract_strided_slice %334 {offsets = [8, 160], sizes = [8, 16], strides = [1, 1]} : vector<16x192xf32> to vector<8x16xf32>
    %482 = arith.truncf %479 : vector<8x16xf32> to vector<8x16xbf16>
    %483 = arith.truncf %480 : vector<8x16xf32> to vector<8x16xbf16>
    %cst_173 = arith.constant dense<0.000000e+00> : vector<8x8xf32>
    %484 = tpu.matmul %482, %483, %cst_173 {dimension_numbers = #tpu.dot_dimension_numbers<[1], [1], [0], [0], [0, 0, 1, 0], [], []>} : vector<8x16xbf16>, vector<8x16xbf16>, vector<8x8xf32> -> vector<8x8xf32>
    %cst_174 = arith.constant 2.500000e-01 : f32
    %485 = vector.broadcast %cst_174 : f32 to vector<8x8xf32>
    %486 = arith.mulf %484, %485 : vector<8x8xf32>
    %487 = vector.broadcast %34 : vector<1x8xf32> to vector<8x8xf32>
    %488 = arith.addf %486, %487 : vector<8x8xf32>
    %cst_175 = arith.constant dense<0xFF800000> : vector<8xf32>
    %489 = vector.multi_reduction <maximumf>, %488, %cst_175 [1] : vector<8x8xf32> to vector<8xf32>
    %490 = vector.shape_cast %489 : vector<8xf32> to vector<8x1xf32>
    %491 = vector.broadcast %490 : vector<8x1xf32> to vector<8x8xf32>
    %492 = arith.subf %488, %491 : vector<8x8xf32>
    %493 = math.exp %492 : vector<8x8xf32>
    %cst_176 = arith.constant dense<0.000000e+00> : vector<8xf32>
    %494 = vector.multi_reduction <add>, %493, %cst_176 [1] : vector<8x8xf32> to vector<8xf32>
    %495 = vector.shape_cast %494 : vector<8xf32> to vector<8x1xf32>
    %496 = tpu.reciprocal %495 {approx = true} : vector<8x1xf32> -> vector<8x1xf32>
    %497 = vector.broadcast %496 : vector<8x1xf32> to vector<8x8xf32>
    %498 = arith.mulf %493, %497 : vector<8x8xf32>
    %499 = arith.truncf %498 : vector<8x8xf32> to vector<8x8xbf16>
    %500 = arith.truncf %481 : vector<8x16xf32> to vector<8x16xbf16>
    %cst_177 = arith.constant dense<0.000000e+00> : vector<8x16xf32>
    %501 = tpu.matmul %499, %500, %cst_177 {dimension_numbers = #tpu.dot_dimension_numbers<[1], [0], [0], [1], [0, 0, 1, 1], [], []>} : vector<8x8xbf16>, vector<8x16xbf16>, vector<8x16xf32> -> vector<8x16xf32>
    %c8_178 = arith.constant 8 : index
    %c32_179 = arith.constant 32 : index
    %502 = vector.load %arg21[%c8_178, %c32_179] : memref<16x64xf32, #tpu.memory_space<vmem>>, vector<8x16xf32>
    tpu.vector_store %arg21[%c8_178, %c32_179], %501 {strides = array<i32>} : memref<16x64xf32, #tpu.memory_space<vmem>>, vector<8x16xf32>,
    %503 = vector.extract_strided_slice %334 {offsets = [8, 48], sizes = [8, 16], strides = [1, 1]} : vector<16x192xf32> to vector<8x16xf32>
    %504 = vector.extract_strided_slice %334 {offsets = [8, 112], sizes = [8, 16], strides = [1, 1]} : vector<16x192xf32> to vector<8x16xf32>
    %505 = vector.extract_strided_slice %334 {offsets = [8, 176], sizes = [8, 16], strides = [1, 1]} : vector<16x192xf32> to vector<8x16xf32>
    %506 = arith.truncf %503 : vector<8x16xf32> to vector<8x16xbf16>
    %507 = arith.truncf %504 : vector<8x16xf32> to vector<8x16xbf16>
    %cst_180 = arith.constant dense<0.000000e+00> : vector<8x8xf32>
    %508 = tpu.matmul %506, %507, %cst_180 {dimension_numbers = #tpu.dot_dimension_numbers<[1], [1], [0], [0], [0, 0, 1, 0], [], []>} : vector<8x16xbf16>, vector<8x16xbf16>, vector<8x8xf32> -> vector<8x8xf32>
    %cst_181 = arith.constant 2.500000e-01 : f32
    %509 = vector.broadcast %cst_181 : f32 to vector<8x8xf32>
    %510 = arith.mulf %508, %509 : vector<8x8xf32>
    %511 = vector.broadcast %34 : vector<1x8xf32> to vector<8x8xf32>
    %512 = arith.addf %510, %511 : vector<8x8xf32>
    %cst_182 = arith.constant dense<0xFF800000> : vector<8xf32>
    %513 = vector.multi_reduction <maximumf>, %512, %cst_182 [1] : vector<8x8xf32> to vector<8xf32>
    %514 = vector.shape_cast %513 : vector<8xf32> to vector<8x1xf32>
    %515 = vector.broadcast %514 : vector<8x1xf32> to vector<8x8xf32>
    %516 = arith.subf %512, %515 : vector<8x8xf32>
    %517 = math.exp %516 : vector<8x8xf32>
    %cst_183 = arith.constant dense<0.000000e+00> : vector<8xf32>
    %518 = vector.multi_reduction <add>, %517, %cst_183 [1] : vector<8x8xf32> to vector<8xf32>
    %519 = vector.shape_cast %518 : vector<8xf32> to vector<8x1xf32>
    %520 = tpu.reciprocal %519 {approx = true} : vector<8x1xf32> -> vector<8x1xf32>
    %521 = vector.broadcast %520 : vector<8x1xf32> to vector<8x8xf32>
    %522 = arith.mulf %517, %521 : vector<8x8xf32>
    %523 = arith.truncf %522 : vector<8x8xf32> to vector<8x8xbf16>
    %524 = arith.truncf %505 : vector<8x16xf32> to vector<8x16xbf16>
    %cst_184 = arith.constant dense<0.000000e+00> : vector<8x16xf32>
    %525 = tpu.matmul %523, %524, %cst_184 {dimension_numbers = #tpu.dot_dimension_numbers<[1], [0], [0], [1], [0, 0, 1, 1], [], []>} : vector<8x8xbf16>, vector<8x16xbf16>, vector<8x16xf32> -> vector<8x16xf32>
    %c8_185 = arith.constant 8 : index
    %c48_186 = arith.constant 48 : index
    %526 = vector.load %arg21[%c8_185, %c48_186] : memref<16x64xf32, #tpu.memory_space<vmem>>, vector<8x16xf32>
    tpu.vector_store %arg21[%c8_185, %c48_186], %525 {strides = array<i32>} : memref<16x64xf32, #tpu.memory_space<vmem>>, vector<8x16xf32>,
    %c0_187 = arith.constant 0 : index
    %c0_188 = arith.constant 0 : index
    %527 = vector.load %arg21[%c0_187, %c0_188] : memref<16x64xf32, #tpu.memory_space<vmem>>, vector<16x64xf32>
    %c1_189 = arith.constant 1 : index
    %c0_190 = arith.constant 0 : index
    %c0_191 = arith.constant 0 : index
    %528 = vector.load %arg6[%c1_189, %c0_190, %c0_191] : memref<2x64x64xbf16, #tpu.memory_space<vmem>>, vector<1x64x64xbf16>
    %529 = vector.shape_cast %528 : vector<1x64x64xbf16> to vector<64x64xbf16>
    %c1_192 = arith.constant 1 : index
    %c0_193 = arith.constant 0 : index
    %c0_194 = arith.constant 0 : index
    %530 = vector.load %arg7[%c1_192, %c0_193, %c0_194] : memref<2x1x64xf32, #tpu.memory_space<vmem>>, vector<1x1x64xf32>
    %531 = vector.shape_cast %530 : vector<1x1x64xf32> to vector<1x64xf32>
    %532 = arith.truncf %527 : vector<16x64xf32> to vector<16x64xbf16>
    %cst_195 = arith.constant dense<0.000000e+00> : vector<16x64xf32>
    %533 = tpu.matmul %532, %529, %cst_195 {dimension_numbers = #tpu.dot_dimension_numbers<[1], [0], [0], [1], [0, 0, 1, 1], [], []>} : vector<16x64xbf16>, vector<64x64xbf16>, vector<16x64xf32> -> vector<16x64xf32>
    %534 = vector.broadcast %531 : vector<1x64xf32> to vector<16x64xf32>
    %535 = arith.addf %533, %534 : vector<16x64xf32>
    %536 = arith.addf %535, %326 : vector<16x64xf32>
    %c1_196 = arith.constant 1 : index
    %c0_197 = arith.constant 0 : index
    %c0_198 = arith.constant 0 : index
    %537 = vector.load %arg8[%c1_196, %c0_197, %c0_198] : memref<2x1x64xf32, #tpu.memory_space<vmem>>, vector<1x1x64xf32>
    %538 = vector.shape_cast %537 : vector<1x1x64xf32> to vector<1x64xf32>
    %c1_199 = arith.constant 1 : index
    %c0_200 = arith.constant 0 : index
    %c0_201 = arith.constant 0 : index
    %539 = vector.load %arg9[%c1_199, %c0_200, %c0_201] : memref<2x1x64xf32, #tpu.memory_space<vmem>>, vector<1x1x64xf32>
    %540 = vector.shape_cast %539 : vector<1x1x64xf32> to vector<1x64xf32>
    %cst_202 = arith.constant dense<0.000000e+00> : vector<16xf32>
    %541 = vector.multi_reduction <add>, %536, %cst_202 [1] : vector<16x64xf32> to vector<16xf32>
    %542 = vector.shape_cast %541 : vector<16xf32> to vector<16x1xf32>
    %cst_203 = arith.constant 6.400000e+01 : f32
    %543 = vector.broadcast %cst_203 : f32 to vector<16x1xf32>
    %544 = arith.divf %542, %543 : vector<16x1xf32>
    %545 = vector.broadcast %544 : vector<16x1xf32> to vector<16x64xf32>
    %546 = arith.subf %536, %545 : vector<16x64xf32>
    %547 = arith.mulf %546, %546 : vector<16x64xf32>
    %cst_204 = arith.constant dense<0.000000e+00> : vector<16xf32>
    %548 = vector.multi_reduction <add>, %547, %cst_204 [1] : vector<16x64xf32> to vector<16xf32>
    %549 = vector.shape_cast %548 : vector<16xf32> to vector<16x1xf32>
    %cst_205 = arith.constant 6.400000e+01 : f32
    %550 = vector.broadcast %cst_205 : f32 to vector<16x1xf32>
    %551 = arith.divf %549, %550 : vector<16x1xf32>
    %552 = vector.broadcast %544 : vector<16x1xf32> to vector<16x64xf32>
    %553 = arith.subf %536, %552 : vector<16x64xf32>
    %cst_206 = arith.constant 9.99999996E-13 : f32
    %554 = vector.broadcast %cst_206 : f32 to vector<16x1xf32>
    %555 = arith.addf %551, %554 : vector<16x1xf32>
    %556 = math.rsqrt %555 : vector<16x1xf32>
    %557 = vector.broadcast %556 : vector<16x1xf32> to vector<16x64xf32>
    %558 = arith.mulf %553, %557 : vector<16x64xf32>
    %559 = vector.broadcast %538 : vector<1x64xf32> to vector<16x64xf32>
    %560 = arith.mulf %558, %559 : vector<16x64xf32>
    %561 = vector.broadcast %540 : vector<1x64xf32> to vector<16x64xf32>
    %562 = arith.addf %560, %561 : vector<16x64xf32>
    %c1_207 = arith.constant 1 : index
    %c0_208 = arith.constant 0 : index
    %c0_209 = arith.constant 0 : index
    %563 = vector.load %arg10[%c1_207, %c0_208, %c0_209] : memref<2x64x128xbf16, #tpu.memory_space<vmem>>, vector<1x64x128xbf16>
    %564 = vector.shape_cast %563 : vector<1x64x128xbf16> to vector<64x128xbf16>
    %c1_210 = arith.constant 1 : index
    %c0_211 = arith.constant 0 : index
    %c0_212 = arith.constant 0 : index
    %565 = vector.load %arg11[%c1_210, %c0_211, %c0_212] : memref<2x1x128xf32, #tpu.memory_space<vmem>>, vector<1x1x128xf32>
    %566 = vector.shape_cast %565 : vector<1x1x128xf32> to vector<1x128xf32>
    %567 = arith.truncf %562 : vector<16x64xf32> to vector<16x64xbf16>
    %cst_213 = arith.constant dense<0.000000e+00> : vector<16x128xf32>
    %568 = tpu.matmul %567, %564, %cst_213 {dimension_numbers = #tpu.dot_dimension_numbers<[1], [0], [0], [1], [0, 0, 1, 1], [], []>} : vector<16x64xbf16>, vector<64x128xbf16>, vector<16x128xf32> -> vector<16x128xf32>
    %569 = vector.broadcast %566 : vector<1x128xf32> to vector<16x128xf32>
    %570 = arith.addf %568, %569 : vector<16x128xf32>
    %cst_214 = arith.constant 5.000000e-01 : f32
    %571 = vector.broadcast %cst_214 : f32 to vector<16x128xf32>
    %572 = arith.mulf %571, %570 : vector<16x128xf32>
    %cst_215 = arith.constant 4.471500e-02 : f32
    %573 = vector.broadcast %cst_215 : f32 to vector<16x128xf32>
    %574 = arith.mulf %573, %570 : vector<16x128xf32>
    %575 = arith.mulf %574, %570 : vector<16x128xf32>
    %576 = arith.mulf %575, %570 : vector<16x128xf32>
    %577 = arith.addf %570, %576 : vector<16x128xf32>
    %cst_216 = arith.constant 0.797884583 : f32
    %578 = vector.broadcast %cst_216 : f32 to vector<16x128xf32>
    %579 = arith.mulf %578, %577 : vector<16x128xf32>
    %580 = math.tanh %579 : vector<16x128xf32>
    %cst_217 = arith.constant 1.000000e+00 : f32
    %581 = vector.broadcast %cst_217 : f32 to vector<16x128xf32>
    %582 = arith.addf %581, %580 : vector<16x128xf32>
    %583 = arith.mulf %572, %582 : vector<16x128xf32>
    %c1_218 = arith.constant 1 : index
    %c0_219 = arith.constant 0 : index
    %c0_220 = arith.constant 0 : index
    %584 = vector.load %arg12[%c1_218, %c0_219, %c0_220] : memref<2x128x64xbf16, #tpu.memory_space<vmem>>, vector<1x128x64xbf16>
    %585 = vector.shape_cast %584 : vector<1x128x64xbf16> to vector<128x64xbf16>
    %c1_221 = arith.constant 1 : index
    %c0_222 = arith.constant 0 : index
    %c0_223 = arith.constant 0 : index
    %586 = vector.load %arg13[%c1_221, %c0_222, %c0_223] : memref<2x1x64xf32, #tpu.memory_space<vmem>>, vector<1x1x64xf32>
    %587 = vector.shape_cast %586 : vector<1x1x64xf32> to vector<1x64xf32>
    %588 = arith.truncf %583 : vector<16x128xf32> to vector<16x128xbf16>
    %cst_224 = arith.constant dense<0.000000e+00> : vector<16x64xf32>
    %589 = tpu.matmul %588, %585, %cst_224 {dimension_numbers = #tpu.dot_dimension_numbers<[1], [0], [0], [1], [0, 0, 1, 1], [], []>} : vector<16x128xbf16>, vector<128x64xbf16>, vector<16x64xf32> -> vector<16x64xf32>
    %590 = vector.broadcast %587 : vector<1x64xf32> to vector<16x64xf32>
    %591 = arith.addf %589, %590 : vector<16x64xf32>
    %592 = arith.addf %591, %562 : vector<16x64xf32>
    %c1_225 = arith.constant 1 : index
    %c0_226 = arith.constant 0 : index
    %c0_227 = arith.constant 0 : index
    %593 = vector.load %arg14[%c1_225, %c0_226, %c0_227] : memref<2x1x64xf32, #tpu.memory_space<vmem>>, vector<1x1x64xf32>
    %594 = vector.shape_cast %593 : vector<1x1x64xf32> to vector<1x64xf32>
    %c1_228 = arith.constant 1 : index
    %c0_229 = arith.constant 0 : index
    %c0_230 = arith.constant 0 : index
    %595 = vector.load %arg15[%c1_228, %c0_229, %c0_230] : memref<2x1x64xf32, #tpu.memory_space<vmem>>, vector<1x1x64xf32>
    %596 = vector.shape_cast %595 : vector<1x1x64xf32> to vector<1x64xf32>
    %cst_231 = arith.constant dense<0.000000e+00> : vector<16xf32>
    %597 = vector.multi_reduction <add>, %592, %cst_231 [1] : vector<16x64xf32> to vector<16xf32>
    %598 = vector.shape_cast %597 : vector<16xf32> to vector<16x1xf32>
    %cst_232 = arith.constant 6.400000e+01 : f32
    %599 = vector.broadcast %cst_232 : f32 to vector<16x1xf32>
    %600 = arith.divf %598, %599 : vector<16x1xf32>
    %601 = vector.broadcast %600 : vector<16x1xf32> to vector<16x64xf32>
    %602 = arith.subf %592, %601 : vector<16x64xf32>
    %603 = arith.mulf %602, %602 : vector<16x64xf32>
    %cst_233 = arith.constant dense<0.000000e+00> : vector<16xf32>
    %604 = vector.multi_reduction <add>, %603, %cst_233 [1] : vector<16x64xf32> to vector<16xf32>
    %605 = vector.shape_cast %604 : vector<16xf32> to vector<16x1xf32>
    %cst_234 = arith.constant 6.400000e+01 : f32
    %606 = vector.broadcast %cst_234 : f32 to vector<16x1xf32>
    %607 = arith.divf %605, %606 : vector<16x1xf32>
    %608 = vector.broadcast %600 : vector<16x1xf32> to vector<16x64xf32>
    %609 = arith.subf %592, %608 : vector<16x64xf32>
    %cst_235 = arith.constant 9.99999996E-13 : f32
    %610 = vector.broadcast %cst_235 : f32 to vector<16x1xf32>
    %611 = arith.addf %607, %610 : vector<16x1xf32>
    %612 = math.rsqrt %611 : vector<16x1xf32>
    %613 = vector.broadcast %612 : vector<16x1xf32> to vector<16x64xf32>
    %614 = arith.mulf %609, %613 : vector<16x64xf32>
    %615 = vector.broadcast %594 : vector<1x64xf32> to vector<16x64xf32>
    %616 = arith.mulf %614, %615 : vector<16x64xf32>
    %617 = vector.broadcast %596 : vector<1x64xf32> to vector<16x64xf32>
    %618 = arith.addf %616, %617 : vector<16x64xf32>
    %619 = vector.extract_strided_slice %618 {offsets = [0, 0], sizes = [1, 64], strides = [1, 1]} : vector<16x64xf32> to vector<1x64xf32>
    %c0_236 = arith.constant 0 : index
    %c0_237 = arith.constant 0 : index
    %620 = vector.load %arg16[%c0_236, %c0_237] : memref<64x64xbf16, #tpu.memory_space<vmem>>, vector<64x64xbf16>
    %c0_238 = arith.constant 0 : index
    %c0_239 = arith.constant 0 : index
    %621 = vector.load %arg17[%c0_238, %c0_239] : memref<1x64xf32, #tpu.memory_space<vmem>>, vector<1x64xf32>
    %622 = arith.truncf %619 : vector<1x64xf32> to vector<1x64xbf16>
    %cst_240 = arith.constant dense<0.000000e+00> : vector<1x64xf32>
    %623 = tpu.matmul %622, %620, %cst_240 {dimension_numbers = #tpu.dot_dimension_numbers<[1], [0], [0], [1], [0, 0, 1, 1], [], []>} : vector<1x64xbf16>, vector<64x64xbf16>, vector<1x64xf32> -> vector<1x64xf32>
    %624 = arith.addf %623, %621 : vector<1x64xf32>
    %625 = math.tanh %624 : vector<1x64xf32>
    %c0_241 = arith.constant 0 : index
    %c0_242 = arith.constant 0 : index
    %626 = vector.load %arg18[%c0_241, %c0_242] : memref<64x128xbf16, #tpu.memory_space<vmem>>, vector<64x128xbf16>
    %c0_243 = arith.constant 0 : index
    %c0_244 = arith.constant 0 : index
    %627 = vector.load %arg19[%c0_243, %c0_244] : memref<1x128xf32, #tpu.memory_space<vmem>>, vector<1x128xf32>
    %628 = arith.truncf %625 : vector<1x64xf32> to vector<1x64xbf16>
    %cst_245 = arith.constant dense<0.000000e+00> : vector<1x128xf32>
    %629 = tpu.matmul %628, %626, %cst_245 {dimension_numbers = #tpu.dot_dimension_numbers<[1], [0], [0], [1], [0, 0, 1, 1], [], []>} : vector<1x64xbf16>, vector<64x128xbf16>, vector<1x128xf32> -> vector<1x128xf32>
    %630 = arith.addf %629, %627 : vector<1x128xf32>
    %c0_246 = arith.constant 0 : index
    %c0_247 = arith.constant 0 : index
    %631 = vector.load %arg20[%c0_246, %c0_247] : memref<2x128xf32, #tpu.memory_space<vmem>>, vector<1x128xf32>
    tpu.vector_store %arg20[%c0_246, %c0_247], %630 {strides = array<i32>} : memref<2x128xf32, #tpu.memory_space<vmem>>, vector<1x128xf32>,
    %632 = vector.extract_strided_slice %618 {offsets = [8, 0], sizes = [1, 64], strides = [1, 1]} : vector<16x64xf32> to vector<1x64xf32>
    %c0_248 = arith.constant 0 : index
    %c0_249 = arith.constant 0 : index
    %633 = vector.load %arg16[%c0_248, %c0_249] : memref<64x64xbf16, #tpu.memory_space<vmem>>, vector<64x64xbf16>
    %c0_250 = arith.constant 0 : index
    %c0_251 = arith.constant 0 : index
    %634 = vector.load %arg17[%c0_250, %c0_251] : memref<1x64xf32, #tpu.memory_space<vmem>>, vector<1x64xf32>
    %635 = arith.truncf %632 : vector<1x64xf32> to vector<1x64xbf16>
    %cst_252 = arith.constant dense<0.000000e+00> : vector<1x64xf32>
    %636 = tpu.matmul %635, %633, %cst_252 {dimension_numbers = #tpu.dot_dimension_numbers<[1], [0], [0], [1], [0, 0, 1, 1], [], []>} : vector<1x64xbf16>, vector<64x64xbf16>, vector<1x64xf32> -> vector<1x64xf32>
    %637 = arith.addf %636, %634 : vector<1x64xf32>
    %638 = math.tanh %637 : vector<1x64xf32>
    %c0_253 = arith.constant 0 : index
    %c0_254 = arith.constant 0 : index
    %639 = vector.load %arg18[%c0_253, %c0_254] : memref<64x128xbf16, #tpu.memory_space<vmem>>, vector<64x128xbf16>
    %c0_255 = arith.constant 0 : index
    %c0_256 = arith.constant 0 : index
    %640 = vector.load %arg19[%c0_255, %c0_256] : memref<1x128xf32, #tpu.memory_space<vmem>>, vector<1x128xf32>
    %641 = arith.truncf %638 : vector<1x64xf32> to vector<1x64xbf16>
    %cst_257 = arith.constant dense<0.000000e+00> : vector<1x128xf32>
    %642 = tpu.matmul %641, %639, %cst_257 {dimension_numbers = #tpu.dot_dimension_numbers<[1], [0], [0], [1], [0, 0, 1, 1], [], []>} : vector<1x64xbf16>, vector<64x128xbf16>, vector<1x128xf32> -> vector<1x128xf32>
    %643 = arith.addf %642, %640 : vector<1x128xf32>
    %c1_258 = arith.constant 1 : index
    %c0_259 = arith.constant 0 : index
    %644 = vector.load %arg20[%c1_258, %c0_259] : memref<2x128xf32, #tpu.memory_space<vmem>>, vector<1x128xf32>
    tpu.vector_store %arg20[%c1_258, %c0_259], %643 {strides = array<i32>} : memref<2x128xf32, #tpu.memory_space<vmem>>, vector<1x128xf32>,
    return
  }
}

</mosaic_0001>

<llo_original>
// kernel: tpu_custom_call.1
$region0: #{tpu_custom_call.1}
  #allocation0 [shape = 'u32[]', space=smem, size = 0x4, offset = 0x4, fixed_abs, tag = 'smem constant byte address 0x4 - core index']
  #allocation1 [shape = 'u32[144,128]{1,0:T(1,128)}', space=vmem, size = 0x12000, scoped, tag = 'internal scratch']
  #allocation2 [shape = 'f32[16,64]{1,0:T(8,128)}', space=vmem, size = 0x2000, scoped, tag = 'scratch operand']
  %s0 = inlined_call_operand.hbm [shape: f32[16,64], index: 0, kind: input, shape index: {}]
  %s1 = inlined_call_operand.hbm [shape: f32[2,8], index: 1, kind: input, shape index: {}]
  %s2 = inlined_call_operand.hbm [shape: f32[1,64], index: 2, kind: input, shape index: {}]
  %s3 = inlined_call_operand.hbm [shape: f32[1,64], index: 3, kind: input, shape index: {}]
  %s4 = inlined_call_operand.vmem [shape: bf16[2,64,192], index: 4, kind: input, shape index: {}]
  %s5 = inlined_call_operand.hbm [shape: f32[2,1,192], index: 5, kind: input, shape index: {}]
  %s6 = inlined_call_operand.vmem [shape: bf16[2,64,64], index: 6, kind: input, shape index: {}]
  %s7 = inlined_call_operand.hbm [shape: f32[2,1,64], index: 7, kind: input, shape index: {}]
  %s8 = inlined_call_operand.hbm [shape: f32[2,1,64], index: 8, kind: input, shape index: {}]
  %s9 = inlined_call_operand.hbm [shape: f32[2,1,64], index: 9, kind: input, shape index: {}]
  %s10 = inlined_call_operand.hbm [shape: bf16[2,64,128], index: 10, kind: input, shape index: {}]
  %s11 = inlined_call_operand.hbm [shape: f32[2,1,128], index: 11, kind: input, shape index: {}]
  %s12 = inlined_call_operand.vmem [shape: bf16[2,128,64], index: 12, kind: input, shape index: {}]
  %s13 = inlined_call_operand.hbm [shape: f32[2,1,64], index: 13, kind: input, shape index: {}]
  %s14 = inlined_call_operand.hbm [shape: f32[2,1,64], index: 14, kind: input, shape index: {}]
  %s15 = inlined_call_operand.hbm [shape: f32[2,1,64], index: 15, kind: input, shape index: {}]
  %s16 = inlined_call_operand.vmem [shape: bf16[64,64], index: 16, kind: input, shape index: {}]
  %s17 = inlined_call_operand.hbm [shape: f32[1,64], index: 17, kind: input, shape index: {}]
  %s18 = inlined_call_operand.vmem [shape: bf16[64,128], index: 18, kind: input, shape index: {}]
  %s19 = inlined_call_operand.vmem [shape: f32[1,128], index: 19, kind: input, shape index: {}]
  %s20 = inlined_call_operand.hbm [shape: f32[2,128], index: 20, kind: output, shape index: {}]
  %s21 = sld [smem:[#allocation0]]
  $region146: #{tpu_custom_call.1} parent=0
    _
  %s23 = ssub.s32 1, %s21
  %s24 = scalar_select 0, %s23, %s21
  $region1: #{tpu_custom_call.1} parent=0
    #allocation3 [shape = 'u8[8192]{0}', space=vmem, size = 0x2000, scoped, tag = 'input window, operand 0, single buffered']
    #allocation4 [shape = 's32[1]{0}', space=sflag, size = 0x4, scoped, tag = 'scoped memory for tpu_custom_call.1']
    #allocation5 [shape = 's32[1]{0}', space=sflag, size = 0x4, scoped, tag = 'scoped memory for tpu_custom_call.1']
    #allocation6 [shape = 'u8[1024]{0}', space=vmem, size = 0x400, scoped, tag = 'input window, operand 1, single buffered']
    #allocation7 [shape = 's32[1]{0}', space=sflag, size = 0x4, scoped, tag = 'scoped memory for tpu_custom_call.1']
    #allocation8 [shape = 'u8[512]{0}', space=vmem, size = 0x400, scoped, tag = 'input window, operand 2, single buffered']
    #allocation9 [shape = 'u8[512]{0}', space=vmem, size = 0x400, scoped, tag = 'input window, operand 3, single buffered']
    #allocation10 [shape = 's32[1]{0}', space=sflag, size = 0x4, scoped, tag = 'scoped memory for tpu_custom_call.1']
    #allocation11 [shape = 'u8[2048]{0}', space=vmem, size = 0x800, scoped, tag = 'input window, operand 5, single buffered']
    #allocation12 [shape = 'u8[1024]{0}', space=vmem, size = 0x400, scoped, tag = 'input window, operand 7, single buffered']
    #allocation13 [shape = 's32[1]{0}', space=sflag, size = 0x4, scoped, tag = 'scoped memory for tpu_custom_call.1']
    #allocation14 [shape = 'u8[1024]{0}', space=vmem, size = 0x400, scoped, tag = 'input window, operand 8, single buffered']
    #allocation15 [shape = 'u8[1024]{0}', space=vmem, size = 0x400, scoped, tag = 'input window, operand 9, single buffered']
    #allocation16 [shape = 's32[1]{0}', space=sflag, size = 0x4, scoped, tag = 'scoped memory for tpu_custom_call.1']
    #allocation17 [shape = 'u8[32768]{0}', space=vmem, size = 0x8000, scoped, tag = 'input window, operand 10, single buffered']
    #allocation18 [shape = 'u8[1024]{0}', space=vmem, size = 0x400, scoped, tag = 'input window, operand 11, single buffered']
    #allocation19 [shape = 's32[1]{0}', space=sflag, size = 0x4, scoped, tag = 'scoped memory for tpu_custom_call.1']
    #allocation20 [shape = 'u8[1024]{0}', space=vmem, size = 0x400, scoped, tag = 'input window, operand 13, single buffered']
    #allocation21 [shape = 'u8[1024]{0}', space=vmem, size = 0x400, scoped, tag = 'input window, operand 14, single buffered']
    #allocation22 [shape = 's32[1]{0}', space=sflag, size = 0x4, scoped, tag = 'scoped memory for tpu_custom_call.1']
    #allocation23 [shape = 'u8[1024]{0}', space=vmem, size = 0x400, scoped, tag = 'input window, operand 15, single buffered']
    #allocation24 [shape = 'u8[512]{0}', space=vmem, size = 0x400, scoped, tag = 'input window, operand 17, single buffered']
    #allocation25 [shape = 's32[1]{0}', space=sflag, size = 0x4, scoped, tag = 'scoped memory for tpu_custom_call.1']
    #allocation26 [shape = 'u8[1024]{0}', space=vmem, size = 0x400, scoped, tag = 'output window, operand 0, single buffered']
    %25 = vsyncpa [#allocation4], 0
    %26 = vsyncpa [#allocation7], 0
    %27 = vsyncpa [#allocation10], 0
    %28 = vsyncpa [#allocation13], 0
    %29 = vsyncpa [#allocation16], 0
    %30 = vsyncpa [#allocation19], 0
    %31 = vsyncpa [#allocation22], 0
    %32 = vsyncpa [#allocation25], 0
    %33 = vsyncpa [#allocation5], 0
    // Predicated region
    $region2: #{tpu_custom_call.1} parent=1 // pred_check
      _
    $region3: #{tpu_custom_call.1} parent=1 // pred_check_branch
      %35 = sbr.rel (0) target = $region5
    $region4: #{tpu_custom_call.1} parent=1 // pred_region
      %s37 = ssub.s32 256, 256
      %38 = vsyncadd [#allocation4], %s37
      %s39 = sshll.u32 [#allocation3], 4
      %s40 = int_to_ptr.vmem [resolvable:$true] %s39
      %45 = dma.hbm_to_vmem [thread:$0]  %s0, 256, %s40, [#allocation4], 128, 128, 8
    $region5: #{tpu_custom_call.1} parent=1 // pred_fallthru
      _
    // Predicated region
    $region6: #{tpu_custom_call.1} parent=1 // pred_check
      _
    $region7: #{tpu_custom_call.1} parent=1 // pred_check_branch
      %47 = sbr.rel (0) target = $region9
    $region8: #{tpu_custom_call.1} parent=1 // pred_region
      %s49 = ssub.s32 32, 32
      %50 = vsyncadd [#allocation7], %s49
      %s52 = sshll.u32 [#allocation6], 4
      %s53 = int_to_ptr.vmem [resolvable:$true] %s52
      %55 = dma.hbm_to_vmem [thread:$0]  %s1, 32, %s53, [#allocation7]
    $region9: #{tpu_custom_call.1} parent=1 // pred_fallthru
      _
    // Predicated region
    $region10: #{tpu_custom_call.1} parent=1 // pred_check
      _
    $region11: #{tpu_custom_call.1} parent=1 // pred_check_branch
      %57 = sbr.rel (0) target = $region13
    $region12: #{tpu_custom_call.1} parent=1 // pred_region
      %s59 = ssub.s32 16, 16
      %60 = vsyncadd [#allocation7], %s59
      %s62 = sshll.u32 [#allocation8], 4
      %s63 = int_to_ptr.vmem [resolvable:$true] %s62
      %65 = dma.hbm_to_vmem [thread:$0]  %s2, 16, %s63, [#allocation7]
    $region13: #{tpu_custom_call.1} parent=1 // pred_fallthru
      _
    // Predicated region
    $region14: #{tpu_custom_call.1} parent=1 // pred_check
      _
    $region15: #{tpu_custom_call.1} parent=1 // pred_check_branch
      %67 = sbr.rel (0) target = $region17
    $region16: #{tpu_custom_call.1} parent=1 // pred_region
      %s69 = ssub.s32 16, 16
      %70 = vsyncadd [#allocation10], %s69
      %s72 = sshll.u32 [#allocation9], 4
      %s73 = int_to_ptr.vmem [resolvable:$true] %s72
      %75 = dma.hbm_to_vmem [thread:$0]  %s3, 16, %s73, [#allocation10]
    $region17: #{tpu_custom_call.1} parent=1 // pred_fallthru
      _
    // Predicated region
    $region18: #{tpu_custom_call.1} parent=1 // pred_check
      _
    $region19: #{tpu_custom_call.1} parent=1 // pred_check_branch
      %77 = sbr.rel (0) target = $region21
    $region20: #{tpu_custom_call.1} parent=1 // pred_region
      _
    $region21: #{tpu_custom_call.1} parent=1 // pred_fallthru
      _
    // Predicated region
    $region22: #{tpu_custom_call.1} parent=1 // pred_check
      _
    $region23: #{tpu_custom_call.1} parent=1 // pred_check_branch
      %79 = sbr.rel (0) target = $region25
    $region24: #{tpu_custom_call.1} parent=1 // pred_region
      %s81 = ssub.s32 64, 64
      %82 = vsyncadd [#allocation10], %s81
      %s83 = sshll.u32 [#allocation11], 4
      %s84 = int_to_ptr.vmem [resolvable:$true] %s83
      %89 = dma.hbm_to_vmem [thread:$0]  %s5, 64, %s84, [#allocation10], 32, 32, 2
    $region25: #{tpu_custom_call.1} parent=1 // pred_fallthru
      _
    // Predicated region
    $region26: #{tpu_custom_call.1} parent=1 // pred_check
      _
    $region27: #{tpu_custom_call.1} parent=1 // pred_check_branch
      %91 = sbr.rel (0) target = $region29
    $region28: #{tpu_custom_call.1} parent=1 // pred_region
      _
    $region29: #{tpu_custom_call.1} parent=1 // pred_fallthru
      _
    // Predicated region
    $region30: #{tpu_custom_call.1} parent=1 // pred_check
      _
    $region31: #{tpu_custom_call.1} parent=1 // pred_check_branch
      %93 = sbr.rel (0) target = $region33
    $region32: #{tpu_custom_call.1} parent=1 // pred_region
      %s95 = ssub.s32 32, 32
      %96 = vsyncadd [#allocation13], %s95
      %s97 = sshll.u32 [#allocation12], 4
      %s98 = int_to_ptr.vmem [resolvable:$true] %s97
      %103 = dma.hbm_to_vmem [thread:$0]  %s7, 32, %s98, [#allocation13], 16, 16, 1
    $region33: #{tpu_custom_call.1} parent=1 // pred_fallthru
      _
    // Predicated region
    $region34: #{tpu_custom_call.1} parent=1 // pred_check
      _
    $region35: #{tpu_custom_call.1} parent=1 // pred_check_branch
      %105 = sbr.rel (0) target = $region37
    $region36: #{tpu_custom_call.1} parent=1 // pred_region
      %s107 = ssub.s32 32, 32
      %108 = vsyncadd [#allocation13], %s107
      %s109 = sshll.u32 [#allocation14], 4
      %s110 = int_to_ptr.vmem [resolvable:$true] %s109
      %115 = dma.hbm_to_vmem [thread:$0]  %s8, 32, %s110, [#allocation13], 16, 16, 1
    $region37: #{tpu_custom_call.1} parent=1 // pred_fallthru
      _
    // Predicated region
    $region38: #{tpu_custom_call.1} parent=1 // pred_check
      _
    $region39: #{tpu_custom_call.1} parent=1 // pred_check_branch
      %117 = sbr.rel (0) target = $region41
    $region40: #{tpu_custom_call.1} parent=1 // pred_region
      %s119 = ssub.s32 32, 32
      %120 = vsyncadd [#allocation16], %s119
      %s121 = sshll.u32 [#allocation15], 4
      %s122 = int_to_ptr.vmem [resolvable:$true] %s121
      %127 = dma.hbm_to_vmem [thread:$0]  %s9, 32, %s122, [#allocation16], 16, 16, 1
    $region41: #{tpu_custom_call.1} parent=1 // pred_fallthru
      _
    // Predicated region
    $region42: #{tpu_custom_call.1} parent=1 // pred_check
      _
    $region43: #{tpu_custom_call.1} parent=1 // pred_check_branch
      %129 = sbr.rel (0) target = $region45
    $region44: #{tpu_custom_call.1} parent=1 // pred_region
      %s131 = ssub.s32 1024, 1024
      %132 = vsyncadd [#allocation16], %s131
      %s133 = sshll.u32 [#allocation17], 4
      %s134 = int_to_ptr.vmem [resolvable:$true] %s133
      %139 = dma.hbm_to_vmem [thread:$0]  %s10, 1024, %s134, [#allocation16], 64, 64, 4
    $region45: #{tpu_custom_call.1} parent=1 // pred_fallthru
      _
    // Predicated region
    $region46: #{tpu_custom_call.1} parent=1 // pred_check
      _
    $region47: #{tpu_custom_call.1} parent=1 // pred_check_branch
      %141 = sbr.rel (0) target = $region49
    $region48: #{tpu_custom_call.1} parent=1 // pred_region
      %s143 = ssub.s32 32, 32
      %144 = vsyncadd [#allocation19], %s143
      %s145 = sshll.u32 [#allocation18], 4
      %s146 = int_to_ptr.vmem [resolvable:$true] %s145
      %151 = dma.hbm_to_vmem [thread:$0]  %s11, 32, %s146, [#allocation19], 16, 16, 1
    $region49: #{tpu_custom_call.1} parent=1 // pred_fallthru
      _
    // Predicated region
    $region50: #{tpu_custom_call.1} parent=1 // pred_check
      _
    $region51: #{tpu_custom_call.1} parent=1 // pred_check_branch
      %153 = sbr.rel (0) target = $region53
    $region52: #{tpu_custom_call.1} parent=1 // pred_region
      _
    $region53: #{tpu_custom_call.1} parent=1 // pred_fallthru
      _
    // Predicated region
    $region54: #{tpu_custom_call.1} parent=1 // pred_check
      _
    $region55: #{tpu_custom_call.1} parent=1 // pred_check_branch
      %155 = sbr.rel (0) target = $region57
    $region56: #{tpu_custom_call.1} parent=1 // pred_region
      %s157 = ssub.s32 32, 32
      %158 = vsyncadd [#allocation19], %s157
      %s159 = sshll.u32 [#allocation20], 4
      %s160 = int_to_ptr.vmem [resolvable:$true] %s159
      %165 = dma.hbm_to_vmem [thread:$0]  %s13, 32, %s160, [#allocation19], 16, 16, 1
    $region57: #{tpu_custom_call.1} parent=1 // pred_fallthru
      _
    // Predicated region
    $region58: #{tpu_custom_call.1} parent=1 // pred_check
      _
    $region59: #{tpu_custom_call.1} parent=1 // pred_check_branch
      %167 = sbr.rel (0) target = $region61
    $region60: #{tpu_custom_call.1} parent=1 // pred_region
      %s169 = ssub.s32 32, 32
      %170 = vsyncadd [#allocation22], %s169
      %s171 = sshll.u32 [#allocation21], 4
      %s172 = int_to_ptr.vmem [resolvable:$true] %s171
      %177 = dma.hbm_to_vmem [thread:$0]  %s14, 32, %s172, [#allocation22], 16, 16, 1
    $region61: #{tpu_custom_call.1} parent=1 // pred_fallthru
      _
    // Predicated region
    $region62: #{tpu_custom_call.1} parent=1 // pred_check
      _
    $region63: #{tpu_custom_call.1} parent=1 // pred_check_branch
      %179 = sbr.rel (0) target = $region65
    $region64: #{tpu_custom_call.1} parent=1 // pred_region
      %s181 = ssub.s32 32, 32
      %182 = vsyncadd [#allocation22], %s181
      %s183 = sshll.u32 [#allocation23], 4
      %s184 = int_to_ptr.vmem [resolvable:$true] %s183
      %189 = dma.hbm_to_vmem [thread:$0]  %s15, 32, %s184, [#allocation22], 16, 16, 1
    $region65: #{tpu_custom_call.1} parent=1 // pred_fallthru
      _
    // Predicated region
    $region66: #{tpu_custom_call.1} parent=1 // pred_check
      _
    $region67: #{tpu_custom_call.1} parent=1 // pred_check_branch
      %191 = sbr.rel (0) target = $region69
    $region68: #{tpu_custom_call.1} parent=1 // pred_region
      _
    $region69: #{tpu_custom_call.1} parent=1 // pred_fallthru
      _
    // Predicated region
    $region70: #{tpu_custom_call.1} parent=1 // pred_check
      _
    $region71: #{tpu_custom_call.1} parent=1 // pred_check_branch
      %193 = sbr.rel (0) target = $region73
    $region72: #{tpu_custom_call.1} parent=1 // pred_region
      %s195 = ssub.s32 16, 16
      %196 = vsyncadd [#allocation25], %s195
      %s198 = sshll.u32 [#allocation24], 4
      %s199 = int_to_ptr.vmem [resolvable:$true] %s198
      %201 = dma.hbm_to_vmem [thread:$0]  %s17, 16, %s199, [#allocation25]
    $region73: #{tpu_custom_call.1} parent=1 // pred_fallthru
      _
    // Predicated region
    $region74: #{tpu_custom_call.1} parent=1 // pred_check
      _
    $region75: #{tpu_custom_call.1} parent=1 // pred_check_branch
      %203 = sbr.rel (0) target = $region77
    $region76: #{tpu_custom_call.1} parent=1 // pred_region
      _
    $region77: #{tpu_custom_call.1} parent=1 // pred_fallthru
      _
    // Predicated region
    $region78: #{tpu_custom_call.1} parent=1 // pred_check
      _
    $region79: #{tpu_custom_call.1} parent=1 // pred_check_branch
      %205 = sbr.rel (0) target = $region81
    $region80: #{tpu_custom_call.1} parent=1 // pred_region
      _
    $region81: #{tpu_custom_call.1} parent=1 // pred_fallthru
      _
    // Predicated region
    $region82: #{tpu_custom_call.1} parent=1 // pred_check
      _
    $region83: #{tpu_custom_call.1} parent=1 // pred_check_branch
      %207 = sbr.rel (0) target = $region85
    $region84: #{tpu_custom_call.1} parent=1 // pred_region
      %208 = dma.done [#allocation4], 256
    $region85: #{tpu_custom_call.1} parent=1 // pred_fallthru
      _
    // Predicated region
    $region86: #{tpu_custom_call.1} parent=1 // pred_check
      _
    $region87: #{tpu_custom_call.1} parent=1 // pred_check_branch
      %210 = sbr.rel (0) target = $region89
    $region88: #{tpu_custom_call.1} parent=1 // pred_region
      %211 = dma.done [#allocation7], 32
    $region89: #{tpu_custom_call.1} parent=1 // pred_fallthru
      _
    // Predicated region
    $region90: #{tpu_custom_call.1} parent=1 // pred_check
      _
    $region91: #{tpu_custom_call.1} parent=1 // pred_check_branch
      %213 = sbr.rel (0) target = $region93
    $region92: #{tpu_custom_call.1} parent=1 // pred_region
      %214 = dma.done [#allocation7], 16
    $region93: #{tpu_custom_call.1} parent=1 // pred_fallthru
      _
    // Predicated region
    $region94: #{tpu_custom_call.1} parent=1 // pred_check
      _
    $region95: #{tpu_custom_call.1} parent=1 // pred_check_branch
      %216 = sbr.rel (0) target = $region97
    $region96: #{tpu_custom_call.1} parent=1 // pred_region
      %217 = dma.done [#allocation10], 16
    $region97: #{tpu_custom_call.1} parent=1 // pred_fallthru
      _
    // Predicated region
    $region98: #{tpu_custom_call.1} parent=1 // pred_check
      _
    $region99: #{tpu_custom_call.1} parent=1 // pred_check_branch
      %219 = sbr.rel (0) target = $region101
    $region100: #{tpu_custom_call.1} parent=1 // pred_region
      %220 = dma.done [#allocation10], 64
    $region101: #{tpu_custom_call.1} parent=1 // pred_fallthru
      _
    // Predicated region
    $region102: #{tpu_custom_call.1} parent=1 // pred_check
      _
    $region103: #{tpu_custom_call.1} parent=1 // pred_check_branch
      %222 = sbr.rel (0) target = $region105
    $region104: #{tpu_custom_call.1} parent=1 // pred_region
      %223 = dma.done [#allocation13], 32
    $region105: #{tpu_custom_call.1} parent=1 // pred_fallthru
      _
    // Predicated region
    $region106: #{tpu_custom_call.1} parent=1 // pred_check
      _
    $region107: #{tpu_custom_call.1} parent=1 // pred_check_branch
      %225 = sbr.rel (0) target = $region109
    $region108: #{tpu_custom_call.1} parent=1 // pred_region
      %226 = dma.done [#allocation13], 32
    $region109: #{tpu_custom_call.1} parent=1 // pred_fallthru
      _
    // Predicated region
    $region110: #{tpu_custom_call.1} parent=1 // pred_check
      _
    $region111: #{tpu_custom_call.1} parent=1 // pred_check_branch
      %228 = sbr.rel (0) target = $region113
    $region112: #{tpu_custom_call.1} parent=1 // pred_region
      %229 = dma.done [#allocation16], 32
    $region113: #{tpu_custom_call.1} parent=1 // pred_fallthru
      _
    // Predicated region
    $region114: #{tpu_custom_call.1} parent=1 // pred_check
      _
    $region115: #{tpu_custom_call.1} parent=1 // pred_check_branch
      %231 = sbr.rel (0) target = $region117
    $region116: #{tpu_custom_call.1} parent=1 // pred_region
      %232 = dma.done [#allocation16], 1024
    $region117: #{tpu_custom_call.1} parent=1 // pred_fallthru
      _
    // Predicated region
    $region118: #{tpu_custom_call.1} parent=1 // pred_check
      _
    $region119: #{tpu_custom_call.1} parent=1 // pred_check_branch
      %234 = sbr.rel (0) target = $region121
    $region120: #{tpu_custom_call.1} parent=1 // pred_region
      %235 = dma.done [#allocation19], 32
    $region121: #{tpu_custom_call.1} parent=1 // pred_fallthru
      _
    // Predicated region
    $region122: #{tpu_custom_call.1} parent=1 // pred_check
      _
    $region123: #{tpu_custom_call.1} parent=1 // pred_check_branch
      %237 = sbr.rel (0) target = $region125
    $region124: #{tpu_custom_call.1} parent=1 // pred_region
      %238 = dma.done [#allocation19], 32
    $region125: #{tpu_custom_call.1} parent=1 // pred_fallthru
      _
    // Predicated region
    $region126: #{tpu_custom_call.1} parent=1 // pred_check
      _
    $region127: #{tpu_custom_call.1} parent=1 // pred_check_branch
      %240 = sbr.rel (0) target = $region129
    $region128: #{tpu_custom_call.1} parent=1 // pred_region
      %241 = dma.done [#allocation22], 32
    $region129: #{tpu_custom_call.1} parent=1 // pred_fallthru
      _
    // Predicated region
    $region130: #{tpu_custom_call.1} parent=1 // pred_check
      _
    $region131: #{tpu_custom_call.1} parent=1 // pred_check_branch
      %243 = sbr.rel (0) target = $region133
    $region132: #{tpu_custom_call.1} parent=1 // pred_region
      %244 = dma.done [#allocation22], 32
    $region133: #{tpu_custom_call.1} parent=1 // pred_fallthru
      _
    // Predicated region
    $region134: #{tpu_custom_call.1} parent=1 // pred_check
      _
    $region135: #{tpu_custom_call.1} parent=1 // pred_check_branch
      %246 = sbr.rel (0) target = $region137
    $region136: #{tpu_custom_call.1} parent=1 // pred_region
      %247 = dma.done [#allocation25], 16
    $region137: #{tpu_custom_call.1} parent=1 // pred_fallthru
      _
    %v249 = vld [vmem:[#allocation3] sm:$0xff]
    %v250 = vld [vmem:[#allocation3 + $0x8] sm:$0xff]
    %v251 = vld [vmem:[#allocation8] sm:$0x1]
    %v252 = vld [vmem:[#allocation9] sm:$0x1]
    %vm253 = vcmask 523264
    %v254 = vsel %vm253, %v249, 0.0
    %255 = vadd.xlane.f32.xlu0 %v254
    %v256 = vpop.xlane.xlu0 %255
    %v257 = vsel %vm253, %v250, 0.0
    %258 = vadd.xlane.f32.xlu0 %v257
    %v259 = vpop.xlane.xlu0 %258
    %v260 = vrcp.pop 64.0
    %v261 = vmul.f32 %v256, %v260
    %v262 = vmul.f32 %v259, %v260
    %v263 = vsub.f32 %v249, %v261
    %v264 = vsub.f32 %v250, %v262
    %v265 = vmul.f32 %v263, %v263
    %v266 = vmul.f32 %v264, %v264
    %v267 = vsel %vm253, %v265, 0.0
    %268 = vadd.xlane.f32.xlu0 %v267
    %v269 = vpop.xlane.xlu0 %268
    %v270 = vsel %vm253, %v266, 0.0
    %271 = vadd.xlane.f32.xlu0 %v270
    %v272 = vpop.xlane.xlu0 %271
    %v273 = vmul.f32 %v269, %v260
    %v274 = vmul.f32 %v272, %v260
    %v275 = vadd.f32 %v273, 1e-12
    %v276 = vadd.f32 %v274, 1e-12
    %v277 = vrsqrt.pop %v275
    %v278 = vrsqrt.pop %v276
    %v279 = vmul.f32 %v263, %v277
    %v280 = vmul.f32 %v264, %v278
    %v282 = vlaneseq
    %v283 = vshrl.u32 %v282, 7
    %v284 = vsub.s32 0, %v283
    %v285 = vrot.slane %v251, %v284
    %v287 = vmul.f32 %v279, %v285
    %v288 = vmul.f32 %v280, %v285
    %v290 = vlaneseq
    %v291 = vshrl.u32 %v290, 7
    %v292 = vsub.s32 0, %v291
    %v293 = vrot.slane %v252, %v292
    %v295 = vadd.f32 %v287, %v293
    %v296 = vadd.f32 %v288, %v293
    %v297 = vld [vmem:[#allocation6] sm:$0x1]
    %v298 = vsub.f32 1.0, %v297
    %v299 = vmul.f32 %v298, -1e+09
    %v300 = vld [vmem:[#allocation6 + $0x1] sm:$0x1]
    %v301 = vsub.f32 1.0, %v300
    %v302 = vmul.f32 %v301, -1e+09
    %v303 = vld [vmem:[%s4] sm:$0xff]
    %v304 = vld [vmem:[%s4 + $0x8] sm:$0xff]
    %v305 = vld [vmem:[%s4 + $0x10] sm:$0xff]
    %v306 = vld [vmem:[%s4 + $0x18] sm:$0xff]
    %v307 = vld [vmem:[%s4 + $0x20] sm:$0xff]
    %v308 = vld [vmem:[%s4 + $0x28] sm:$0xff]
    %v309 = vld [vmem:[%s4 + $0x30] sm:$0xff]
    %v310 = vld [vmem:[%s4 + $0x38] sm:$0xff]
    %v311 = vld [vmem:[#allocation11] sm:$0x3]
    %v312 = vpack.c.bf16 %v296, %v295
    %v314 = vlaneseq
    %v315 = vshrl.u32 %v314, 7
    %v316 = vsub.s32 0, %v315
    %v317 = vrot.slane %v311, %v316
    %v318 = vlaneseq
    %v319 = vshrl.u32 %v318, 7
    %v320 = vsub.s32 1, %v319
    %v321 = vrot.slane %v311, %v320
    %v332 = vunpack.c.l.b16 %v303
    %v333 = vunpack.c.h.b16 %v303
    %v334 = vunpack.c.l.b16 %v304
    %v335 = vunpack.c.h.b16 %v304
    %v336 = vunpack.c.l.b16 %v305
    %v337 = vunpack.c.h.b16 %v305
    %v338 = vunpack.c.l.b16 %v306
    %v339 = vunpack.c.h.b16 %v306
    %v340 = vunpack.c.l.b16 %v307
    %v341 = vunpack.c.h.b16 %v307
    %v342 = vunpack.c.l.b16 %v308
    %v343 = vunpack.c.h.b16 %v308
    %v344 = vunpack.c.l.b16 %v309
    %v345 = vunpack.c.h.b16 %v309
    %v346 = vunpack.c.l.b16 %v310
    %v347 = vunpack.c.h.b16 %v310
    %v348 = vpack.c.b16 %v334, %v332
    %v349 = vpack.c.b16 %v335, %v333
    %v350 = vpack.c.b16 %v338, %v336
    %v351 = vpack.c.b16 %v339, %v337
    %v352 = vpack.c.b16 %v342, %v340
    %v353 = vpack.c.b16 %v343, %v341
    %v354 = vpack.c.b16 %v346, %v344
    %v355 = vpack.c.b16 %v347, %v345
    %v365 = vsel %vm253, %v312, 0
    %367 = vmatprep.subr.bf16.mxu0 %v349
    %368 = vmatpush1.bf16.msra.mxu0 %v348
    %369 = vmatprep.subr.bf16.mxu0 %v351
    %370 = vmatpush1.bf16.msra.mxu0 %v350
    %371 = vmatprep.subr.bf16.mxu0 %v353
    %372 = vmatpush1.bf16.msra.mxu0 %v352
    %373 = vmatprep.subr.bf16.mxu0 %v355
    %374 = vmatpush1.bf16.msra.mxu0 %v354
    %375 = vmatprep.subr.bf16.mxu0 0
    %376 = vmatpush1.bf16.msra.mxu0 0
    %377 = vmatprep.subr.bf16.mxu0 0
    %378 = vmatpush1.bf16.msra.mxu0 0
    %379 = vmatprep.subr.bf16.mxu0 0
    %380 = vmatpush1.bf16.msra.mxu0 0
    %381 = vmatprep.subr.bf16.mxu0 0
    %382 = vmatpush1.bf16.msra.mxu0 0
    %383 = vmatprep.subr.bf16.mxu0 0
    %384 = vmatpush1.bf16.msra.mxu0 0
    %385 = vmatprep.subr.bf16.mxu0 0
    %386 = vmatpush1.bf16.msra.mxu0 0
    %387 = vmatprep.subr.bf16.mxu0 0
    %388 = vmatpush1.bf16.msra.mxu0 0
    %389 = vmatprep.subr.bf16.mxu0 0
    %390 = vmatpush1.bf16.msra.mxu0 0
    %391 = vmatprep.subr.bf16.mxu0 0
    %392 = vmatpush1.bf16.msra.mxu0 0
    %393 = vmatprep.subr.bf16.mxu0 0
    %394 = vmatpush1.bf16.msra.mxu0 0
    %395 = vmatprep.subr.bf16.mxu0 0
    %396 = vmatpush1.bf16.msra.mxu0 0
    %397 = vmatprep.subr.bf16.mxu0 0
    %398 = vmatpush1.bf16.msra.mxu0 0
    %399 = vmatprep.mubr.bf16.mxu0 0
    %400 = vmatmul.mubr.bf16.gmra.mrb[0].mxu0 %v365
    %v401 = vpop.f32.mrb[0].mxu0
    %v402 = vadd.f32 %v317, %v401
    %v403 = vpop.f32.mrb[0].mxu0
    %v404 = vadd.f32 %v321, %v403
    %v405 = vpop.f32.mrb[0].mxu0
    %v406 = vadd.f32 %v317, %v405
    %v407 = vpop.f32.mrb[0].mxu0
    %v408 = vadd.f32 %v321, %v407
    %409 = vdwg.mxu0
    %v410 = vpack.c.bf16 %v402, %v402
    %412 = vrot.lane.b32.xlu0 %v410, 64
    %v413 = vpop.permute.xlu0 %412
    %vm414 = vcmask 130048
    %v416 = vsel %vm414, %v410, 0
    %v419 = vsel %vm414, %v413, 0
    %421 = vmatprep.subr.bf16.mxu0 0
    %422 = vmatpush1.bf16.xpose.msra.mxu0 %v419
    %423 = vmatprep.subr.bf16.mxu0 0
    %424 = vmatpush1.bf16.xpose.msra.mxu0 0
    %425 = vmatprep.subr.bf16.mxu0 0
    %426 = vmatpush1.bf16.xpose.msra.mxu0 0
    %427 = vmatprep.subr.bf16.mxu0 0
    %428 = vmatpush1.bf16.xpose.msra.mxu0 0
    %429 = vmatprep.subr.bf16.mxu0 0
    %430 = vmatpush1.bf16.xpose.msra.mxu0 0
    %431 = vmatprep.subr.bf16.mxu0 0
    %432 = vmatpush1.bf16.xpose.msra.mxu0 0
    %433 = vmatprep.subr.bf16.mxu0 0
    %434 = vmatpush1.bf16.xpose.msra.mxu0 0
    %435 = vmatprep.subr.bf16.mxu0 0
    %436 = vmatpush1.bf16.xpose.msra.mxu0 0
    %437 = vmatprep.subr.bf16.mxu0 0
    %438 = vmatpush1.bf16.xpose.msra.mxu0 0
    %439 = vmatprep.subr.bf16.mxu0 0
    %440 = vmatpush1.bf16.xpose.msra.mxu0 0
    %441 = vmatprep.subr.bf16.mxu0 0
    %442 = vmatpush1.bf16.xpose.msra.mxu0 0
    %443 = vmatprep.subr.bf16.mxu0 0
    %444 = vmatpush1.bf16.xpose.msra.mxu0 0
    %445 = vmatprep.subr.bf16.mxu0 0
    %446 = vmatpush1.bf16.xpose.msra.mxu0 0
    %447 = vmatprep.subr.bf16.mxu0 0
    %448 = vmatpush1.bf16.xpose.msra.mxu0 0
    %449 = vmatprep.subr.bf16.mxu0 0
    %450 = vmatpush1.bf16.xpose.msra.mxu0 0
    %451 = vmatprep.subr.bf16.mxu0 0
    %452 = vmatpush1.bf16.xpose.msra.mxu0 0
    %453 = vmatprep.mubr.bf16.mxu0 0
    %454 = vmatmul.mubr.bf16.gmra.mrb[0].mxu0 %v416
    %v455 = vpop.f32.mrb[0].mxu0
    %v456 = vadd.f32 0.0, %v455
    %v457 = vpop.f32.mrb[0].mxu0
    %v458 = vpop.f32.mrb[0].mxu0
    %v459 = vpop.f32.mrb[0].mxu0
    %460 = vdwg.mxu0
    %v461 = vmul.f32 %v456, 0.25
    %v462 = vlaneseq
    %v463 = vshrl.u32 %v462, 7
    %v464 = vsub.s32 0, %v463
    %v465 = vrot.slane %v299, %v464
    %v466 = vadd.f32 %v461, %v465
    %vm467 = vcmask 64512
    %v468 = vsel %vm467, %v466, -inf
    %469 = vmax.xlane.f32.xlu0 %v468
    %v470 = vpop.xlane.xlu0 %469
    %v471 = vsub.f32 %v466, %v470
    %v472 = vmul.f32 %v471, 1.442695
    %v473 = vpow.pop %v472
    %v474 = vsel %vm467, %v473, 0.0
    %475 = vadd.xlane.f32.xlu0 %v474
    %v476 = vpop.xlane.xlu0 %475
    %v477 = vrcp.pop %v476
    %v478 = vmul.f32 %v473, %v477
    %v479 = vpack.c.bf16 %v478, %v478
    %v480 = vpack.c.bf16 %v404, %v404
    %v482 = vsel %vm467, %v479, 0
    %vm484 = vcmask 1043456
    %v486 = vsel %vm484, %v480, 0
    %488 = vmatprep.subr.bf16.mxu0 0
    %489 = vmatpush1.bf16.msra.mxu0 %v486
    %490 = vmatprep.subr.bf16.mxu0 0
    %491 = vmatpush1.bf16.msra.mxu0 0
    %492 = vmatprep.subr.bf16.mxu0 0
    %493 = vmatpush1.bf16.msra.mxu0 0
    %494 = vmatprep.subr.bf16.mxu0 0
    %495 = vmatpush1.bf16.msra.mxu0 0
    %496 = vmatprep.subr.bf16.mxu0 0
    %497 = vmatpush1.bf16.msra.mxu0 0
    %498 = vmatprep.subr.bf16.mxu0 0
    %499 = vmatpush1.bf16.msra.mxu0 0
    %500 = vmatprep.subr.bf16.mxu0 0
    %501 = vmatpush1.bf16.msra.mxu0 0
    %502 = vmatprep.subr.bf16.mxu0 0
    %503 = vmatpush1.bf16.msra.mxu0 0
    %504 = vmatprep.subr.bf16.mxu0 0
    %505 = vmatpush1.bf16.msra.mxu0 0
    %506 = vmatprep.subr.bf16.mxu0 0
    %507 = vmatpush1.bf16.msra.mxu0 0
    %508 = vmatprep.subr.bf16.mxu0 0
    %509 = vmatpush1.bf16.msra.mxu0 0
    %510 = vmatprep.subr.bf16.mxu0 0
    %511 = vmatpush1.bf16.msra.mxu0 0
    %512 = vmatprep.subr.bf16.mxu0 0
    %513 = vmatpush1.bf16.msra.mxu0 0
    %514 = vmatprep.subr.bf16.mxu0 0
    %515 = vmatpush1.bf16.msra.mxu0 0
    %516 = vmatprep.subr.bf16.mxu0 0
    %517 = vmatpush1.bf16.msra.mxu0 0
    %518 = vmatprep.subr.bf16.mxu0 0
    %519 = vmatpush1.bf16.msra.mxu0 0
    %520 = vmatprep.mubr.bf16.mxu0 0
    %521 = vmatmul.mubr.bf16.gmra.mrb[0].mxu0 %v482
    %v522 = vpop.f32.mrb[0].mxu0
    %v523 = vadd.f32 0.0, %v522
    %v524 = vpop.f32.mrb[0].mxu0
    %v525 = vpop.f32.mrb[0].mxu0
    %v526 = vpop.f32.mrb[0].mxu0
    %527 = vdwg.mxu0
    %528 = vst.msk [vmem:[#allocation2] sm:$0xff] %vm414, %v523
    %529 = vrot.lane.b32.xlu0 %v410, 112
    %v530 = vpop.permute.xlu0 %529
    %531 = vrot.lane.b32.xlu0 %v410, 48
    %v532 = vpop.permute.xlu0 %531
    %v534 = vsel %vm414, %v530, 0
    %v537 = vsel %vm414, %v532, 0
    %539 = vmatprep.subr.bf16.mxu0 0
    %540 = vmatpush1.bf16.xpose.msra.mxu0 %v537
    %541 = vmatprep.subr.bf16.mxu0 0
    %542 = vmatpush1.bf16.xpose.msra.mxu0 0
    %543 = vmatprep.subr.bf16.mxu0 0
    %544 = vmatpush1.bf16.xpose.msra.mxu0 0
    %545 = vmatprep.subr.bf16.mxu0 0
    %546 = vmatpush1.bf16.xpose.msra.mxu0 0
    %547 = vmatprep.subr.bf16.mxu0 0
    %548 = vmatpush1.bf16.xpose.msra.mxu0 0
    %549 = vmatprep.subr.bf16.mxu0 0
    %550 = vmatpush1.bf16.xpose.msra.mxu0 0
    %551 = vmatprep.subr.bf16.mxu0 0
    %552 = vmatpush1.bf16.xpose.msra.mxu0 0
    %553 = vmatprep.subr.bf16.mxu0 0
    %554 = vmatpush1.bf16.xpose.msra.mxu0 0
    %555 = vmatprep.subr.bf16.mxu0 0
    %556 = vmatpush1.bf16.xpose.msra.mxu0 0
    %557 = vmatprep.subr.bf16.mxu0 0
    %558 = vmatpush1.bf16.xpose.msra.mxu0 0
    %559 = vmatprep.subr.bf16.mxu0 0
    %560 = vmatpush1.bf16.xpose.msra.mxu0 0
    %561 = vmatprep.subr.bf16.mxu0 0
    %562 = vmatpush1.bf16.xpose.msra.mxu0 0
    %563 = vmatprep.subr.bf16.mxu0 0
    %564 = vmatpush1.bf16.xpose.msra.mxu0 0
    %565 = vmatprep.subr.bf16.mxu0 0
    %566 = vmatpush1.bf16.xpose.msra.mxu0 0
    %567 = vmatprep.subr.bf16.mxu0 0
    %568 = vmatpush1.bf16.xpose.msra.mxu0 0
    %569 = vmatprep.subr.bf16.mxu0 0
    %570 = vmatpush1.bf16.xpose.msra.mxu0 0
    %571 = vmatprep.mubr.bf16.mxu0 0
    %572 = vmatmul.mubr.bf16.gmra.mrb[0].mxu0 %v534
    %v573 = vpop.f32.mrb[0].mxu0
    %v574 = vadd.f32 0.0, %v573
    %v575 = vpop.f32.mrb[0].mxu0
    %v576 = vpop.f32.mrb[0].mxu0
    %v577 = vpop.f32.mrb[0].mxu0
    %578 = vdwg.mxu0
    %v579 = vmul.f32 %v574, 0.25
    %v580 = vadd.f32 %v579, %v465
    %v581 = vsel %vm467, %v580, -inf
    %582 = vmax.xlane.f32.xlu0 %v581
    %v583 = vpop.xlane.xlu0 %582
    %v584 = vsub.f32 %v580, %v583
    %v585 = vmul.f32 %v584, 1.442695
    %v586 = vpow.pop %v585
    %v587 = vsel %vm467, %v586, 0.0
    %588 = vadd.xlane.f32.xlu0 %v587
    %v589 = vpop.xlane.xlu0 %588
    %v590 = vrcp.pop %v589
    %v591 = vmul.f32 %v586, %v590
    %v592 = vpack.c.bf16 %v591, %v591
    %594 = vrot.lane.b32.xlu0 %v480, 112
    %v595 = vpop.permute.xlu0 %594
    %v597 = vsel %vm467, %v592, 0
    %v600 = vsel %vm484, %v595, 0
    %602 = vmatprep.subr.bf16.mxu0 0
    %603 = vmatpush1.bf16.msra.mxu0 %v600
    %604 = vmatprep.subr.bf16.mxu0 0
    %605 = vmatpush1.bf16.msra.mxu0 0
    %606 = vmatprep.subr.bf16.mxu0 0
    %607 = vmatpush1.bf16.msra.mxu0 0
    %608 = vmatprep.subr.bf16.mxu0 0
    %609 = vmatpush1.bf16.msra.mxu0 0
    %610 = vmatprep.subr.bf16.mxu0 0
    %611 = vmatpush1.bf16.msra.mxu0 0
    %612 = vmatprep.subr.bf16.mxu0 0
    %613 = vmatpush1.bf16.msra.mxu0 0
    %614 = vmatprep.subr.bf16.mxu0 0
    %615 = vmatpush1.bf16.msra.mxu0 0
    %616 = vmatprep.subr.bf16.mxu0 0
    %617 = vmatpush1.bf16.msra.mxu0 0
    %618 = vmatprep.subr.bf16.mxu0 0
    %619 = vmatpush1.bf16.msra.mxu0 0
    %620 = vmatprep.subr.bf16.mxu0 0
    %621 = vmatpush1.bf16.msra.mxu0 0
    %622 = vmatprep.subr.bf16.mxu0 0
    %623 = vmatpush1.bf16.msra.mxu0 0
    %624 = vmatprep.subr.bf16.mxu0 0
    %625 = vmatpush1.bf16.msra.mxu0 0
    %626 = vmatprep.subr.bf16.mxu0 0
    %627 = vmatpush1.bf16.msra.mxu0 0
    %628 = vmatprep.subr.bf16.mxu0 0
    %629 = vmatpush1.bf16.msra.mxu0 0
    %630 = vmatprep.subr.bf16.mxu0 0
    %631 = vmatpush1.bf16.msra.mxu0 0
    %632 = vmatprep.subr.bf16.mxu0 0
    %633 = vmatpush1.bf16.msra.mxu0 0
    %634 = vmatprep.mubr.bf16.mxu0 0
    %635 = vmatmul.mubr.bf16.gmra.mrb[0].mxu0 %v597
    %v636 = vpop.f32.mrb[0].mxu0
    %v637 = vadd.f32 0.0, %v636
    %v638 = vpop.f32.mrb[0].mxu0
    %v639 = vpop.f32.mrb[0].mxu0
    %v640 = vpop.f32.mrb[0].mxu0
    %641 = vdwg.mxu0
    %643 = vrot.lane.b32.xlu0 %v637, 16
    %v644 = vpop.permute.xlu0 %643
    %vm646 = vcmask 261248
    %647 = vst.msk [vmem:[#allocation2] sm:$0xff] %vm646, %v644
    %648 = vrot.lane.b32.xlu0 %v410, 96
    %v649 = vpop.permute.xlu0 %648
    %650 = vrot.lane.b32.xlu0 %v410, 32
    %v651 = vpop.permute.xlu0 %650
    %v653 = vsel %vm414, %v649, 0
    %v656 = vsel %vm414, %v651, 0
    %658 = vmatprep.subr.bf16.mxu0 0
    %659 = vmatpush1.bf16.xpose.msra.mxu0 %v656
    %660 = vmatprep.subr.bf16.mxu0 0
    %661 = vmatpush1.bf16.xpose.msra.mxu0 0
    %662 = vmatprep.subr.bf16.mxu0 0
    %663 = vmatpush1.bf16.xpose.msra.mxu0 0
    %664 = vmatprep.subr.bf16.mxu0 0
    %665 = vmatpush1.bf16.xpose.msra.mxu0 0
    %666 = vmatprep.subr.bf16.mxu0 0
    %667 = vmatpush1.bf16.xpose.msra.mxu0 0
    %668 = vmatprep.subr.bf16.mxu0 0
    %669 = vmatpush1.bf16.xpose.msra.mxu0 0
    %670 = vmatprep.subr.bf16.mxu0 0
    %671 = vmatpush1.bf16.xpose.msra.mxu0 0
    %672 = vmatprep.subr.bf16.mxu0 0
    %673 = vmatpush1.bf16.xpose.msra.mxu0 0
    %674 = vmatprep.subr.bf16.mxu0 0
    %675 = vmatpush1.bf16.xpose.msra.mxu0 0
    %676 = vmatprep.subr.bf16.mxu0 0
    %677 = vmatpush1.bf16.xpose.msra.mxu0 0
    %678 = vmatprep.subr.bf16.mxu0 0
    %679 = vmatpush1.bf16.xpose.msra.mxu0 0
    %680 = vmatprep.subr.bf16.mxu0 0
    %681 = vmatpush1.bf16.xpose.msra.mxu0 0
    %682 = vmatprep.subr.bf16.mxu0 0
    %683 = vmatpush1.bf16.xpose.msra.mxu0 0
    %684 = vmatprep.subr.bf16.mxu0 0
    %685 = vmatpush1.bf16.xpose.msra.mxu0 0
    %686 = vmatprep.subr.bf16.mxu0 0
    %687 = vmatpush1.bf16.xpose.msra.mxu0 0
    %688 = vmatprep.subr.bf16.mxu0 0
    %689 = vmatpush1.bf16.xpose.msra.mxu0 0
    %690 = vmatprep.mubr.bf16.mxu0 0
    %691 = vmatmul.mubr.bf16.gmra.mrb[0].mxu0 %v653
    %v692 = vpop.f32.mrb[0].mxu0
    %v693 = vadd.f32 0.0, %v692
    %v694 = vpop.f32.mrb[0].mxu0
    %v695 = vpop.f32.mrb[0].mxu0
    %v696 = vpop.f32.mrb[0].mxu0
    %697 = vdwg.mxu0
    %v698 = vmul.f32 %v693, 0.25
    %v699 = vadd.f32 %v698, %v465
    %v700 = vsel %vm467, %v699, -inf
    %701 = vmax.xlane.f32.xlu0 %v700
    %v702 = vpop.xlane.xlu0 %701
    %v703 = vsub.f32 %v699, %v702
    %v704 = vmul.f32 %v703, 1.442695
    %v705 = vpow.pop %v704
    %v706 = vsel %vm467, %v705, 0.0
    %707 = vadd.xlane.f32.xlu0 %v706
    %v708 = vpop.xlane.xlu0 %707
    %v709 = vrcp.pop %v708
    %v710 = vmul.f32 %v705, %v709
    %v711 = vpack.c.bf16 %v710, %v710
    %712 = vrot.lane.b32.xlu0 %v480, 96
    %v713 = vpop.permute.xlu0 %712
    %v715 = vsel %vm467, %v711, 0
    %v718 = vsel %vm484, %v713, 0
    %720 = vmatprep.subr.bf16.mxu0 0
    %721 = vmatpush1.bf16.msra.mxu0 %v718
    %722 = vmatprep.subr.bf16.mxu0 0
    %723 = vmatpush1.bf16.msra.mxu0 0
    %724 = vmatprep.subr.bf16.mxu0 0
    %725 = vmatpush1.bf16.msra.mxu0 0
    %726 = vmatprep.subr.bf16.mxu0 0
    %727 = vmatpush1.bf16.msra.mxu0 0
    %728 = vmatprep.subr.bf16.mxu0 0
    %729 = vmatpush1.bf16.msra.mxu0 0
    %730 = vmatprep.subr.bf16.mxu0 0
    %731 = vmatpush1.bf16.msra.mxu0 0
    %732 = vmatprep.subr.bf16.mxu0 0
    %733 = vmatpush1.bf16.msra.mxu0 0
    %734 = vmatprep.subr.bf16.mxu0 0
    %735 = vmatpush1.bf16.msra.mxu0 0
    %736 = vmatprep.subr.bf16.mxu0 0
    %737 = vmatpush1.bf16.msra.mxu0 0
    %738 = vmatprep.subr.bf16.mxu0 0
    %739 = vmatpush1.bf16.msra.mxu0 0
    %740 = vmatprep.subr.bf16.mxu0 0
    %741 = vmatpush1.bf16.msra.mxu0 0
    %742 = vmatprep.subr.bf16.mxu0 0
    %743 = vmatpush1.bf16.msra.mxu0 0
    %744 = vmatprep.subr.bf16.mxu0 0
    %745 = vmatpush1.bf16.msra.mxu0 0
    %746 = vmatprep.subr.bf16.mxu0 0
    %747 = vmatpush1.bf16.msra.mxu0 0
    %748 = vmatprep.subr.bf16.mxu0 0
    %749 = vmatpush1.bf16.msra.mxu0 0
    %750 = vmatprep.subr.bf16.mxu0 0
    %751 = vmatpush1.bf16.msra.mxu0 0
    %752 = vmatprep.mubr.bf16.mxu0 0
    %753 = vmatmul.mubr.bf16.gmra.mrb[0].mxu0 %v715
    %v754 = vpop.f32.mrb[0].mxu0
    %v755 = vadd.f32 0.0, %v754
    %v756 = vpop.f32.mrb[0].mxu0
    %v757 = vpop.f32.mrb[0].mxu0
    %v758 = vpop.f32.mrb[0].mxu0
    %759 = vdwg.mxu0
    %761 = vrot.lane.b32.xlu0 %v755, 32
    %v762 = vpop.permute.xlu0 %761
    %vm764 = vcmask 392448
    %765 = vst.msk [vmem:[#allocation2] sm:$0xff] %vm764, %v762
    %766 = vrot.lane.b32.xlu0 %v410, 80
    %v767 = vpop.permute.xlu0 %766
    %768 = vrot.lane.b32.xlu0 %v410, 16
    %v769 = vpop.permute.xlu0 %768
    %v771 = vsel %vm414, %v767, 0
    %v774 = vsel %vm414, %v769, 0
    %776 = vmatprep.subr.bf16.mxu0 0
    %777 = vmatpush1.bf16.xpose.msra.mxu0 %v774
    %778 = vmatprep.subr.bf16.mxu0 0
    %779 = vmatpush1.bf16.xpose.msra.mxu0 0
    %780 = vmatprep.subr.bf16.mxu0 0
    %781 = vmatpush1.bf16.xpose.msra.mxu0 0
    %782 = vmatprep.subr.bf16.mxu0 0
    %783 = vmatpush1.bf16.xpose.msra.mxu0 0
    %784 = vmatprep.subr.bf16.mxu0 0
    %785 = vmatpush1.bf16.xpose.msra.mxu0 0
    %786 = vmatprep.subr.bf16.mxu0 0
    %787 = vmatpush1.bf16.xpose.msra.mxu0 0
    %788 = vmatprep.subr.bf16.mxu0 0
    %789 = vmatpush1.bf16.xpose.msra.mxu0 0
    %790 = vmatprep.subr.bf16.mxu0 0
    %791 = vmatpush1.bf16.xpose.msra.mxu0 0
    %792 = vmatprep.subr.bf16.mxu0 0
    %793 = vmatpush1.bf16.xpose.msra.mxu0 0
    %794 = vmatprep.subr.bf16.mxu0 0
    %795 = vmatpush1.bf16.xpose.msra.mxu0 0
    %796 = vmatprep.subr.bf16.mxu0 0
    %797 = vmatpush1.bf16.xpose.msra.mxu0 0
    %798 = vmatprep.subr.bf16.mxu0 0
    %799 = vmatpush1.bf16.xpose.msra.mxu0 0
    %800 = vmatprep.subr.bf16.mxu0 0
    %801 = vmatpush1.bf16.xpose.msra.mxu0 0
    %802 = vmatprep.subr.bf16.mxu0 0
    %803 = vmatpush1.bf16.xpose.msra.mxu0 0
    %804 = vmatprep.subr.bf16.mxu0 0
    %805 = vmatpush1.bf16.xpose.msra.mxu0 0
    %806 = vmatprep.subr.bf16.mxu0 0
    %807 = vmatpush1.bf16.xpose.msra.mxu0 0
    %808 = vmatprep.mubr.bf16.mxu0 0
    %809 = vmatmul.mubr.bf16.gmra.mrb[0].mxu0 %v771
    %v810 = vpop.f32.mrb[0].mxu0
    %v811 = vadd.f32 0.0, %v810
    %v812 = vpop.f32.mrb[0].mxu0
    %v813 = vpop.f32.mrb[0].mxu0
    %v814 = vpop.f32.mrb[0].mxu0
    %815 = vdwg.mxu0
    %v816 = vmul.f32 %v811, 0.25
    %v817 = vadd.f32 %v816, %v465
    %v818 = vsel %vm467, %v817, -inf
    %819 = vmax.xlane.f32.xlu0 %v818
    %v820 = vpop.xlane.xlu0 %819
    %v821 = vsub.f32 %v817, %v820
    %v822 = vmul.f32 %v821, 1.442695
    %v823 = vpow.pop %v822
    %v824 = vsel %vm467, %v823, 0.0
    %825 = vadd.xlane.f32.xlu0 %v824
    %v826 = vpop.xlane.xlu0 %825
    %v827 = vrcp.pop %v826
    %v828 = vmul.f32 %v823, %v827
    %v829 = vpack.c.bf16 %v828, %v828
    %830 = vrot.lane.b32.xlu0 %v480, 80
    %v831 = vpop.permute.xlu0 %830
    %v833 = vsel %vm467, %v829, 0
    %v836 = vsel %vm484, %v831, 0
    %838 = vmatprep.subr.bf16.mxu0 0
    %839 = vmatpush1.bf16.msra.mxu0 %v836
    %840 = vmatprep.subr.bf16.mxu0 0
    %841 = vmatpush1.bf16.msra.mxu0 0
    %842 = vmatprep.subr.bf16.mxu0 0
    %843 = vmatpush1.bf16.msra.mxu0 0
    %844 = vmatprep.subr.bf16.mxu0 0
    %845 = vmatpush1.bf16.msra.mxu0 0
    %846 = vmatprep.subr.bf16.mxu0 0
    %847 = vmatpush1.bf16.msra.mxu0 0
    %848 = vmatprep.subr.bf16.mxu0 0
    %849 = vmatpush1.bf16.msra.mxu0 0
    %850 = vmatprep.subr.bf16.mxu0 0
    %851 = vmatpush1.bf16.msra.mxu0 0
    %852 = vmatprep.subr.bf16.mxu0 0
    %853 = vmatpush1.bf16.msra.mxu0 0
    %854 = vmatprep.subr.bf16.mxu0 0
    %855 = vmatpush1.bf16.msra.mxu0 0
    %856 = vmatprep.subr.bf16.mxu0 0
    %857 = vmatpush1.bf16.msra.mxu0 0
    %858 = vmatprep.subr.bf16.mxu0 0
    %859 = vmatpush1.bf16.msra.mxu0 0
    %860 = vmatprep.subr.bf16.mxu0 0
    %861 = vmatpush1.bf16.msra.mxu0 0
    %862 = vmatprep.subr.bf16.mxu0 0
    %863 = vmatpush1.bf16.msra.mxu0 0
    %864 = vmatprep.subr.bf16.mxu0 0
    %865 = vmatpush1.bf16.msra.mxu0 0
    %866 = vmatprep.subr.bf16.mxu0 0
    %867 = vmatpush1.bf16.msra.mxu0 0
    %868 = vmatprep.subr.bf16.mxu0 0
    %869 = vmatpush1.bf16.msra.mxu0 0
    %870 = vmatprep.mubr.bf16.mxu0 0
    %871 = vmatmul.mubr.bf16.gmra.mrb[0].mxu0 %v833
    %v872 = vpop.f32.mrb[0].mxu0
    %v873 = vadd.f32 0.0, %v872
    %v874 = vpop.f32.mrb[0].mxu0
    %v875 = vpop.f32.mrb[0].mxu0
    %v876 = vpop.f32.mrb[0].mxu0
    %877 = vdwg.mxu0
    %879 = vrot.lane.b32.xlu0 %v873, 48
    %v880 = vpop.permute.xlu0 %879
    %vm882 = vcmask 523648
    %883 = vst.msk [vmem:[#allocation2] sm:$0xff] %vm882, %v880
    %v884 = vpack.c.bf16 %v406, %v406
    %886 = vrot.lane.b32.xlu0 %v884, 64
    %v887 = vpop.permute.xlu0 %886
    %v889 = vsel %vm414, %v884, 0
    %v892 = vsel %vm414, %v887, 0
    %894 = vmatprep.subr.bf16.mxu0 0
    %895 = vmatpush1.bf16.xpose.msra.mxu0 %v892
    %896 = vmatprep.subr.bf16.mxu0 0
    %897 = vmatpush1.bf16.xpose.msra.mxu0 0
    %898 = vmatprep.subr.bf16.mxu0 0
    %899 = vmatpush1.bf16.xpose.msra.mxu0 0
    %900 = vmatprep.subr.bf16.mxu0 0
    %901 = vmatpush1.bf16.xpose.msra.mxu0 0
    %902 = vmatprep.subr.bf16.mxu0 0
    %903 = vmatpush1.bf16.xpose.msra.mxu0 0
    %904 = vmatprep.subr.bf16.mxu0 0
    %905 = vmatpush1.bf16.xpose.msra.mxu0 0
    %906 = vmatprep.subr.bf16.mxu0 0
    %907 = vmatpush1.bf16.xpose.msra.mxu0 0
    %908 = vmatprep.subr.bf16.mxu0 0
    %909 = vmatpush1.bf16.xpose.msra.mxu0 0
    %910 = vmatprep.subr.bf16.mxu0 0
    %911 = vmatpush1.bf16.xpose.msra.mxu0 0
    %912 = vmatprep.subr.bf16.mxu0 0
    %913 = vmatpush1.bf16.xpose.msra.mxu0 0
    %914 = vmatprep.subr.bf16.mxu0 0
    %915 = vmatpush1.bf16.xpose.msra.mxu0 0
    %916 = vmatprep.subr.bf16.mxu0 0
    %917 = vmatpush1.bf16.xpose.msra.mxu0 0
    %918 = vmatprep.subr.bf16.mxu0 0
    %919 = vmatpush1.bf16.xpose.msra.mxu0 0
    %920 = vmatprep.subr.bf16.mxu0 0
    %921 = vmatpush1.bf16.xpose.msra.mxu0 0
    %922 = vmatprep.subr.bf16.mxu0 0
    %923 = vmatpush1.bf16.xpose.msra.mxu0 0
    %924 = vmatprep.subr.bf16.mxu0 0
    %925 = vmatpush1.bf16.xpose.msra.mxu0 0
    %926 = vmatprep.mubr.bf16.mxu0 0
    %927 = vmatmul.mubr.bf16.gmra.mrb[0].mxu0 %v889
    %v928 = vpop.f32.mrb[0].mxu0
    %v929 = vadd.f32 0.0, %v928
    %v930 = vpop.f32.mrb[0].mxu0
    %v931 = vpop.f32.mrb[0].mxu0
    %v932 = vpop.f32.mrb[0].mxu0
    %933 = vdwg.mxu0
    %v934 = vmul.f32 %v929, 0.25
    %v935 = vlaneseq
    %v936 = vshrl.u32 %v935, 7
    %v937 = vsub.s32 0, %v936
    %v938 = vrot.slane %v302, %v937
    %v939 = vadd.f32 %v934, %v938
    %v940 = vsel %vm467, %v939, -inf
    %941 = vmax.xlane.f32.xlu0 %v940
    %v942 = vpop.xlane.xlu0 %941
    %v943 = vsub.f32 %v939, %v942
    %v944 = vmul.f32 %v943, 1.442695
    %v945 = vpow.pop %v944
    %v946 = vsel %vm467, %v945, 0.0
    %947 = vadd.xlane.f32.xlu0 %v946
    %v948 = vpop.xlane.xlu0 %947
    %v949 = vrcp.pop %v948
    %v950 = vmul.f32 %v945, %v949
    %v951 = vpack.c.bf16 %v950, %v950
    %v952 = vpack.c.bf16 %v408, %v408
    %v954 = vsel %vm467, %v951, 0
    %v957 = vsel %vm484, %v952, 0
    %959 = vmatprep.subr.bf16.mxu0 0
    %960 = vmatpush1.bf16.msra.mxu0 %v957
    %961 = vmatprep.subr.bf16.mxu0 0
    %962 = vmatpush1.bf16.msra.mxu0 0
    %963 = vmatprep.subr.bf16.mxu0 0
    %964 = vmatpush1.bf16.msra.mxu0 0
    %965 = vmatprep.subr.bf16.mxu0 0
    %966 = vmatpush1.bf16.msra.mxu0 0
    %967 = vmatprep.subr.bf16.mxu0 0
    %968 = vmatpush1.bf16.msra.mxu0 0
    %969 = vmatprep.subr.bf16.mxu0 0
    %970 = vmatpush1.bf16.msra.mxu0 0
    %971 = vmatprep.subr.bf16.mxu0 0
    %972 = vmatpush1.bf16.msra.mxu0 0
    %973 = vmatprep.subr.bf16.mxu0 0
    %974 = vmatpush1.bf16.msra.mxu0 0
    %975 = vmatprep.subr.bf16.mxu0 0
    %976 = vmatpush1.bf16.msra.mxu0 0
    %977 = vmatprep.subr.bf16.mxu0 0
    %978 = vmatpush1.bf16.msra.mxu0 0
    %979 = vmatprep.subr.bf16.mxu0 0
    %980 = vmatpush1.bf16.msra.mxu0 0
    %981 = vmatprep.subr.bf16.mxu0 0
    %982 = vmatpush1.bf16.msra.mxu0 0
    %983 = vmatprep.subr.bf16.mxu0 0
    %984 = vmatpush1.bf16.msra.mxu0 0
    %985 = vmatprep.subr.bf16.mxu0 0
    %986 = vmatpush1.bf16.msra.mxu0 0
    %987 = vmatprep.subr.bf16.mxu0 0
    %988 = vmatpush1.bf16.msra.mxu0 0
    %989 = vmatprep.subr.bf16.mxu0 0
    %990 = vmatpush1.bf16.msra.mxu0 0
    %991 = vmatprep.mubr.bf16.mxu0 0
    %992 = vmatmul.mubr.bf16.gmra.mrb[0].mxu0 %v954
    %v993 = vpop.f32.mrb[0].mxu0
    %v994 = vadd.f32 0.0, %v993
    %v995 = vpop.f32.mrb[0].mxu0
    %v996 = vpop.f32.mrb[0].mxu0
    %v997 = vpop.f32.mrb[0].mxu0
    %998 = vdwg.mxu0
    %999 = vst.msk [vmem:[#allocation2 + $0x8] sm:$0xff] %vm414, %v994
    %1000 = vrot.lane.b32.xlu0 %v884, 112
    %v1001 = vpop.permute.xlu0 %1000
    %1002 = vrot.lane.b32.xlu0 %v884, 48
    %v1003 = vpop.permute.xlu0 %1002
    %v1005 = vsel %vm414, %v1001, 0
    %v1008 = vsel %vm414, %v1003, 0
    %1010 = vmatprep.subr.bf16.mxu0 0
    %1011 = vmatpush1.bf16.xpose.msra.mxu0 %v1008
    %1012 = vmatprep.subr.bf16.mxu0 0
    %1013 = vmatpush1.bf16.xpose.msra.mxu0 0
    %1014 = vmatprep.subr.bf16.mxu0 0
    %1015 = vmatpush1.bf16.xpose.msra.mxu0 0
    %1016 = vmatprep.subr.bf16.mxu0 0
    %1017 = vmatpush1.bf16.xpose.msra.mxu0 0
    %1018 = vmatprep.subr.bf16.mxu0 0
    %1019 = vmatpush1.bf16.xpose.msra.mxu0 0
    %1020 = vmatprep.subr.bf16.mxu0 0
    %1021 = vmatpush1.bf16.xpose.msra.mxu0 0
    %1022 = vmatprep.subr.bf16.mxu0 0
    %1023 = vmatpush1.bf16.xpose.msra.mxu0 0
    %1024 = vmatprep.subr.bf16.mxu0 0
    %1025 = vmatpush1.bf16.xpose.msra.mxu0 0
    %1026 = vmatprep.subr.bf16.mxu0 0
    %1027 = vmatpush1.bf16.xpose.msra.mxu0 0
    %1028 = vmatprep.subr.bf16.mxu0 0
    %1029 = vmatpush1.bf16.xpose.msra.mxu0 0
    %1030 = vmatprep.subr.bf16.mxu0 0
    %1031 = vmatpush1.bf16.xpose.msra.mxu0 0
    %1032 = vmatprep.subr.bf16.mxu0 0
    %1033 = vmatpush1.bf16.xpose.msra.mxu0 0
    %1034 = vmatprep.subr.bf16.mxu0 0
    %1035 = vmatpush1.bf16.xpose.msra.mxu0 0
    %1036 = vmatprep.subr.bf16.mxu0 0
    %1037 = vmatpush1.bf16.xpose.msra.mxu0 0
    %1038 = vmatprep.subr.bf16.mxu0 0
    %1039 = vmatpush1.bf16.xpose.msra.mxu0 0
    %1040 = vmatprep.subr.bf16.mxu0 0
    %1041 = vmatpush1.bf16.xpose.msra.mxu0 0
    %1042 = vmatprep.mubr.bf16.mxu0 0
    %1043 = vmatmul.mubr.bf16.gmra.mrb[0].mxu0 %v1005
    %v1044 = vpop.f32.mrb[0].mxu0
    %v1045 = vadd.f32 0.0, %v1044
    %v1046 = vpop.f32.mrb[0].mxu0
    %v1047 = vpop.f32.mrb[0].mxu0
    %v1048 = vpop.f32.mrb[0].mxu0
    %1049 = vdwg.mxu0
    %v1050 = vmul.f32 %v1045, 0.25
    %v1051 = vadd.f32 %v1050, %v938
    %v1052 = vsel %vm467, %v1051, -inf
    %1053 = vmax.xlane.f32.xlu0 %v1052
    %v1054 = vpop.xlane.xlu0 %1053
    %v1055 = vsub.f32 %v1051, %v1054
    %v1056 = vmul.f32 %v1055, 1.442695
    %v1057 = vpow.pop %v1056
    %v1058 = vsel %vm467, %v1057, 0.0
    %1059 = vadd.xlane.f32.xlu0 %v1058
    %v1060 = vpop.xlane.xlu0 %1059
    %v1061 = vrcp.pop %v1060
    %v1062 = vmul.f32 %v1057, %v1061
    %v1063 = vpack.c.bf16 %v1062, %v1062
    %1065 = vrot.lane.b32.xlu0 %v952, 112
    %v1066 = vpop.permute.xlu0 %1065
    %v1068 = vsel %vm467, %v1063, 0
    %v1071 = vsel %vm484, %v1066, 0
    %1073 = vmatprep.subr.bf16.mxu0 0
    %1074 = vmatpush1.bf16.msra.mxu0 %v1071
    %1075 = vmatprep.subr.bf16.mxu0 0
    %1076 = vmatpush1.bf16.msra.mxu0 0
    %1077 = vmatprep.subr.bf16.mxu0 0
    %1078 = vmatpush1.bf16.msra.mxu0 0
    %1079 = vmatprep.subr.bf16.mxu0 0
    %1080 = vmatpush1.bf16.msra.mxu0 0
    %1081 = vmatprep.subr.bf16.mxu0 0
    %1082 = vmatpush1.bf16.msra.mxu0 0
    %1083 = vmatprep.subr.bf16.mxu0 0
    %1084 = vmatpush1.bf16.msra.mxu0 0
    %1085 = vmatprep.subr.bf16.mxu0 0
    %1086 = vmatpush1.bf16.msra.mxu0 0
    %1087 = vmatprep.subr.bf16.mxu0 0
    %1088 = vmatpush1.bf16.msra.mxu0 0
    %1089 = vmatprep.subr.bf16.mxu0 0
    %1090 = vmatpush1.bf16.msra.mxu0 0
    %1091 = vmatprep.subr.bf16.mxu0 0
    %1092 = vmatpush1.bf16.msra.mxu0 0
    %1093 = vmatprep.subr.bf16.mxu0 0
    %1094 = vmatpush1.bf16.msra.mxu0 0
    %1095 = vmatprep.subr.bf16.mxu0 0
    %1096 = vmatpush1.bf16.msra.mxu0 0
    %1097 = vmatprep.subr.bf16.mxu0 0
    %1098 = vmatpush1.bf16.msra.mxu0 0
    %1099 = vmatprep.subr.bf16.mxu0 0
    %1100 = vmatpush1.bf16.msra.mxu0 0
    %1101 = vmatprep.subr.bf16.mxu0 0
    %1102 = vmatpush1.bf16.msra.mxu0 0
    %1103 = vmatprep.subr.bf16.mxu0 0
    %1104 = vmatpush1.bf16.msra.mxu0 0
    %1105 = vmatprep.mubr.bf16.mxu0 0
    %1106 = vmatmul.mubr.bf16.gmra.mrb[0].mxu0 %v1068
    %v1107 = vpop.f32.mrb[0].mxu0
    %v1108 = vadd.f32 0.0, %v1107
    %v1109 = vpop.f32.mrb[0].mxu0
    %v1110 = vpop.f32.mrb[0].mxu0
    %v1111 = vpop.f32.mrb[0].mxu0
    %1112 = vdwg.mxu0
    %1114 = vrot.lane.b32.xlu0 %v1108, 16
    %v1115 = vpop.permute.xlu0 %1114
    %1117 = vst.msk [vmem:[#allocation2 + $0x8] sm:$0xff] %vm646, %v1115
    %1118 = vrot.lane.b32.xlu0 %v884, 96
    %v1119 = vpop.permute.xlu0 %1118
    %1120 = vrot.lane.b32.xlu0 %v884, 32
    %v1121 = vpop.permute.xlu0 %1120
    %v1123 = vsel %vm414, %v1119, 0
    %v1126 = vsel %vm414, %v1121, 0
    %1128 = vmatprep.subr.bf16.mxu0 0
    %1129 = vmatpush1.bf16.xpose.msra.mxu0 %v1126
    %1130 = vmatprep.subr.bf16.mxu0 0
    %1131 = vmatpush1.bf16.xpose.msra.mxu0 0
    %1132 = vmatprep.subr.bf16.mxu0 0
    %1133 = vmatpush1.bf16.xpose.msra.mxu0 0
    %1134 = vmatprep.subr.bf16.mxu0 0
    %1135 = vmatpush1.bf16.xpose.msra.mxu0 0
    %1136 = vmatprep.subr.bf16.mxu0 0
    %1137 = vmatpush1.bf16.xpose.msra.mxu0 0
    %1138 = vmatprep.subr.bf16.mxu0 0
    %1139 = vmatpush1.bf16.xpose.msra.mxu0 0
    %1140 = vmatprep.subr.bf16.mxu0 0
    %1141 = vmatpush1.bf16.xpose.msra.mxu0 0
    %1142 = vmatprep.subr.bf16.mxu0 0
    %1143 = vmatpush1.bf16.xpose.msra.mxu0 0
    %1144 = vmatprep.subr.bf16.mxu0 0
    %1145 = vmatpush1.bf16.xpose.msra.mxu0 0
    %1146 = vmatprep.subr.bf16.mxu0 0
    %1147 = vmatpush1.bf16.xpose.msra.mxu0 0
    %1148 = vmatprep.subr.bf16.mxu0 0
    %1149 = vmatpush1.bf16.xpose.msra.mxu0 0
    %1150 = vmatprep.subr.bf16.mxu0 0
    %1151 = vmatpush1.bf16.xpose.msra.mxu0 0
    %1152 = vmatprep.subr.bf16.mxu0 0
    %1153 = vmatpush1.bf16.xpose.msra.mxu0 0
    %1154 = vmatprep.subr.bf16.mxu0 0
    %1155 = vmatpush1.bf16.xpose.msra.mxu0 0
    %1156 = vmatprep.subr.bf16.mxu0 0
    %1157 = vmatpush1.bf16.xpose.msra.mxu0 0
    %1158 = vmatprep.subr.bf16.mxu0 0
    %1159 = vmatpush1.bf16.xpose.msra.mxu0 0
    %1160 = vmatprep.mubr.bf16.mxu0 0
    %1161 = vmatmul.mubr.bf16.gmra.mrb[0].mxu0 %v1123
    %v1162 = vpop.f32.mrb[0].mxu0
    %v1163 = vadd.f32 0.0, %v1162
    %v1164 = vpop.f32.mrb[0].mxu0
    %v1165 = vpop.f32.mrb[0].mxu0
    %v1166 = vpop.f32.mrb[0].mxu0
    %1167 = vdwg.mxu0
    %v1168 = vmul.f32 %v1163, 0.25
    %v1169 = vadd.f32 %v1168, %v938
    %v1170 = vsel %vm467, %v1169, -inf
    %1171 = vmax.xlane.f32.xlu0 %v1170
    %v1172 = vpop.xlane.xlu0 %1171
    %v1173 = vsub.f32 %v1169, %v1172
    %v1174 = vmul.f32 %v1173, 1.442695
    %v1175 = vpow.pop %v1174
    %v1176 = vsel %vm467, %v1175, 0.0
    %1177 = vadd.xlane.f32.xlu0 %v1176
    %v1178 = vpop.xlane.xlu0 %1177
    %v1179 = vrcp.pop %v1178
    %v1180 = vmul.f32 %v1175, %v1179
    %v1181 = vpack.c.bf16 %v1180, %v1180
    %1182 = vrot.lane.b32.xlu0 %v952, 96
    %v1183 = vpop.permute.xlu0 %1182
    %v1185 = vsel %vm467, %v1181, 0
    %v1188 = vsel %vm484, %v1183, 0
    %1190 = vmatprep.subr.bf16.mxu0 0
    %1191 = vmatpush1.bf16.msra.mxu0 %v1188
    %1192 = vmatprep.subr.bf16.mxu0 0
    %1193 = vmatpush1.bf16.msra.mxu0 0
    %1194 = vmatprep.subr.bf16.mxu0 0
    %1195 = vmatpush1.bf16.msra.mxu0 0
    %1196 = vmatprep.subr.bf16.mxu0 0
    %1197 = vmatpush1.bf16.msra.mxu0 0
    %1198 = vmatprep.subr.bf16.mxu0 0
    %1199 = vmatpush1.bf16.msra.mxu0 0
    %1200 = vmatprep.subr.bf16.mxu0 0
    %1201 = vmatpush1.bf16.msra.mxu0 0
    %1202 = vmatprep.subr.bf16.mxu0 0
    %1203 = vmatpush1.bf16.msra.mxu0 0
    %1204 = vmatprep.subr.bf16.mxu0 0
    %1205 = vmatpush1.bf16.msra.mxu0 0
    %1206 = vmatprep.subr.bf16.mxu0 0
    %1207 = vmatpush1.bf16.msra.mxu0 0
    %1208 = vmatprep.subr.bf16.mxu0 0
    %1209 = vmatpush1.bf16.msra.mxu0 0
    %1210 = vmatprep.subr.bf16.mxu0 0
    %1211 = vmatpush1.bf16.msra.mxu0 0
    %1212 = vmatprep.subr.bf16.mxu0 0
    %1213 = vmatpush1.bf16.msra.mxu0 0
    %1214 = vmatprep.subr.bf16.mxu0 0
    %1215 = vmatpush1.bf16.msra.mxu0 0
    %1216 = vmatprep.subr.bf16.mxu0 0
    %1217 = vmatpush1.bf16.msra.mxu0 0
    %1218 = vmatprep.subr.bf16.mxu0 0
    %1219 = vmatpush1.bf16.msra.mxu0 0
    %1220 = vmatprep.subr.bf16.mxu0 0
    %1221 = vmatpush1.bf16.msra.mxu0 0
    %1222 = vmatprep.mubr.bf16.mxu0 0
    %1223 = vmatmul.mubr.bf16.gmra.mrb[0].mxu0 %v1185
    %v1224 = vpop.f32.mrb[0].mxu0
    %v1225 = vadd.f32 0.0, %v1224
    %v1226 = vpop.f32.mrb[0].mxu0
    %v1227 = vpop.f32.mrb[0].mxu0
    %v1228 = vpop.f32.mrb[0].mxu0
    %1229 = vdwg.mxu0
    %1231 = vrot.lane.b32.xlu0 %v1225, 32
    %v1232 = vpop.permute.xlu0 %1231
    %1234 = vst.msk [vmem:[#allocation2 + $0x8] sm:$0xff] %vm764, %v1232
    %1235 = vrot.lane.b32.xlu0 %v884, 80
    %v1236 = vpop.permute.xlu0 %1235
    %1237 = vrot.lane.b32.xlu0 %v884, 16
    %v1238 = vpop.permute.xlu0 %1237
    %v1240 = vsel %vm414, %v1236, 0
    %v1243 = vsel %vm414, %v1238, 0
    %1245 = vmatprep.subr.bf16.mxu0 0
    %1246 = vmatpush1.bf16.xpose.msra.mxu0 %v1243
    %1247 = vmatprep.subr.bf16.mxu0 0
    %1248 = vmatpush1.bf16.xpose.msra.mxu0 0
    %1249 = vmatprep.subr.bf16.mxu0 0
    %1250 = vmatpush1.bf16.xpose.msra.mxu0 0
    %1251 = vmatprep.subr.bf16.mxu0 0
    %1252 = vmatpush1.bf16.xpose.msra.mxu0 0
    %1253 = vmatprep.subr.bf16.mxu0 0
    %1254 = vmatpush1.bf16.xpose.msra.mxu0 0
    %1255 = vmatprep.subr.bf16.mxu0 0
    %1256 = vmatpush1.bf16.xpose.msra.mxu0 0
    %1257 = vmatprep.subr.bf16.mxu0 0
    %1258 = vmatpush1.bf16.xpose.msra.mxu0 0
    %1259 = vmatprep.subr.bf16.mxu0 0
    %1260 = vmatpush1.bf16.xpose.msra.mxu0 0
    %1261 = vmatprep.subr.bf16.mxu0 0
    %1262 = vmatpush1.bf16.xpose.msra.mxu0 0
    %1263 = vmatprep.subr.bf16.mxu0 0
    %1264 = vmatpush1.bf16.xpose.msra.mxu0 0
    %1265 = vmatprep.subr.bf16.mxu0 0
    %1266 = vmatpush1.bf16.xpose.msra.mxu0 0
    %1267 = vmatprep.subr.bf16.mxu0 0
    %1268 = vmatpush1.bf16.xpose.msra.mxu0 0
    %1269 = vmatprep.subr.bf16.mxu0 0
    %1270 = vmatpush1.bf16.xpose.msra.mxu0 0
    %1271 = vmatprep.subr.bf16.mxu0 0
    %1272 = vmatpush1.bf16.xpose.msra.mxu0 0
    %1273 = vmatprep.subr.bf16.mxu0 0
    %1274 = vmatpush1.bf16.xpose.msra.mxu0 0
    %1275 = vmatprep.subr.bf16.mxu0 0
    %1276 = vmatpush1.bf16.xpose.msra.mxu0 0
    %1277 = vmatprep.mubr.bf16.mxu0 0
    %1278 = vmatmul.mubr.bf16.gmra.mrb[0].mxu0 %v1240
    %v1279 = vpop.f32.mrb[0].mxu0
    %v1280 = vadd.f32 0.0, %v1279
    %v1281 = vpop.f32.mrb[0].mxu0
    %v1282 = vpop.f32.mrb[0].mxu0
    %v1283 = vpop.f32.mrb[0].mxu0
    %1284 = vdwg.mxu0
    %v1285 = vmul.f32 %v1280, 0.25
    %v1286 = vadd.f32 %v1285, %v938
    %v1287 = vsel %vm467, %v1286, -inf
    %1288 = vmax.xlane.f32.xlu0 %v1287
    %v1289 = vpop.xlane.xlu0 %1288
    %v1290 = vsub.f32 %v1286, %v1289
    %v1291 = vmul.f32 %v1290, 1.442695
    %v1292 = vpow.pop %v1291
    %v1293 = vsel %vm467, %v1292, 0.0
    %1294 = vadd.xlane.f32.xlu0 %v1293
    %v1295 = vpop.xlane.xlu0 %1294
    %v1296 = vrcp.pop %v1295
    %v1297 = vmul.f32 %v1292, %v1296
    %v1298 = vpack.c.bf16 %v1297, %v1297
    %1299 = vrot.lane.b32.xlu0 %v952, 80
    %v1300 = vpop.permute.xlu0 %1299
    %v1302 = vsel %vm467, %v1298, 0
    %v1305 = vsel %vm484, %v1300, 0
    %1307 = vmatprep.subr.bf16.mxu0 0
    %1308 = vmatpush1.bf16.msra.mxu0 %v1305
    %1309 = vmatprep.subr.bf16.mxu0 0
    %1310 = vmatpush1.bf16.msra.mxu0 0
    %1311 = vmatprep.subr.bf16.mxu0 0
    %1312 = vmatpush1.bf16.msra.mxu0 0
    %1313 = vmatprep.subr.bf16.mxu0 0
    %1314 = vmatpush1.bf16.msra.mxu0 0
    %1315 = vmatprep.subr.bf16.mxu0 0
    %1316 = vmatpush1.bf16.msra.mxu0 0
    %1317 = vmatprep.subr.bf16.mxu0 0
    %1318 = vmatpush1.bf16.msra.mxu0 0
    %1319 = vmatprep.subr.bf16.mxu0 0
    %1320 = vmatpush1.bf16.msra.mxu0 0
    %1321 = vmatprep.subr.bf16.mxu0 0
    %1322 = vmatpush1.bf16.msra.mxu0 0
    %1323 = vmatprep.subr.bf16.mxu0 0
    %1324 = vmatpush1.bf16.msra.mxu0 0
    %1325 = vmatprep.subr.bf16.mxu0 0
    %1326 = vmatpush1.bf16.msra.mxu0 0
    %1327 = vmatprep.subr.bf16.mxu0 0
    %1328 = vmatpush1.bf16.msra.mxu0 0
    %1329 = vmatprep.subr.bf16.mxu0 0
    %1330 = vmatpush1.bf16.msra.mxu0 0
    %1331 = vmatprep.subr.bf16.mxu0 0
    %1332 = vmatpush1.bf16.msra.mxu0 0
    %1333 = vmatprep.subr.bf16.mxu0 0
    %1334 = vmatpush1.bf16.msra.mxu0 0
    %1335 = vmatprep.subr.bf16.mxu0 0
    %1336 = vmatpush1.bf16.msra.mxu0 0
    %1337 = vmatprep.subr.bf16.mxu0 0
    %1338 = vmatpush1.bf16.msra.mxu0 0
    %1339 = vmatprep.mubr.bf16.mxu0 0
    %1340 = vmatmul.mubr.bf16.gmra.mrb[0].mxu0 %v1302
    %v1341 = vpop.f32.mrb[0].mxu0
    %v1342 = vadd.f32 0.0, %v1341
    %v1343 = vpop.f32.mrb[0].mxu0
    %v1344 = vpop.f32.mrb[0].mxu0
    %v1345 = vpop.f32.mrb[0].mxu0
    %1346 = vdwg.mxu0
    %1348 = vrot.lane.b32.xlu0 %v1342, 48
    %v1349 = vpop.permute.xlu0 %1348
    %1351 = vst.msk [vmem:[#allocation2 + $0x8] sm:$0xff] %vm882, %v1349
    %v1352 = vld [vmem:[#allocation2] sm:$0xff]
    %v1353 = vld [vmem:[#allocation2 + $0x8] sm:$0xff]
    %v1354 = vld [vmem:[%s6] sm:$0xf]
    %v1355 = vld [vmem:[%s6 + $0x4] sm:$0xf]
    %v1356 = vld [vmem:[%s6 + $0x8] sm:$0xf]
    %v1357 = vld [vmem:[%s6 + $0xc] sm:$0xf]
    %v1358 = vld [vmem:[%s6 + $0x10] sm:$0xf]
    %v1359 = vld [vmem:[%s6 + $0x14] sm:$0xf]
    %v1360 = vld [vmem:[%s6 + $0x18] sm:$0xf]
    %v1361 = vld [vmem:[%s6 + $0x1c] sm:$0xf]
    %v1362 = vld [vmem:[#allocation12] sm:$0x1]
    %v1363 = vpack.c.bf16 %v1353, %v1352
    %v1365 = vlaneseq
    %v1366 = vshrl.u32 %v1365, 7
    %v1367 = vsub.s32 0, %v1366
    %v1368 = vrot.slane %v1362, %v1367
    %v1378 = vunpack.c.l.b16 %v1354
    %v1379 = vunpack.c.l.b16 %v1355
    %v1380 = vunpack.c.l.b16 %v1356
    %v1381 = vunpack.c.l.b16 %v1357
    %v1382 = vunpack.c.l.b16 %v1358
    %v1383 = vunpack.c.l.b16 %v1359
    %v1384 = vunpack.c.l.b16 %v1360
    %v1385 = vunpack.c.l.b16 %v1361
    %v1386 = vpack.c.b16 %v1379, %v1378
    %v1387 = vpack.c.b16 %v1381, %v1380
    %v1388 = vpack.c.b16 %v1383, %v1382
    %v1389 = vpack.c.b16 %v1385, %v1384
    %v1395 = vsel %vm253, %v1363, 0
    %1397 = vmatprep.subr.bf16.mxu0 0
    %1398 = vmatpush1.bf16.msra.mxu0 %v1386
    %1399 = vmatprep.subr.bf16.mxu0 0
    %1400 = vmatpush1.bf16.msra.mxu0 %v1387
    %1401 = vmatprep.subr.bf16.mxu0 0
    %1402 = vmatpush1.bf16.msra.mxu0 %v1388
    %1403 = vmatprep.subr.bf16.mxu0 0
    %1404 = vmatpush1.bf16.msra.mxu0 %v1389
    %1405 = vmatprep.subr.bf16.mxu0 0
    %1406 = vmatpush1.bf16.msra.mxu0 0
    %1407 = vmatprep.subr.bf16.mxu0 0
    %1408 = vmatpush1.bf16.msra.mxu0 0
    %1409 = vmatprep.subr.bf16.mxu0 0
    %1410 = vmatpush1.bf16.msra.mxu0 0
    %1411 = vmatprep.subr.bf16.mxu0 0
    %1412 = vmatpush1.bf16.msra.mxu0 0
    %1413 = vmatprep.subr.bf16.mxu0 0
    %1414 = vmatpush1.bf16.msra.mxu0 0
    %1415 = vmatprep.subr.bf16.mxu0 0
    %1416 = vmatpush1.bf16.msra.mxu0 0
    %1417 = vmatprep.subr.bf16.mxu0 0
    %1418 = vmatpush1.bf16.msra.mxu0 0
    %1419 = vmatprep.subr.bf16.mxu0 0
    %1420 = vmatpush1.bf16.msra.mxu0 0
    %1421 = vmatprep.subr.bf16.mxu0 0
    %1422 = vmatpush1.bf16.msra.mxu0 0
    %1423 = vmatprep.subr.bf16.mxu0 0
    %1424 = vmatpush1.bf16.msra.mxu0 0
    %1425 = vmatprep.subr.bf16.mxu0 0
    %1426 = vmatpush1.bf16.msra.mxu0 0
    %1427 = vmatprep.subr.bf16.mxu0 0
    %1428 = vmatpush1.bf16.msra.mxu0 0
    %1429 = vmatprep.mubr.bf16.mxu0 0
    %1430 = vmatmul.mubr.bf16.gmra.mrb[0].mxu0 %v1395
    %v1431 = vpop.f32.mrb[0].mxu0
    %v1432 = vadd.f32 %v1368, %v1431
    %v1433 = vpop.f32.mrb[0].mxu0
    %v1434 = vpop.f32.mrb[0].mxu0
    %v1435 = vadd.f32 %v1368, %v1434
    %v1436 = vpop.f32.mrb[0].mxu0
    %1437 = vdwg.mxu0
    %v1438 = vadd.f32 %v1432, %v295
    %v1439 = vadd.f32 %v1435, %v296
    %v1440 = vld [vmem:[#allocation14] sm:$0x1]
    %v1441 = vld [vmem:[#allocation15] sm:$0x1]
    %v1442 = vsel %vm253, %v1438, 0.0
    %1443 = vadd.xlane.f32.xlu0 %v1442
    %v1444 = vpop.xlane.xlu0 %1443
    %v1445 = vsel %vm253, %v1439, 0.0
    %1446 = vadd.xlane.f32.xlu0 %v1445
    %v1447 = vpop.xlane.xlu0 %1446
    %v1448 = vmul.f32 %v1444, %v260
    %v1449 = vmul.f32 %v1447, %v260
    %v1450 = vsub.f32 %v1438, %v1448
    %v1451 = vsub.f32 %v1439, %v1449
    %v1452 = vmul.f32 %v1450, %v1450
    %v1453 = vmul.f32 %v1451, %v1451
    %v1454 = vsel %vm253, %v1452, 0.0
    %1455 = vadd.xlane.f32.xlu0 %v1454
    %v1456 = vpop.xlane.xlu0 %1455
    %v1457 = vsel %vm253, %v1453, 0.0
    %1458 = vadd.xlane.f32.xlu0 %v1457
    %v1459 = vpop.xlane.xlu0 %1458
    %v1460 = vmul.f32 %v1456, %v260
    %v1461 = vmul.f32 %v1459, %v260
    %v1462 = vadd.f32 %v1460, 1e-12
    %v1463 = vadd.f32 %v1461, 1e-12
    %v1464 = vrsqrt.pop %v1462
    %v1465 = vrsqrt.pop %v1463
    %v1466 = vmul.f32 %v1450, %v1464
    %v1467 = vmul.f32 %v1451, %v1465
    %v1469 = vlaneseq
    %v1470 = vshrl.u32 %v1469, 7
    %v1471 = vsub.s32 0, %v1470
    %v1472 = vrot.slane %v1440, %v1471
    %v1474 = vmul.f32 %v1466, %v1472
    %v1475 = vmul.f32 %v1467, %v1472
    %v1477 = vlaneseq
    %v1478 = vshrl.u32 %v1477, 7
    %v1479 = vsub.s32 0, %v1478
    %v1480 = vrot.slane %v1441, %v1479
    %v1482 = vadd.f32 %v1474, %v1480
    %v1483 = vadd.f32 %v1475, %v1480
    %v1484 = vld [vmem:[#allocation17] sm:$0xf]
    %v1485 = vld [vmem:[#allocation17 + $0x4] sm:$0xf]
    %v1486 = vld [vmem:[#allocation17 + $0x8] sm:$0xf]
    %v1487 = vld [vmem:[#allocation17 + $0xc] sm:$0xf]
    %v1488 = vld [vmem:[#allocation17 + $0x10] sm:$0xf]
    %v1489 = vld [vmem:[#allocation17 + $0x14] sm:$0xf]
    %v1490 = vld [vmem:[#allocation17 + $0x18] sm:$0xf]
    %v1491 = vld [vmem:[#allocation17 + $0x1c] sm:$0xf]
    %v1492 = vld [vmem:[#allocation18] sm:$0x1]
    %v1493 = vpack.c.bf16 %v1483, %v1482
    %v1495 = vlaneseq
    %v1496 = vshrl.u32 %v1495, 7
    %v1497 = vsub.s32 0, %v1496
    %v1498 = vrot.slane %v1492, %v1497
    %v1508 = vunpack.c.l.b16 %v1484
    %v1509 = vunpack.c.l.b16 %v1485
    %v1510 = vunpack.c.l.b16 %v1486
    %v1511 = vunpack.c.l.b16 %v1487
    %v1512 = vunpack.c.l.b16 %v1488
    %v1513 = vunpack.c.l.b16 %v1489
    %v1514 = vunpack.c.l.b16 %v1490
    %v1515 = vunpack.c.l.b16 %v1491
    %v1516 = vpack.c.b16 %v1509, %v1508
    %v1517 = vpack.c.b16 %v1511, %v1510
    %v1518 = vpack.c.b16 %v1513, %v1512
    %v1519 = vpack.c.b16 %v1515, %v1514
    %v1525 = vsel %vm253, %v1493, 0
    %1527 = vmatprep.subr.bf16.mxu0 0
    %1528 = vmatpush1.bf16.msra.mxu0 %v1516
    %1529 = vmatprep.subr.bf16.mxu0 0
    %1530 = vmatpush1.bf16.msra.mxu0 %v1517
    %1531 = vmatprep.subr.bf16.mxu0 0
    %1532 = vmatpush1.bf16.msra.mxu0 %v1518
    %1533 = vmatprep.subr.bf16.mxu0 0
    %1534 = vmatpush1.bf16.msra.mxu0 %v1519
    %1535 = vmatprep.subr.bf16.mxu0 0
    %1536 = vmatpush1.bf16.msra.mxu0 0
    %1537 = vmatprep.subr.bf16.mxu0 0
    %1538 = vmatpush1.bf16.msra.mxu0 0
    %1539 = vmatprep.subr.bf16.mxu0 0
    %1540 = vmatpush1.bf16.msra.mxu0 0
    %1541 = vmatprep.subr.bf16.mxu0 0
    %1542 = vmatpush1.bf16.msra.mxu0 0
    %1543 = vmatprep.subr.bf16.mxu0 0
    %1544 = vmatpush1.bf16.msra.mxu0 0
    %1545 = vmatprep.subr.bf16.mxu0 0
    %1546 = vmatpush1.bf16.msra.mxu0 0
    %1547 = vmatprep.subr.bf16.mxu0 0
    %1548 = vmatpush1.bf16.msra.mxu0 0
    %1549 = vmatprep.subr.bf16.mxu0 0
    %1550 = vmatpush1.bf16.msra.mxu0 0
    %1551 = vmatprep.subr.bf16.mxu0 0
    %1552 = vmatpush1.bf16.msra.mxu0 0
    %1553 = vmatprep.subr.bf16.mxu0 0
    %1554 = vmatpush1.bf16.msra.mxu0 0
    %1555 = vmatprep.subr.bf16.mxu0 0
    %1556 = vmatpush1.bf16.msra.mxu0 0
    %1557 = vmatprep.subr.bf16.mxu0 0
    %1558 = vmatpush1.bf16.msra.mxu0 0
    %1559 = vmatprep.mubr.bf16.mxu0 0
    %1560 = vmatmul.mubr.bf16.gmra.mrb[0].mxu0 %v1525
    %v1561 = vpop.f32.mrb[0].mxu0
    %v1562 = vadd.f32 %v1498, %v1561
    %v1563 = vpop.f32.mrb[0].mxu0
    %v1564 = vpop.f32.mrb[0].mxu0
    %v1565 = vadd.f32 %v1498, %v1564
    %v1566 = vpop.f32.mrb[0].mxu0
    %1567 = vdwg.mxu0
    %v1568 = vmul.f32 %v1562, 0.5
    %v1569 = vmul.f32 %v1565, 0.5
    %v1570 = vmul.f32 %v1562, 0.044715
    %v1571 = vmul.f32 %v1565, 0.044715
    %v1572 = vmul.f32 %v1570, %v1562
    %v1573 = vmul.f32 %v1571, %v1565
    %v1574 = vmul.f32 %v1572, %v1562
    %v1575 = vmul.f32 %v1573, %v1565
    %v1576 = vadd.f32 %v1562, %v1574
    %v1577 = vadd.f32 %v1565, %v1575
    %v1578 = vmul.f32 %v1576, 0.7978846
    %v1579 = vmul.f32 %v1577, 0.7978846
    %v1580 = vtanh.pop %v1578
    %v1581 = vtanh.pop %v1579
    %v1582 = vadd.f32 %v1580, 1.0
    %v1583 = vadd.f32 %v1581, 1.0
    %v1584 = vmul.f32 %v1568, %v1582
    %v1585 = vmul.f32 %v1569, %v1583
    %v1586 = vld [vmem:[%s12] sm:$0xf]
    %v1587 = vld [vmem:[%s12 + $0x4] sm:$0xf]
    %v1588 = vld [vmem:[%s12 + $0x8] sm:$0xf]
    %v1589 = vld [vmem:[%s12 + $0xc] sm:$0xf]
    %v1590 = vld [vmem:[%s12 + $0x10] sm:$0xf]
    %v1591 = vld [vmem:[%s12 + $0x14] sm:$0xf]
    %v1592 = vld [vmem:[%s12 + $0x18] sm:$0xf]
    %v1593 = vld [vmem:[%s12 + $0x1c] sm:$0xf]
    %v1594 = vld [vmem:[%s12 + $0x20] sm:$0xf]
    %v1595 = vld [vmem:[%s12 + $0x24] sm:$0xf]
    %v1596 = vld [vmem:[%s12 + $0x28] sm:$0xf]
    %v1597 = vld [vmem:[%s12 + $0x2c] sm:$0xf]
    %v1598 = vld [vmem:[%s12 + $0x30] sm:$0xf]
    %v1599 = vld [vmem:[%s12 + $0x34] sm:$0xf]
    %v1600 = vld [vmem:[%s12 + $0x38] sm:$0xf]
    %v1601 = vld [vmem:[%s12 + $0x3c] sm:$0xf]
    %v1602 = vld [vmem:[#allocation20] sm:$0x1]
    %v1603 = vpack.c.bf16 %v1585, %v1584
    %v1605 = vlaneseq
    %v1606 = vshrl.u32 %v1605, 7
    %v1607 = vsub.s32 0, %v1606
    %v1608 = vrot.slane %v1602, %v1607
    %v1626 = vunpack.c.l.b16 %v1586
    %v1627 = vunpack.c.l.b16 %v1587
    %v1628 = vunpack.c.l.b16 %v1588
    %v1629 = vunpack.c.l.b16 %v1589
    %v1630 = vunpack.c.l.b16 %v1590
    %v1631 = vunpack.c.l.b16 %v1591
    %v1632 = vunpack.c.l.b16 %v1592
    %v1633 = vunpack.c.l.b16 %v1593
    %v1634 = vunpack.c.l.b16 %v1594
    %v1635 = vunpack.c.l.b16 %v1595
    %v1636 = vunpack.c.l.b16 %v1596
    %v1637 = vunpack.c.l.b16 %v1597
    %v1638 = vunpack.c.l.b16 %v1598
    %v1639 = vunpack.c.l.b16 %v1599
    %v1640 = vunpack.c.l.b16 %v1600
    %v1641 = vunpack.c.l.b16 %v1601
    %v1642 = vpack.c.b16 %v1627, %v1626
    %v1643 = vpack.c.b16 %v1629, %v1628
    %v1644 = vpack.c.b16 %v1631, %v1630
    %v1645 = vpack.c.b16 %v1633, %v1632
    %v1646 = vpack.c.b16 %v1635, %v1634
    %v1647 = vpack.c.b16 %v1637, %v1636
    %v1648 = vpack.c.b16 %v1639, %v1638
    %v1649 = vpack.c.b16 %v1641, %v1640
    %1658 = vmatprep.subr.bf16.mxu0 0
    %1659 = vmatpush1.bf16.msra.mxu0 %v1642
    %1660 = vmatprep.subr.bf16.mxu0 0
    %1661 = vmatpush1.bf16.msra.mxu0 %v1643
    %1662 = vmatprep.subr.bf16.mxu0 0
    %1663 = vmatpush1.bf16.msra.mxu0 %v1644
    %1664 = vmatprep.subr.bf16.mxu0 0
    %1665 = vmatpush1.bf16.msra.mxu0 %v1645
    %1666 = vmatprep.subr.bf16.mxu0 0
    %1667 = vmatpush1.bf16.msra.mxu0 %v1646
    %1668 = vmatprep.subr.bf16.mxu0 0
    %1669 = vmatpush1.bf16.msra.mxu0 %v1647
    %1670 = vmatprep.subr.bf16.mxu0 0
    %1671 = vmatpush1.bf16.msra.mxu0 %v1648
    %1672 = vmatprep.subr.bf16.mxu0 0
    %1673 = vmatpush1.bf16.msra.mxu0 %v1649
    %1674 = vmatprep.subr.bf16.mxu0 0
    %1675 = vmatpush1.bf16.msra.mxu0 0
    %1676 = vmatprep.subr.bf16.mxu0 0
    %1677 = vmatpush1.bf16.msra.mxu0 0
    %1678 = vmatprep.subr.bf16.mxu0 0
    %1679 = vmatpush1.bf16.msra.mxu0 0
    %1680 = vmatprep.subr.bf16.mxu0 0
    %1681 = vmatpush1.bf16.msra.mxu0 0
    %1682 = vmatprep.subr.bf16.mxu0 0
    %1683 = vmatpush1.bf16.msra.mxu0 0
    %1684 = vmatprep.subr.bf16.mxu0 0
    %1685 = vmatpush1.bf16.msra.mxu0 0
    %1686 = vmatprep.subr.bf16.mxu0 0
    %1687 = vmatpush1.bf16.msra.mxu0 0
    %1688 = vmatprep.subr.bf16.mxu0 0
    %1689 = vmatpush1.bf16.msra.mxu0 0
    %1690 = vmatprep.mubr.bf16.mxu0 0
    %1691 = vmatmul.mubr.bf16.gmra.mrb[0].mxu0 %v1603
    %v1692 = vpop.f32.mrb[0].mxu0
    %v1693 = vadd.f32 %v1608, %v1692
    %v1694 = vpop.f32.mrb[0].mxu0
    %v1695 = vpop.f32.mrb[0].mxu0
    %v1696 = vadd.f32 %v1608, %v1695
    %v1697 = vpop.f32.mrb[0].mxu0
    %1698 = vdwg.mxu0
    %v1699 = vadd.f32 %v1693, %v1482
    %v1700 = vadd.f32 %v1696, %v1483
    %v1701 = vld [vmem:[#allocation21] sm:$0x1]
    %v1702 = vld [vmem:[#allocation23] sm:$0x1]
    %v1703 = vsel %vm253, %v1699, 0.0
    %1704 = vadd.xlane.f32.xlu0 %v1703
    %v1705 = vpop.xlane.xlu0 %1704
    %v1706 = vsel %vm253, %v1700, 0.0
    %1707 = vadd.xlane.f32.xlu0 %v1706
    %v1708 = vpop.xlane.xlu0 %1707
    %v1709 = vmul.f32 %v1705, %v260
    %v1710 = vmul.f32 %v1708, %v260
    %v1711 = vsub.f32 %v1699, %v1709
    %v1712 = vsub.f32 %v1700, %v1710
    %v1713 = vmul.f32 %v1711, %v1711
    %v1714 = vmul.f32 %v1712, %v1712
    %v1715 = vsel %vm253, %v1713, 0.0
    %1716 = vadd.xlane.f32.xlu0 %v1715
    %v1717 = vpop.xlane.xlu0 %1716
    %v1718 = vsel %vm253, %v1714, 0.0
    %1719 = vadd.xlane.f32.xlu0 %v1718
    %v1720 = vpop.xlane.xlu0 %1719
    %v1721 = vmul.f32 %v1717, %v260
    %v1722 = vmul.f32 %v1720, %v260
    %v1723 = vadd.f32 %v1721, 1e-12
    %v1724 = vadd.f32 %v1722, 1e-12
    %v1725 = vrsqrt.pop %v1723
    %v1726 = vrsqrt.pop %v1724
    %v1727 = vmul.f32 %v1711, %v1725
    %v1728 = vmul.f32 %v1712, %v1726
    %v1730 = vlaneseq
    %v1731 = vshrl.u32 %v1730, 7
    %v1732 = vsub.s32 0, %v1731
    %v1733 = vrot.slane %v1701, %v1732
    %v1735 = vmul.f32 %v1727, %v1733
    %v1736 = vmul.f32 %v1728, %v1733
    %v1738 = vlaneseq
    %v1739 = vshrl.u32 %v1738, 7
    %v1740 = vsub.s32 0, %v1739
    %v1741 = vrot.slane %v1702, %v1740
    %v1743 = vadd.f32 %v1735, %v1741
    %v1744 = vadd.f32 %v1736, %v1741
    %s1745 = scalar_lea.vmem %s4, 64
    %v1746 = vld [vmem:[%s1745] sm:$0xff]
    %v1747 = vld [vmem:[%s1745 + $0x8] sm:$0xff]
    %v1748 = vld [vmem:[%s1745 + $0x10] sm:$0xff]
    %v1749 = vld [vmem:[%s1745 + $0x18] sm:$0xff]
    %v1750 = vld [vmem:[%s1745 + $0x20] sm:$0xff]
    %v1751 = vld [vmem:[%s1745 + $0x28] sm:$0xff]
    %v1752 = vld [vmem:[%s1745 + $0x30] sm:$0xff]
    %v1753 = vld [vmem:[%s1745 + $0x38] sm:$0xff]
    %s1754 = scalar_lea.vmem [#allocation11], 2
    %v1755 = vld [vmem:[%s1754] sm:$0x3]
    %v1756 = vpack.c.bf16 %v1744, %v1743
    %v1758 = vlaneseq
    %v1759 = vshrl.u32 %v1758, 7
    %v1760 = vsub.s32 0, %v1759
    %v1761 = vrot.slane %v1755, %v1760
    %v1762 = vlaneseq
    %v1763 = vshrl.u32 %v1762, 7
    %v1764 = vsub.s32 1, %v1763
    %v1765 = vrot.slane %v1755, %v1764
    %v1776 = vunpack.c.l.b16 %v1746
    %v1777 = vunpack.c.h.b16 %v1746
    %v1778 = vunpack.c.l.b16 %v1747
    %v1779 = vunpack.c.h.b16 %v1747
    %v1780 = vunpack.c.l.b16 %v1748
    %v1781 = vunpack.c.h.b16 %v1748
    %v1782 = vunpack.c.l.b16 %v1749
    %v1783 = vunpack.c.h.b16 %v1749
    %v1784 = vunpack.c.l.b16 %v1750
    %v1785 = vunpack.c.h.b16 %v1750
    %v1786 = vunpack.c.l.b16 %v1751
    %v1787 = vunpack.c.h.b16 %v1751
    %v1788 = vunpack.c.l.b16 %v1752
    %v1789 = vunpack.c.h.b16 %v1752
    %v1790 = vunpack.c.l.b16 %v1753
    %v1791 = vunpack.c.h.b16 %v1753
    %v1792 = vpack.c.b16 %v1778, %v1776
    %v1793 = vpack.c.b16 %v1779, %v1777
    %v1794 = vpack.c.b16 %v1782, %v1780
    %v1795 = vpack.c.b16 %v1783, %v1781
    %v1796 = vpack.c.b16 %v1786, %v1784
    %v1797 = vpack.c.b16 %v1787, %v1785
    %v1798 = vpack.c.b16 %v1790, %v1788
    %v1799 = vpack.c.b16 %v1791, %v1789
    %v1809 = vsel %vm253, %v1756, 0
    %1811 = vmatprep.subr.bf16.mxu0 %v1793
    %1812 = vmatpush1.bf16.msra.mxu0 %v1792
    %1813 = vmatprep.subr.bf16.mxu0 %v1795
    %1814 = vmatpush1.bf16.msra.mxu0 %v1794
    %1815 = vmatprep.subr.bf16.mxu0 %v1797
    %1816 = vmatpush1.bf16.msra.mxu0 %v1796
    %1817 = vmatprep.subr.bf16.mxu0 %v1799
    %1818 = vmatpush1.bf16.msra.mxu0 %v1798
    %1819 = vmatprep.subr.bf16.mxu0 0
    %1820 = vmatpush1.bf16.msra.mxu0 0
    %1821 = vmatprep.subr.bf16.mxu0 0
    %1822 = vmatpush1.bf16.msra.mxu0 0
    %1823 = vmatprep.subr.bf16.mxu0 0
    %1824 = vmatpush1.bf16.msra.mxu0 0
    %1825 = vmatprep.subr.bf16.mxu0 0
    %1826 = vmatpush1.bf16.msra.mxu0 0
    %1827 = vmatprep.subr.bf16.mxu0 0
    %1828 = vmatpush1.bf16.msra.mxu0 0
    %1829 = vmatprep.subr.bf16.mxu0 0
    %1830 = vmatpush1.bf16.msra.mxu0 0
    %1831 = vmatprep.subr.bf16.mxu0 0
    %1832 = vmatpush1.bf16.msra.mxu0 0
    %1833 = vmatprep.subr.bf16.mxu0 0
    %1834 = vmatpush1.bf16.msra.mxu0 0
    %1835 = vmatprep.subr.bf16.mxu0 0
    %1836 = vmatpush1.bf16.msra.mxu0 0
    %1837 = vmatprep.subr.bf16.mxu0 0
    %1838 = vmatpush1.bf16.msra.mxu0 0
    %1839 = vmatprep.subr.bf16.mxu0 0
    %1840 = vmatpush1.bf16.msra.mxu0 0
    %1841 = vmatprep.subr.bf16.mxu0 0
    %1842 = vmatpush1.bf16.msra.mxu0 0
    %1843 = vmatprep.mubr.bf16.mxu0 0
    %1844 = vmatmul.mubr.bf16.gmra.mrb[0].mxu0 %v1809
    %v1845 = vpop.f32.mrb[0].mxu0
    %v1846 = vadd.f32 %v1761, %v1845
    %v1847 = vpop.f32.mrb[0].mxu0
    %v1848 = vadd.f32 %v1765, %v1847
    %v1849 = vpop.f32.mrb[0].mxu0
    %v1850 = vadd.f32 %v1761, %v1849
    %v1851 = vpop.f32.mrb[0].mxu0
    %v1852 = vadd.f32 %v1765, %v1851
    %1853 = vdwg.mxu0
    %v1854 = vpack.c.bf16 %v1846, %v1846
    %1856 = vrot.lane.b32.xlu0 %v1854, 64
    %v1857 = vpop.permute.xlu0 %1856
    %v1859 = vsel %vm414, %v1854, 0
    %v1862 = vsel %vm414, %v1857, 0
    %1864 = vmatprep.subr.bf16.mxu0 0
    %1865 = vmatpush1.bf16.xpose.msra.mxu0 %v1862
    %1866 = vmatprep.subr.bf16.mxu0 0
    %1867 = vmatpush1.bf16.xpose.msra.mxu0 0
    %1868 = vmatprep.subr.bf16.mxu0 0
    %1869 = vmatpush1.bf16.xpose.msra.mxu0 0
    %1870 = vmatprep.subr.bf16.mxu0 0
    %1871 = vmatpush1.bf16.xpose.msra.mxu0 0
    %1872 = vmatprep.subr.bf16.mxu0 0
    %1873 = vmatpush1.bf16.xpose.msra.mxu0 0
    %1874 = vmatprep.subr.bf16.mxu0 0
    %1875 = vmatpush1.bf16.xpose.msra.mxu0 0
    %1876 = vmatprep.subr.bf16.mxu0 0
    %1877 = vmatpush1.bf16.xpose.msra.mxu0 0
    %1878 = vmatprep.subr.bf16.mxu0 0
    %1879 = vmatpush1.bf16.xpose.msra.mxu0 0
    %1880 = vmatprep.subr.bf16.mxu0 0
    %1881 = vmatpush1.bf16.xpose.msra.mxu0 0
    %1882 = vmatprep.subr.bf16.mxu0 0
    %1883 = vmatpush1.bf16.xpose.msra.mxu0 0
    %1884 = vmatprep.subr.bf16.mxu0 0
    %1885 = vmatpush1.bf16.xpose.msra.mxu0 0
    %1886 = vmatprep.subr.bf16.mxu0 0
    %1887 = vmatpush1.bf16.xpose.msra.mxu0 0
    %1888 = vmatprep.subr.bf16.mxu0 0
    %1889 = vmatpush1.bf16.xpose.msra.mxu0 0
    %1890 = vmatprep.subr.bf16.mxu0 0
    %1891 = vmatpush1.bf16.xpose.msra.mxu0 0
    %1892 = vmatprep.subr.bf16.mxu0 0
    %1893 = vmatpush1.bf16.xpose.msra.mxu0 0
    %1894 = vmatprep.subr.bf16.mxu0 0
    %1895 = vmatpush1.bf16.xpose.msra.mxu0 0
    %1896 = vmatprep.mubr.bf16.mxu0 0
    %1897 = vmatmul.mubr.bf16.gmra.mrb[0].mxu0 %v1859
    %v1898 = vpop.f32.mrb[0].mxu0
    %v1899 = vadd.f32 0.0, %v1898
    %v1900 = vpop.f32.mrb[0].mxu0
    %v1901 = vpop.f32.mrb[0].mxu0
    %v1902 = vpop.f32.mrb[0].mxu0
    %1903 = vdwg.mxu0
    %v1904 = vmul.f32 %v1899, 0.25
    %v1905 = vadd.f32 %v1904, %v465
    %v1906 = vsel %vm467, %v1905, -inf
    %1907 = vmax.xlane.f32.xlu0 %v1906
    %v1908 = vpop.xlane.xlu0 %1907
    %v1909 = vsub.f32 %v1905, %v1908
    %v1910 = vmul.f32 %v1909, 1.442695
    %v1911 = vpow.pop %v1910
    %v1912 = vsel %vm467, %v1911, 0.0
    %1913 = vadd.xlane.f32.xlu0 %v1912
    %v1914 = vpop.xlane.xlu0 %1913
    %v1915 = vrcp.pop %v1914
    %v1916 = vmul.f32 %v1911, %v1915
    %v1917 = vpack.c.bf16 %v1916, %v1916
    %v1918 = vpack.c.bf16 %v1848, %v1848
    %v1920 = vsel %vm467, %v1917, 0
    %v1923 = vsel %vm484, %v1918, 0
    %1925 = vmatprep.subr.bf16.mxu0 0
    %1926 = vmatpush1.bf16.msra.mxu0 %v1923
    %1927 = vmatprep.subr.bf16.mxu0 0
    %1928 = vmatpush1.bf16.msra.mxu0 0
    %1929 = vmatprep.subr.bf16.mxu0 0
    %1930 = vmatpush1.bf16.msra.mxu0 0
    %1931 = vmatprep.subr.bf16.mxu0 0
    %1932 = vmatpush1.bf16.msra.mxu0 0
    %1933 = vmatprep.subr.bf16.mxu0 0
    %1934 = vmatpush1.bf16.msra.mxu0 0
    %1935 = vmatprep.subr.bf16.mxu0 0
    %1936 = vmatpush1.bf16.msra.mxu0 0
    %1937 = vmatprep.subr.bf16.mxu0 0
    %1938 = vmatpush1.bf16.msra.mxu0 0
    %1939 = vmatprep.subr.bf16.mxu0 0
    %1940 = vmatpush1.bf16.msra.mxu0 0
    %1941 = vmatprep.subr.bf16.mxu0 0
    %1942 = vmatpush1.bf16.msra.mxu0 0
    %1943 = vmatprep.subr.bf16.mxu0 0
    %1944 = vmatpush1.bf16.msra.mxu0 0
    %1945 = vmatprep.subr.bf16.mxu0 0
    %1946 = vmatpush1.bf16.msra.mxu0 0
    %1947 = vmatprep.subr.bf16.mxu0 0
    %1948 = vmatpush1.bf16.msra.mxu0 0
    %1949 = vmatprep.subr.bf16.mxu0 0
    %1950 = vmatpush1.bf16.msra.mxu0 0
    %1951 = vmatprep.subr.bf16.mxu0 0
    %1952 = vmatpush1.bf16.msra.mxu0 0
    %1953 = vmatprep.subr.bf16.mxu0 0
    %1954 = vmatpush1.bf16.msra.mxu0 0
    %1955 = vmatprep.subr.bf16.mxu0 0
    %1956 = vmatpush1.bf16.msra.mxu0 0
    %1957 = vmatprep.mubr.bf16.mxu0 0
    %1958 = vmatmul.mubr.bf16.gmra.mrb[0].mxu0 %v1920
    %v1959 = vpop.f32.mrb[0].mxu0
    %v1960 = vadd.f32 0.0, %v1959
    %v1961 = vpop.f32.mrb[0].mxu0
    %v1962 = vpop.f32.mrb[0].mxu0
    %v1963 = vpop.f32.mrb[0].mxu0
    %1964 = vdwg.mxu0
    %1965 = vst.msk [vmem:[#allocation2] sm:$0xff] %vm414, %v1960
    %1966 = vrot.lane.b32.xlu0 %v1854, 112
    %v1967 = vpop.permute.xlu0 %1966
    %1968 = vrot.lane.b32.xlu0 %v1854, 48
    %v1969 = vpop.permute.xlu0 %1968
    %v1971 = vsel %vm414, %v1967, 0
    %v1974 = vsel %vm414, %v1969, 0
    %1976 = vmatprep.subr.bf16.mxu0 0
    %1977 = vmatpush1.bf16.xpose.msra.mxu0 %v1974
    %1978 = vmatprep.subr.bf16.mxu0 0
    %1979 = vmatpush1.bf16.xpose.msra.mxu0 0
    %1980 = vmatprep.subr.bf16.mxu0 0
    %1981 = vmatpush1.bf16.xpose.msra.mxu0 0
    %1982 = vmatprep.subr.bf16.mxu0 0
    %1983 = vmatpush1.bf16.xpose.msra.mxu0 0
    %1984 = vmatprep.subr.bf16.mxu0 0
    %1985 = vmatpush1.bf16.xpose.msra.mxu0 0
    %1986 = vmatprep.subr.bf16.mxu0 0
    %1987 = vmatpush1.bf16.xpose.msra.mxu0 0
    %1988 = vmatprep.subr.bf16.mxu0 0
    %1989 = vmatpush1.bf16.xpose.msra.mxu0 0
    %1990 = vmatprep.subr.bf16.mxu0 0
    %1991 = vmatpush1.bf16.xpose.msra.mxu0 0
    %1992 = vmatprep.subr.bf16.mxu0 0
    %1993 = vmatpush1.bf16.xpose.msra.mxu0 0
    %1994 = vmatprep.subr.bf16.mxu0 0
    %1995 = vmatpush1.bf16.xpose.msra.mxu0 0
    %1996 = vmatprep.subr.bf16.mxu0 0
    %1997 = vmatpush1.bf16.xpose.msra.mxu0 0
    %1998 = vmatprep.subr.bf16.mxu0 0
    %1999 = vmatpush1.bf16.xpose.msra.mxu0 0
    %2000 = vmatprep.subr.bf16.mxu0 0
    %2001 = vmatpush1.bf16.xpose.msra.mxu0 0
    %2002 = vmatprep.subr.bf16.mxu0 0
    %2003 = vmatpush1.bf16.xpose.msra.mxu0 0
    %2004 = vmatprep.subr.bf16.mxu0 0
    %2005 = vmatpush1.bf16.xpose.msra.mxu0 0
    %2006 = vmatprep.subr.bf16.mxu0 0
    %2007 = vmatpush1.bf16.xpose.msra.mxu0 0
    %2008 = vmatprep.mubr.bf16.mxu0 0
    %2009 = vmatmul.mubr.bf16.gmra.mrb[0].mxu0 %v1971
    %v2010 = vpop.f32.mrb[0].mxu0
    %v2011 = vadd.f32 0.0, %v2010
    %v2012 = vpop.f32.mrb[0].mxu0
    %v2013 = vpop.f32.mrb[0].mxu0
    %v2014 = vpop.f32.mrb[0].mxu0
    %2015 = vdwg.mxu0
    %v2016 = vmul.f32 %v2011, 0.25
    %v2017 = vadd.f32 %v2016, %v465
    %v2018 = vsel %vm467, %v2017, -inf
    %2019 = vmax.xlane.f32.xlu0 %v2018
    %v2020 = vpop.xlane.xlu0 %2019
    %v2021 = vsub.f32 %v2017, %v2020
    %v2022 = vmul.f32 %v2021, 1.442695
    %v2023 = vpow.pop %v2022
    %v2024 = vsel %vm467, %v2023, 0.0
    %2025 = vadd.xlane.f32.xlu0 %v2024
    %v2026 = vpop.xlane.xlu0 %2025
    %v2027 = vrcp.pop %v2026
    %v2028 = vmul.f32 %v2023, %v2027
    %v2029 = vpack.c.bf16 %v2028, %v2028
    %2031 = vrot.lane.b32.xlu0 %v1918, 112
    %v2032 = vpop.permute.xlu0 %2031
    %v2034 = vsel %vm467, %v2029, 0
    %v2037 = vsel %vm484, %v2032, 0
    %2039 = vmatprep.subr.bf16.mxu0 0
    %2040 = vmatpush1.bf16.msra.mxu0 %v2037
    %2041 = vmatprep.subr.bf16.mxu0 0
    %2042 = vmatpush1.bf16.msra.mxu0 0
    %2043 = vmatprep.subr.bf16.mxu0 0
    %2044 = vmatpush1.bf16.msra.mxu0 0
    %2045 = vmatprep.subr.bf16.mxu0 0
    %2046 = vmatpush1.bf16.msra.mxu0 0
    %2047 = vmatprep.subr.bf16.mxu0 0
    %2048 = vmatpush1.bf16.msra.mxu0 0
    %2049 = vmatprep.subr.bf16.mxu0 0
    %2050 = vmatpush1.bf16.msra.mxu0 0
    %2051 = vmatprep.subr.bf16.mxu0 0
    %2052 = vmatpush1.bf16.msra.mxu0 0
    %2053 = vmatprep.subr.bf16.mxu0 0
    %2054 = vmatpush1.bf16.msra.mxu0 0
    %2055 = vmatprep.subr.bf16.mxu0 0
    %2056 = vmatpush1.bf16.msra.mxu0 0
    %2057 = vmatprep.subr.bf16.mxu0 0
    %2058 = vmatpush1.bf16.msra.mxu0 0
    %2059 = vmatprep.subr.bf16.mxu0 0
    %2060 = vmatpush1.bf16.msra.mxu0 0
    %2061 = vmatprep.subr.bf16.mxu0 0
    %2062 = vmatpush1.bf16.msra.mxu0 0
    %2063 = vmatprep.subr.bf16.mxu0 0
    %2064 = vmatpush1.bf16.msra.mxu0 0
    %2065 = vmatprep.subr.bf16.mxu0 0
    %2066 = vmatpush1.bf16.msra.mxu0 0
    %2067 = vmatprep.subr.bf16.mxu0 0
    %2068 = vmatpush1.bf16.msra.mxu0 0
    %2069 = vmatprep.subr.bf16.mxu0 0
    %2070 = vmatpush1.bf16.msra.mxu0 0
    %2071 = vmatprep.mubr.bf16.mxu0 0
    %2072 = vmatmul.mubr.bf16.gmra.mrb[0].mxu0 %v2034
    %v2073 = vpop.f32.mrb[0].mxu0
    %v2074 = vadd.f32 0.0, %v2073
    %v2075 = vpop.f32.mrb[0].mxu0
    %v2076 = vpop.f32.mrb[0].mxu0
    %v2077 = vpop.f32.mrb[0].mxu0
    %2078 = vdwg.mxu0
    %2080 = vrot.lane.b32.xlu0 %v2074, 16
    %v2081 = vpop.permute.xlu0 %2080
    %2083 = vst.msk [vmem:[#allocation2] sm:$0xff] %vm646, %v2081
    %2084 = vrot.lane.b32.xlu0 %v1854, 96
    %v2085 = vpop.permute.xlu0 %2084
    %2086 = vrot.lane.b32.xlu0 %v1854, 32
    %v2087 = vpop.permute.xlu0 %2086
    %v2089 = vsel %vm414, %v2085, 0
    %v2092 = vsel %vm414, %v2087, 0
    %2094 = vmatprep.subr.bf16.mxu0 0
    %2095 = vmatpush1.bf16.xpose.msra.mxu0 %v2092
    %2096 = vmatprep.subr.bf16.mxu0 0
    %2097 = vmatpush1.bf16.xpose.msra.mxu0 0
    %2098 = vmatprep.subr.bf16.mxu0 0
    %2099 = vmatpush1.bf16.xpose.msra.mxu0 0
    %2100 = vmatprep.subr.bf16.mxu0 0
    %2101 = vmatpush1.bf16.xpose.msra.mxu0 0
    %2102 = vmatprep.subr.bf16.mxu0 0
    %2103 = vmatpush1.bf16.xpose.msra.mxu0 0
    %2104 = vmatprep.subr.bf16.mxu0 0
    %2105 = vmatpush1.bf16.xpose.msra.mxu0 0
    %2106 = vmatprep.subr.bf16.mxu0 0
    %2107 = vmatpush1.bf16.xpose.msra.mxu0 0
    %2108 = vmatprep.subr.bf16.mxu0 0
    %2109 = vmatpush1.bf16.xpose.msra.mxu0 0
    %2110 = vmatprep.subr.bf16.mxu0 0
    %2111 = vmatpush1.bf16.xpose.msra.mxu0 0
    %2112 = vmatprep.subr.bf16.mxu0 0
    %2113 = vmatpush1.bf16.xpose.msra.mxu0 0
    %2114 = vmatprep.subr.bf16.mxu0 0
    %2115 = vmatpush1.bf16.xpose.msra.mxu0 0
    %2116 = vmatprep.subr.bf16.mxu0 0
    %2117 = vmatpush1.bf16.xpose.msra.mxu0 0
    %2118 = vmatprep.subr.bf16.mxu0 0
    %2119 = vmatpush1.bf16.xpose.msra.mxu0 0
    %2120 = vmatprep.subr.bf16.mxu0 0
    %2121 = vmatpush1.bf16.xpose.msra.mxu0 0
    %2122 = vmatprep.subr.bf16.mxu0 0
    %2123 = vmatpush1.bf16.xpose.msra.mxu0 0
    %2124 = vmatprep.subr.bf16.mxu0 0
    %2125 = vmatpush1.bf16.xpose.msra.mxu0 0
    %2126 = vmatprep.mubr.bf16.mxu0 0
    %2127 = vmatmul.mubr.bf16.gmra.mrb[0].mxu0 %v2089
    %v2128 = vpop.f32.mrb[0].mxu0
    %v2129 = vadd.f32 0.0, %v2128
    %v2130 = vpop.f32.mrb[0].mxu0
    %v2131 = vpop.f32.mrb[0].mxu0
    %v2132 = vpop.f32.mrb[0].mxu0
    %2133 = vdwg.mxu0
    %v2134 = vmul.f32 %v2129, 0.25
    %v2135 = vadd.f32 %v2134, %v465
    %v2136 = vsel %vm467, %v2135, -inf
    %2137 = vmax.xlane.f32.xlu0 %v2136
    %v2138 = vpop.xlane.xlu0 %2137
    %v2139 = vsub.f32 %v2135, %v2138
    %v2140 = vmul.f32 %v2139, 1.442695
    %v2141 = vpow.pop %v2140
    %v2142 = vsel %vm467, %v2141, 0.0
    %2143 = vadd.xlane.f32.xlu0 %v2142
    %v2144 = vpop.xlane.xlu0 %2143
    %v2145 = vrcp.pop %v2144
    %v2146 = vmul.f32 %v2141, %v2145
    %v2147 = vpack.c.bf16 %v2146, %v2146
    %2148 = vrot.lane.b32.xlu0 %v1918, 96
    %v2149 = vpop.permute.xlu0 %2148
    %v2151 = vsel %vm467, %v2147, 0
    %v2154 = vsel %vm484, %v2149, 0
    %2156 = vmatprep.subr.bf16.mxu0 0
    %2157 = vmatpush1.bf16.msra.mxu0 %v2154
    %2158 = vmatprep.subr.bf16.mxu0 0
    %2159 = vmatpush1.bf16.msra.mxu0 0
    %2160 = vmatprep.subr.bf16.mxu0 0
    %2161 = vmatpush1.bf16.msra.mxu0 0
    %2162 = vmatprep.subr.bf16.mxu0 0
    %2163 = vmatpush1.bf16.msra.mxu0 0
    %2164 = vmatprep.subr.bf16.mxu0 0
    %2165 = vmatpush1.bf16.msra.mxu0 0
    %2166 = vmatprep.subr.bf16.mxu0 0
    %2167 = vmatpush1.bf16.msra.mxu0 0
    %2168 = vmatprep.subr.bf16.mxu0 0
    %2169 = vmatpush1.bf16.msra.mxu0 0
    %2170 = vmatprep.subr.bf16.mxu0 0
    %2171 = vmatpush1.bf16.msra.mxu0 0
    %2172 = vmatprep.subr.bf16.mxu0 0
    %2173 = vmatpush1.bf16.msra.mxu0 0
    %2174 = vmatprep.subr.bf16.mxu0 0
    %2175 = vmatpush1.bf16.msra.mxu0 0
    %2176 = vmatprep.subr.bf16.mxu0 0
    %2177 = vmatpush1.bf16.msra.mxu0 0
    %2178 = vmatprep.subr.bf16.mxu0 0
    %2179 = vmatpush1.bf16.msra.mxu0 0
    %2180 = vmatprep.subr.bf16.mxu0 0
    %2181 = vmatpush1.bf16.msra.mxu0 0
    %2182 = vmatprep.subr.bf16.mxu0 0
    %2183 = vmatpush1.bf16.msra.mxu0 0
    %2184 = vmatprep.subr.bf16.mxu0 0
    %2185 = vmatpush1.bf16.msra.mxu0 0
    %2186 = vmatprep.subr.bf16.mxu0 0
    %2187 = vmatpush1.bf16.msra.mxu0 0
    %2188 = vmatprep.mubr.bf16.mxu0 0
    %2189 = vmatmul.mubr.bf16.gmra.mrb[0].mxu0 %v2151
    %v2190 = vpop.f32.mrb[0].mxu0
    %v2191 = vadd.f32 0.0, %v2190
    %v2192 = vpop.f32.mrb[0].mxu0
    %v2193 = vpop.f32.mrb[0].mxu0
    %v2194 = vpop.f32.mrb[0].mxu0
    %2195 = vdwg.mxu0
    %2197 = vrot.lane.b32.xlu0 %v2191, 32
    %v2198 = vpop.permute.xlu0 %2197
    %2200 = vst.msk [vmem:[#allocation2] sm:$0xff] %vm764, %v2198
    %2201 = vrot.lane.b32.xlu0 %v1854, 80
    %v2202 = vpop.permute.xlu0 %2201
    %2203 = vrot.lane.b32.xlu0 %v1854, 16
    %v2204 = vpop.permute.xlu0 %2203
    %v2206 = vsel %vm414, %v2202, 0
    %v2209 = vsel %vm414, %v2204, 0
    %2211 = vmatprep.subr.bf16.mxu0 0
    %2212 = vmatpush1.bf16.xpose.msra.mxu0 %v2209
    %2213 = vmatprep.subr.bf16.mxu0 0
    %2214 = vmatpush1.bf16.xpose.msra.mxu0 0
    %2215 = vmatprep.subr.bf16.mxu0 0
    %2216 = vmatpush1.bf16.xpose.msra.mxu0 0
    %2217 = vmatprep.subr.bf16.mxu0 0
    %2218 = vmatpush1.bf16.xpose.msra.mxu0 0
    %2219 = vmatprep.subr.bf16.mxu0 0
    %2220 = vmatpush1.bf16.xpose.msra.mxu0 0
    %2221 = vmatprep.subr.bf16.mxu0 0
    %2222 = vmatpush1.bf16.xpose.msra.mxu0 0
    %2223 = vmatprep.subr.bf16.mxu0 0
    %2224 = vmatpush1.bf16.xpose.msra.mxu0 0
    %2225 = vmatprep.subr.bf16.mxu0 0
    %2226 = vmatpush1.bf16.xpose.msra.mxu0 0
    %2227 = vmatprep.subr.bf16.mxu0 0
    %2228 = vmatpush1.bf16.xpose.msra.mxu0 0
    %2229 = vmatprep.subr.bf16.mxu0 0
    %2230 = vmatpush1.bf16.xpose.msra.mxu0 0
    %2231 = vmatprep.subr.bf16.mxu0 0
    %2232 = vmatpush1.bf16.xpose.msra.mxu0 0
    %2233 = vmatprep.subr.bf16.mxu0 0
    %2234 = vmatpush1.bf16.xpose.msra.mxu0 0
    %2235 = vmatprep.subr.bf16.mxu0 0
    %2236 = vmatpush1.bf16.xpose.msra.mxu0 0
    %2237 = vmatprep.subr.bf16.mxu0 0
    %2238 = vmatpush1.bf16.xpose.msra.mxu0 0
    %2239 = vmatprep.subr.bf16.mxu0 0
    %2240 = vmatpush1.bf16.xpose.msra.mxu0 0
    %2241 = vmatprep.subr.bf16.mxu0 0
    %2242 = vmatpush1.bf16.xpose.msra.mxu0 0
    %2243 = vmatprep.mubr.bf16.mxu0 0
    %2244 = vmatmul.mubr.bf16.gmra.mrb[0].mxu0 %v2206
    %v2245 = vpop.f32.mrb[0].mxu0
    %v2246 = vadd.f32 0.0, %v2245
    %v2247 = vpop.f32.mrb[0].mxu0
    %v2248 = vpop.f32.mrb[0].mxu0
    %v2249 = vpop.f32.mrb[0].mxu0
    %2250 = vdwg.mxu0
    %v2251 = vmul.f32 %v2246, 0.25
    %v2252 = vadd.f32 %v2251, %v465
    %v2253 = vsel %vm467, %v2252, -inf
    %2254 = vmax.xlane.f32.xlu0 %v2253
    %v2255 = vpop.xlane.xlu0 %2254
    %v2256 = vsub.f32 %v2252, %v2255
    %v2257 = vmul.f32 %v2256, 1.442695
    %v2258 = vpow.pop %v2257
    %v2259 = vsel %vm467, %v2258, 0.0
    %2260 = vadd.xlane.f32.xlu0 %v2259
    %v2261 = vpop.xlane.xlu0 %2260
    %v2262 = vrcp.pop %v2261
    %v2263 = vmul.f32 %v2258, %v2262
    %v2264 = vpack.c.bf16 %v2263, %v2263
    %2265 = vrot.lane.b32.xlu0 %v1918, 80
    %v2266 = vpop.permute.xlu0 %2265
    %v2268 = vsel %vm467, %v2264, 0
    %v2271 = vsel %vm484, %v2266, 0
    %2273 = vmatprep.subr.bf16.mxu0 0
    %2274 = vmatpush1.bf16.msra.mxu0 %v2271
    %2275 = vmatprep.subr.bf16.mxu0 0
    %2276 = vmatpush1.bf16.msra.mxu0 0
    %2277 = vmatprep.subr.bf16.mxu0 0
    %2278 = vmatpush1.bf16.msra.mxu0 0
    %2279 = vmatprep.subr.bf16.mxu0 0
    %2280 = vmatpush1.bf16.msra.mxu0 0
    %2281 = vmatprep.subr.bf16.mxu0 0
    %2282 = vmatpush1.bf16.msra.mxu0 0
    %2283 = vmatprep.subr.bf16.mxu0 0
    %2284 = vmatpush1.bf16.msra.mxu0 0
    %2285 = vmatprep.subr.bf16.mxu0 0
    %2286 = vmatpush1.bf16.msra.mxu0 0
    %2287 = vmatprep.subr.bf16.mxu0 0
    %2288 = vmatpush1.bf16.msra.mxu0 0
    %2289 = vmatprep.subr.bf16.mxu0 0
    %2290 = vmatpush1.bf16.msra.mxu0 0
    %2291 = vmatprep.subr.bf16.mxu0 0
    %2292 = vmatpush1.bf16.msra.mxu0 0
    %2293 = vmatprep.subr.bf16.mxu0 0
    %2294 = vmatpush1.bf16.msra.mxu0 0
    %2295 = vmatprep.subr.bf16.mxu0 0
    %2296 = vmatpush1.bf16.msra.mxu0 0
    %2297 = vmatprep.subr.bf16.mxu0 0
    %2298 = vmatpush1.bf16.msra.mxu0 0
    %2299 = vmatprep.subr.bf16.mxu0 0
    %2300 = vmatpush1.bf16.msra.mxu0 0
    %2301 = vmatprep.subr.bf16.mxu0 0
    %2302 = vmatpush1.bf16.msra.mxu0 0
    %2303 = vmatprep.subr.bf16.mxu0 0
    %2304 = vmatpush1.bf16.msra.mxu0 0
    %2305 = vmatprep.mubr.bf16.mxu0 0
    %2306 = vmatmul.mubr.bf16.gmra.mrb[0].mxu0 %v2268
    %v2307 = vpop.f32.mrb[0].mxu0
    %v2308 = vadd.f32 0.0, %v2307
    %v2309 = vpop.f32.mrb[0].mxu0
    %v2310 = vpop.f32.mrb[0].mxu0
    %v2311 = vpop.f32.mrb[0].mxu0
    %2312 = vdwg.mxu0
    %2314 = vrot.lane.b32.xlu0 %v2308, 48
    %v2315 = vpop.permute.xlu0 %2314
    %2317 = vst.msk [vmem:[#allocation2] sm:$0xff] %vm882, %v2315
    %v2318 = vpack.c.bf16 %v1850, %v1850
    %2320 = vrot.lane.b32.xlu0 %v2318, 64
    %v2321 = vpop.permute.xlu0 %2320
    %v2323 = vsel %vm414, %v2318, 0
    %v2326 = vsel %vm414, %v2321, 0
    %2328 = vmatprep.subr.bf16.mxu0 0
    %2329 = vmatpush1.bf16.xpose.msra.mxu0 %v2326
    %2330 = vmatprep.subr.bf16.mxu0 0
    %2331 = vmatpush1.bf16.xpose.msra.mxu0 0
    %2332 = vmatprep.subr.bf16.mxu0 0
    %2333 = vmatpush1.bf16.xpose.msra.mxu0 0
    %2334 = vmatprep.subr.bf16.mxu0 0
    %2335 = vmatpush1.bf16.xpose.msra.mxu0 0
    %2336 = vmatprep.subr.bf16.mxu0 0
    %2337 = vmatpush1.bf16.xpose.msra.mxu0 0
    %2338 = vmatprep.subr.bf16.mxu0 0
    %2339 = vmatpush1.bf16.xpose.msra.mxu0 0
    %2340 = vmatprep.subr.bf16.mxu0 0
    %2341 = vmatpush1.bf16.xpose.msra.mxu0 0
    %2342 = vmatprep.subr.bf16.mxu0 0
    %2343 = vmatpush1.bf16.xpose.msra.mxu0 0
    %2344 = vmatprep.subr.bf16.mxu0 0
    %2345 = vmatpush1.bf16.xpose.msra.mxu0 0
    %2346 = vmatprep.subr.bf16.mxu0 0
    %2347 = vmatpush1.bf16.xpose.msra.mxu0 0
    %2348 = vmatprep.subr.bf16.mxu0 0
    %2349 = vmatpush1.bf16.xpose.msra.mxu0 0
    %2350 = vmatprep.subr.bf16.mxu0 0
    %2351 = vmatpush1.bf16.xpose.msra.mxu0 0
    %2352 = vmatprep.subr.bf16.mxu0 0
    %2353 = vmatpush1.bf16.xpose.msra.mxu0 0
    %2354 = vmatprep.subr.bf16.mxu0 0
    %2355 = vmatpush1.bf16.xpose.msra.mxu0 0
    %2356 = vmatprep.subr.bf16.mxu0 0
    %2357 = vmatpush1.bf16.xpose.msra.mxu0 0
    %2358 = vmatprep.subr.bf16.mxu0 0
    %2359 = vmatpush1.bf16.xpose.msra.mxu0 0
    %2360 = vmatprep.mubr.bf16.mxu0 0
    %2361 = vmatmul.mubr.bf16.gmra.mrb[0].mxu0 %v2323
    %v2362 = vpop.f32.mrb[0].mxu0
    %v2363 = vadd.f32 0.0, %v2362
    %v2364 = vpop.f32.mrb[0].mxu0
    %v2365 = vpop.f32.mrb[0].mxu0
    %v2366 = vpop.f32.mrb[0].mxu0
    %2367 = vdwg.mxu0
    %v2368 = vmul.f32 %v2363, 0.25
    %v2369 = vadd.f32 %v2368, %v938
    %v2370 = vsel %vm467, %v2369, -inf
    %2371 = vmax.xlane.f32.xlu0 %v2370
    %v2372 = vpop.xlane.xlu0 %2371
    %v2373 = vsub.f32 %v2369, %v2372
    %v2374 = vmul.f32 %v2373, 1.442695
    %v2375 = vpow.pop %v2374
    %v2376 = vsel %vm467, %v2375, 0.0
    %2377 = vadd.xlane.f32.xlu0 %v2376
    %v2378 = vpop.xlane.xlu0 %2377
    %v2379 = vrcp.pop %v2378
    %v2380 = vmul.f32 %v2375, %v2379
    %v2381 = vpack.c.bf16 %v2380, %v2380
    %v2382 = vpack.c.bf16 %v1852, %v1852
    %v2384 = vsel %vm467, %v2381, 0
    %v2387 = vsel %vm484, %v2382, 0
    %2389 = vmatprep.subr.bf16.mxu0 0
    %2390 = vmatpush1.bf16.msra.mxu0 %v2387
    %2391 = vmatprep.subr.bf16.mxu0 0
    %2392 = vmatpush1.bf16.msra.mxu0 0
    %2393 = vmatprep.subr.bf16.mxu0 0
    %2394 = vmatpush1.bf16.msra.mxu0 0
    %2395 = vmatprep.subr.bf16.mxu0 0
    %2396 = vmatpush1.bf16.msra.mxu0 0
    %2397 = vmatprep.subr.bf16.mxu0 0
    %2398 = vmatpush1.bf16.msra.mxu0 0
    %2399 = vmatprep.subr.bf16.mxu0 0
    %2400 = vmatpush1.bf16.msra.mxu0 0
    %2401 = vmatprep.subr.bf16.mxu0 0
    %2402 = vmatpush1.bf16.msra.mxu0 0
    %2403 = vmatprep.subr.bf16.mxu0 0
    %2404 = vmatpush1.bf16.msra.mxu0 0
    %2405 = vmatprep.subr.bf16.mxu0 0
    %2406 = vmatpush1.bf16.msra.mxu0 0
    %2407 = vmatprep.subr.bf16.mxu0 0
    %2408 = vmatpush1.bf16.msra.mxu0 0
    %2409 = vmatprep.subr.bf16.mxu0 0
    %2410 = vmatpush1.bf16.msra.mxu0 0
    %2411 = vmatprep.subr.bf16.mxu0 0
    %2412 = vmatpush1.bf16.msra.mxu0 0
    %2413 = vmatprep.subr.bf16.mxu0 0
    %2414 = vmatpush1.bf16.msra.mxu0 0
    %2415 = vmatprep.subr.bf16.mxu0 0
    %2416 = vmatpush1.bf16.msra.mxu0 0
    %2417 = vmatprep.subr.bf16.mxu0 0
    %2418 = vmatpush1.bf16.msra.mxu0 0
    %2419 = vmatprep.subr.bf16.mxu0 0
    %2420 = vmatpush1.bf16.msra.mxu0 0
    %2421 = vmatprep.mubr.bf16.mxu0 0
    %2422 = vmatmul.mubr.bf16.gmra.mrb[0].mxu0 %v2384
    %v2423 = vpop.f32.mrb[0].mxu0
    %v2424 = vadd.f32 0.0, %v2423
    %v2425 = vpop.f32.mrb[0].mxu0
    %v2426 = vpop.f32.mrb[0].mxu0
    %v2427 = vpop.f32.mrb[0].mxu0
    %2428 = vdwg.mxu0
    %2429 = vst.msk [vmem:[#allocation2 + $0x8] sm:$0xff] %vm414, %v2424
    %2430 = vrot.lane.b32.xlu0 %v2318, 112
    %v2431 = vpop.permute.xlu0 %2430
    %2432 = vrot.lane.b32.xlu0 %v2318, 48
    %v2433 = vpop.permute.xlu0 %2432
    %v2435 = vsel %vm414, %v2431, 0
    %v2438 = vsel %vm414, %v2433, 0
    %2440 = vmatprep.subr.bf16.mxu0 0
    %2441 = vmatpush1.bf16.xpose.msra.mxu0 %v2438
    %2442 = vmatprep.subr.bf16.mxu0 0
    %2443 = vmatpush1.bf16.xpose.msra.mxu0 0
    %2444 = vmatprep.subr.bf16.mxu0 0
    %2445 = vmatpush1.bf16.xpose.msra.mxu0 0
    %2446 = vmatprep.subr.bf16.mxu0 0
    %2447 = vmatpush1.bf16.xpose.msra.mxu0 0
    %2448 = vmatprep.subr.bf16.mxu0 0
    %2449 = vmatpush1.bf16.xpose.msra.mxu0 0
    %2450 = vmatprep.subr.bf16.mxu0 0
    %2451 = vmatpush1.bf16.xpose.msra.mxu0 0
    %2452 = vmatprep.subr.bf16.mxu0 0
    %2453 = vmatpush1.bf16.xpose.msra.mxu0 0
    %2454 = vmatprep.subr.bf16.mxu0 0
    %2455 = vmatpush1.bf16.xpose.msra.mxu0 0
    %2456 = vmatprep.subr.bf16.mxu0 0
    %2457 = vmatpush1.bf16.xpose.msra.mxu0 0
    %2458 = vmatprep.subr.bf16.mxu0 0
    %2459 = vmatpush1.bf16.xpose.msra.mxu0 0
    %2460 = vmatprep.subr.bf16.mxu0 0
    %2461 = vmatpush1.bf16.xpose.msra.mxu0 0
    %2462 = vmatprep.subr.bf16.mxu0 0
    %2463 = vmatpush1.bf16.xpose.msra.mxu0 0
    %2464 = vmatprep.subr.bf16.mxu0 0
    %2465 = vmatpush1.bf16.xpose.msra.mxu0 0
    %2466 = vmatprep.subr.bf16.mxu0 0
    %2467 = vmatpush1.bf16.xpose.msra.mxu0 0
    %2468 = vmatprep.subr.bf16.mxu0 0
    %2469 = vmatpush1.bf16.xpose.msra.mxu0 0
    %2470 = vmatprep.subr.bf16.mxu0 0
    %2471 = vmatpush1.bf16.xpose.msra.mxu0 0
    %2472 = vmatprep.mubr.bf16.mxu0 0
    %2473 = vmatmul.mubr.bf16.gmra.mrb[0].mxu0 %v2435
    %v2474 = vpop.f32.mrb[0].mxu0
    %v2475 = vadd.f32 0.0, %v2474
    %v2476 = vpop.f32.mrb[0].mxu0
    %v2477 = vpop.f32.mrb[0].mxu0
    %v2478 = vpop.f32.mrb[0].mxu0
    %2479 = vdwg.mxu0
    %v2480 = vmul.f32 %v2475, 0.25
    %v2481 = vadd.f32 %v2480, %v938
    %v2482 = vsel %vm467, %v2481, -inf
    %2483 = vmax.xlane.f32.xlu0 %v2482
    %v2484 = vpop.xlane.xlu0 %2483
    %v2485 = vsub.f32 %v2481, %v2484
    %v2486 = vmul.f32 %v2485, 1.442695
    %v2487 = vpow.pop %v2486
    %v2488 = vsel %vm467, %v2487, 0.0
    %2489 = vadd.xlane.f32.xlu0 %v2488
    %v2490 = vpop.xlane.xlu0 %2489
    %v2491 = vrcp.pop %v2490
    %v2492 = vmul.f32 %v2487, %v2491
    %v2493 = vpack.c.bf16 %v2492, %v2492
    %2495 = vrot.lane.b32.xlu0 %v2382, 112
    %v2496 = vpop.permute.xlu0 %2495
    %v2498 = vsel %vm467, %v2493, 0
    %v2501 = vsel %vm484, %v2496, 0
    %2503 = vmatprep.subr.bf16.mxu0 0
    %2504 = vmatpush1.bf16.msra.mxu0 %v2501
    %2505 = vmatprep.subr.bf16.mxu0 0
    %2506 = vmatpush1.bf16.msra.mxu0 0
    %2507 = vmatprep.subr.bf16.mxu0 0
    %2508 = vmatpush1.bf16.msra.mxu0 0
    %2509 = vmatprep.subr.bf16.mxu0 0
    %2510 = vmatpush1.bf16.msra.mxu0 0
    %2511 = vmatprep.subr.bf16.mxu0 0
    %2512 = vmatpush1.bf16.msra.mxu0 0
    %2513 = vmatprep.subr.bf16.mxu0 0
    %2514 = vmatpush1.bf16.msra.mxu0 0
    %2515 = vmatprep.subr.bf16.mxu0 0
    %2516 = vmatpush1.bf16.msra.mxu0 0
    %2517 = vmatprep.subr.bf16.mxu0 0
    %2518 = vmatpush1.bf16.msra.mxu0 0
    %2519 = vmatprep.subr.bf16.mxu0 0
    %2520 = vmatpush1.bf16.msra.mxu0 0
    %2521 = vmatprep.subr.bf16.mxu0 0
    %2522 = vmatpush1.bf16.msra.mxu0 0
    %2523 = vmatprep.subr.bf16.mxu0 0
    %2524 = vmatpush1.bf16.msra.mxu0 0
    %2525 = vmatprep.subr.bf16.mxu0 0
    %2526 = vmatpush1.bf16.msra.mxu0 0
    %2527 = vmatprep.subr.bf16.mxu0 0
    %2528 = vmatpush1.bf16.msra.mxu0 0
    %2529 = vmatprep.subr.bf16.mxu0 0
    %2530 = vmatpush1.bf16.msra.mxu0 0
    %2531 = vmatprep.subr.bf16.mxu0 0
    %2532 = vmatpush1.bf16.msra.mxu0 0
    %2533 = vmatprep.subr.bf16.mxu0 0
    %2534 = vmatpush1.bf16.msra.mxu0 0
    %2535 = vmatprep.mubr.bf16.mxu0 0
    %2536 = vmatmul.mubr.bf16.gmra.mrb[0].mxu0 %v2498
    %v2537 = vpop.f32.mrb[0].mxu0
    %v2538 = vadd.f32 0.0, %v2537
    %v2539 = vpop.f32.mrb[0].mxu0
    %v2540 = vpop.f32.mrb[0].mxu0
    %v2541 = vpop.f32.mrb[0].mxu0
    %2542 = vdwg.mxu0
    %2544 = vrot.lane.b32.xlu0 %v2538, 16
    %v2545 = vpop.permute.xlu0 %2544
    %2547 = vst.msk [vmem:[#allocation2 + $0x8] sm:$0xff] %vm646, %v2545
    %2548 = vrot.lane.b32.xlu0 %v2318, 96
    %v2549 = vpop.permute.xlu0 %2548
    %2550 = vrot.lane.b32.xlu0 %v2318, 32
    %v2551 = vpop.permute.xlu0 %2550
    %v2553 = vsel %vm414, %v2549, 0
    %v2556 = vsel %vm414, %v2551, 0
    %2558 = vmatprep.subr.bf16.mxu0 0
    %2559 = vmatpush1.bf16.xpose.msra.mxu0 %v2556
    %2560 = vmatprep.subr.bf16.mxu0 0
    %2561 = vmatpush1.bf16.xpose.msra.mxu0 0
    %2562 = vmatprep.subr.bf16.mxu0 0
    %2563 = vmatpush1.bf16.xpose.msra.mxu0 0
    %2564 = vmatprep.subr.bf16.mxu0 0
    %2565 = vmatpush1.bf16.xpose.msra.mxu0 0
    %2566 = vmatprep.subr.bf16.mxu0 0
    %2567 = vmatpush1.bf16.xpose.msra.mxu0 0
    %2568 = vmatprep.subr.bf16.mxu0 0
    %2569 = vmatpush1.bf16.xpose.msra.mxu0 0
    %2570 = vmatprep.subr.bf16.mxu0 0
    %2571 = vmatpush1.bf16.xpose.msra.mxu0 0
    %2572 = vmatprep.subr.bf16.mxu0 0
    %2573 = vmatpush1.bf16.xpose.msra.mxu0 0
    %2574 = vmatprep.subr.bf16.mxu0 0
    %2575 = vmatpush1.bf16.xpose.msra.mxu0 0
    %2576 = vmatprep.subr.bf16.mxu0 0
    %2577 = vmatpush1.bf16.xpose.msra.mxu0 0
    %2578 = vmatprep.subr.bf16.mxu0 0
    %2579 = vmatpush1.bf16.xpose.msra.mxu0 0
    %2580 = vmatprep.subr.bf16.mxu0 0
    %2581 = vmatpush1.bf16.xpose.msra.mxu0 0
    %2582 = vmatprep.subr.bf16.mxu0 0
    %2583 = vmatpush1.bf16.xpose.msra.mxu0 0
    %2584 = vmatprep.subr.bf16.mxu0 0
    %2585 = vmatpush1.bf16.xpose.msra.mxu0 0
    %2586 = vmatprep.subr.bf16.mxu0 0
    %2587 = vmatpush1.bf16.xpose.msra.mxu0 0
    %2588 = vmatprep.subr.bf16.mxu0 0
    %2589 = vmatpush1.bf16.xpose.msra.mxu0 0
    %2590 = vmatprep.mubr.bf16.mxu0 0
    %2591 = vmatmul.mubr.bf16.gmra.mrb[0].mxu0 %v2553
    %v2592 = vpop.f32.mrb[0].mxu0
    %v2593 = vadd.f32 0.0, %v2592
    %v2594 = vpop.f32.mrb[0].mxu0
    %v2595 = vpop.f32.mrb[0].mxu0
    %v2596 = vpop.f32.mrb[0].mxu0
    %2597 = vdwg.mxu0
    %v2598 = vmul.f32 %v2593, 0.25
    %v2599 = vadd.f32 %v2598, %v938
    %v2600 = vsel %vm467, %v2599, -inf
    %2601 = vmax.xlane.f32.xlu0 %v2600
    %v2602 = vpop.xlane.xlu0 %2601
    %v2603 = vsub.f32 %v2599, %v2602
    %v2604 = vmul.f32 %v2603, 1.442695
    %v2605 = vpow.pop %v2604
    %v2606 = vsel %vm467, %v2605, 0.0
    %2607 = vadd.xlane.f32.xlu0 %v2606
    %v2608 = vpop.xlane.xlu0 %2607
    %v2609 = vrcp.pop %v2608
    %v2610 = vmul.f32 %v2605, %v2609
    %v2611 = vpack.c.bf16 %v2610, %v2610
    %2612 = vrot.lane.b32.xlu0 %v2382, 96
    %v2613 = vpop.permute.xlu0 %2612
    %v2615 = vsel %vm467, %v2611, 0
    %v2618 = vsel %vm484, %v2613, 0
    %2620 = vmatprep.subr.bf16.mxu0 0
    %2621 = vmatpush1.bf16.msra.mxu0 %v2618
    %2622 = vmatprep.subr.bf16.mxu0 0
    %2623 = vmatpush1.bf16.msra.mxu0 0
    %2624 = vmatprep.subr.bf16.mxu0 0
    %2625 = vmatpush1.bf16.msra.mxu0 0
    %2626 = vmatprep.subr.bf16.mxu0 0
    %2627 = vmatpush1.bf16.msra.mxu0 0
    %2628 = vmatprep.subr.bf16.mxu0 0
    %2629 = vmatpush1.bf16.msra.mxu0 0
    %2630 = vmatprep.subr.bf16.mxu0 0
    %2631 = vmatpush1.bf16.msra.mxu0 0
    %2632 = vmatprep.subr.bf16.mxu0 0
    %2633 = vmatpush1.bf16.msra.mxu0 0
    %2634 = vmatprep.subr.bf16.mxu0 0
    %2635 = vmatpush1.bf16.msra.mxu0 0
    %2636 = vmatprep.subr.bf16.mxu0 0
    %2637 = vmatpush1.bf16.msra.mxu0 0
    %2638 = vmatprep.subr.bf16.mxu0 0
    %2639 = vmatpush1.bf16.msra.mxu0 0
    %2640 = vmatprep.subr.bf16.mxu0 0
    %2641 = vmatpush1.bf16.msra.mxu0 0
    %2642 = vmatprep.subr.bf16.mxu0 0
    %2643 = vmatpush1.bf16.msra.mxu0 0
    %2644 = vmatprep.subr.bf16.mxu0 0
    %2645 = vmatpush1.bf16.msra.mxu0 0
    %2646 = vmatprep.subr.bf16.mxu0 0
    %2647 = vmatpush1.bf16.msra.mxu0 0
    %2648 = vmatprep.subr.bf16.mxu0 0
    %2649 = vmatpush1.bf16.msra.mxu0 0
    %2650 = vmatprep.subr.bf16.mxu0 0
    %2651 = vmatpush1.bf16.msra.mxu0 0
    %2652 = vmatprep.mubr.bf16.mxu0 0
    %2653 = vmatmul.mubr.bf16.gmra.mrb[0].mxu0 %v2615
    %v2654 = vpop.f32.mrb[0].mxu0
    %v2655 = vadd.f32 0.0, %v2654
    %v2656 = vpop.f32.mrb[0].mxu0
    %v2657 = vpop.f32.mrb[0].mxu0
    %v2658 = vpop.f32.mrb[0].mxu0
    %2659 = vdwg.mxu0
    %2661 = vrot.lane.b32.xlu0 %v2655, 32
    %v2662 = vpop.permute.xlu0 %2661
    %2664 = vst.msk [vmem:[#allocation2 + $0x8] sm:$0xff] %vm764, %v2662
    %2665 = vrot.lane.b32.xlu0 %v2318, 80
    %v2666 = vpop.permute.xlu0 %2665
    %2667 = vrot.lane.b32.xlu0 %v2318, 16
    %v2668 = vpop.permute.xlu0 %2667
    %v2670 = vsel %vm414, %v2666, 0
    %v2673 = vsel %vm414, %v2668, 0
    %2675 = vmatprep.subr.bf16.mxu0 0
    %2676 = vmatpush1.bf16.xpose.msra.mxu0 %v2673
    %2677 = vmatprep.subr.bf16.mxu0 0
    %2678 = vmatpush1.bf16.xpose.msra.mxu0 0
    %2679 = vmatprep.subr.bf16.mxu0 0
    %2680 = vmatpush1.bf16.xpose.msra.mxu0 0
    %2681 = vmatprep.subr.bf16.mxu0 0
    %2682 = vmatpush1.bf16.xpose.msra.mxu0 0
    %2683 = vmatprep.subr.bf16.mxu0 0
    %2684 = vmatpush1.bf16.xpose.msra.mxu0 0
    %2685 = vmatprep.subr.bf16.mxu0 0
    %2686 = vmatpush1.bf16.xpose.msra.mxu0 0
    %2687 = vmatprep.subr.bf16.mxu0 0
    %2688 = vmatpush1.bf16.xpose.msra.mxu0 0
    %2689 = vmatprep.subr.bf16.mxu0 0
    %2690 = vmatpush1.bf16.xpose.msra.mxu0 0
    %2691 = vmatprep.subr.bf16.mxu0 0
    %2692 = vmatpush1.bf16.xpose.msra.mxu0 0
    %2693 = vmatprep.subr.bf16.mxu0 0
    %2694 = vmatpush1.bf16.xpose.msra.mxu0 0
    %2695 = vmatprep.subr.bf16.mxu0 0
    %2696 = vmatpush1.bf16.xpose.msra.mxu0 0
    %2697 = vmatprep.subr.bf16.mxu0 0
    %2698 = vmatpush1.bf16.xpose.msra.mxu0 0
    %2699 = vmatprep.subr.bf16.mxu0 0
    %2700 = vmatpush1.bf16.xpose.msra.mxu0 0
    %2701 = vmatprep.subr.bf16.mxu0 0
    %2702 = vmatpush1.bf16.xpose.msra.mxu0 0
    %2703 = vmatprep.subr.bf16.mxu0 0
    %2704 = vmatpush1.bf16.xpose.msra.mxu0 0
    %2705 = vmatprep.subr.bf16.mxu0 0
    %2706 = vmatpush1.bf16.xpose.msra.mxu0 0
    %2707 = vmatprep.mubr.bf16.mxu0 0
    %2708 = vmatmul.mubr.bf16.gmra.mrb[0].mxu0 %v2670
    %v2709 = vpop.f32.mrb[0].mxu0
    %v2710 = vadd.f32 0.0, %v2709
    %v2711 = vpop.f32.mrb[0].mxu0
    %v2712 = vpop.f32.mrb[0].mxu0
    %v2713 = vpop.f32.mrb[0].mxu0
    %2714 = vdwg.mxu0
    %v2715 = vmul.f32 %v2710, 0.25
    %v2716 = vadd.f32 %v2715, %v938
    %v2717 = vsel %vm467, %v2716, -inf
    %2718 = vmax.xlane.f32.xlu0 %v2717
    %v2719 = vpop.xlane.xlu0 %2718
    %v2720 = vsub.f32 %v2716, %v2719
    %v2721 = vmul.f32 %v2720, 1.442695
    %v2722 = vpow.pop %v2721
    %v2723 = vsel %vm467, %v2722, 0.0
    %2724 = vadd.xlane.f32.xlu0 %v2723
    %v2725 = vpop.xlane.xlu0 %2724
    %v2726 = vrcp.pop %v2725
    %v2727 = vmul.f32 %v2722, %v2726
    %v2728 = vpack.c.bf16 %v2727, %v2727
    %2729 = vrot.lane.b32.xlu0 %v2382, 80
    %v2730 = vpop.permute.xlu0 %2729
    %v2732 = vsel %vm467, %v2728, 0
    %v2735 = vsel %vm484, %v2730, 0
    %2737 = vmatprep.subr.bf16.mxu0 0
    %2738 = vmatpush1.bf16.msra.mxu0 %v2735
    %2739 = vmatprep.subr.bf16.mxu0 0
    %2740 = vmatpush1.bf16.msra.mxu0 0
    %2741 = vmatprep.subr.bf16.mxu0 0
    %2742 = vmatpush1.bf16.msra.mxu0 0
    %2743 = vmatprep.subr.bf16.mxu0 0
    %2744 = vmatpush1.bf16.msra.mxu0 0
    %2745 = vmatprep.subr.bf16.mxu0 0
    %2746 = vmatpush1.bf16.msra.mxu0 0
    %2747 = vmatprep.subr.bf16.mxu0 0
    %2748 = vmatpush1.bf16.msra.mxu0 0
    %2749 = vmatprep.subr.bf16.mxu0 0
    %2750 = vmatpush1.bf16.msra.mxu0 0
    %2751 = vmatprep.subr.bf16.mxu0 0
    %2752 = vmatpush1.bf16.msra.mxu0 0
    %2753 = vmatprep.subr.bf16.mxu0 0
    %2754 = vmatpush1.bf16.msra.mxu0 0
    %2755 = vmatprep.subr.bf16.mxu0 0
    %2756 = vmatpush1.bf16.msra.mxu0 0
    %2757 = vmatprep.subr.bf16.mxu0 0
    %2758 = vmatpush1.bf16.msra.mxu0 0
    %2759 = vmatprep.subr.bf16.mxu0 0
    %2760 = vmatpush1.bf16.msra.mxu0 0
    %2761 = vmatprep.subr.bf16.mxu0 0
    %2762 = vmatpush1.bf16.msra.mxu0 0
    %2763 = vmatprep.subr.bf16.mxu0 0
    %2764 = vmatpush1.bf16.msra.mxu0 0
    %2765 = vmatprep.subr.bf16.mxu0 0
    %2766 = vmatpush1.bf16.msra.mxu0 0
    %2767 = vmatprep.subr.bf16.mxu0 0
    %2768 = vmatpush1.bf16.msra.mxu0 0
    %2769 = vmatprep.mubr.bf16.mxu0 0
    %2770 = vmatmul.mubr.bf16.gmra.mrb[0].mxu0 %v2732
    %v2771 = vpop.f32.mrb[0].mxu0
    %v2772 = vadd.f32 0.0, %v2771
    %v2773 = vpop.f32.mrb[0].mxu0
    %v2774 = vpop.f32.mrb[0].mxu0
    %v2775 = vpop.f32.mrb[0].mxu0
    %2776 = vdwg.mxu0
    %2778 = vrot.lane.b32.xlu0 %v2772, 48
    %v2779 = vpop.permute.xlu0 %2778
    %2781 = vst.msk [vmem:[#allocation2 + $0x8] sm:$0xff] %vm882, %v2779
    %v2782 = vld [vmem:[#allocation2] sm:$0xff]
    %v2783 = vld [vmem:[#allocation2 + $0x8] sm:$0xff]
    %s2784 = scalar_lea.vmem %s6, 32
    %v2785 = vld [vmem:[%s2784] sm:$0xf]
    %v2786 = vld [vmem:[%s2784 + $0x4] sm:$0xf]
    %v2787 = vld [vmem:[%s2784 + $0x8] sm:$0xf]
    %v2788 = vld [vmem:[%s2784 + $0xc] sm:$0xf]
    %v2789 = vld [vmem:[%s2784 + $0x10] sm:$0xf]
    %v2790 = vld [vmem:[%s2784 + $0x14] sm:$0xf]
    %v2791 = vld [vmem:[%s2784 + $0x18] sm:$0xf]
    %v2792 = vld [vmem:[%s2784 + $0x1c] sm:$0xf]
    %s2793 = scalar_lea.vmem [#allocation12], 1
    %v2794 = vld [vmem:[%s2793] sm:$0x1]
    %v2795 = vpack.c.bf16 %v2783, %v2782
    %v2797 = vlaneseq
    %v2798 = vshrl.u32 %v2797, 7
    %v2799 = vsub.s32 0, %v2798
    %v2800 = vrot.slane %v2794, %v2799
    %v2810 = vunpack.c.l.b16 %v2785
    %v2811 = vunpack.c.l.b16 %v2786
    %v2812 = vunpack.c.l.b16 %v2787
    %v2813 = vunpack.c.l.b16 %v2788
    %v2814 = vunpack.c.l.b16 %v2789
    %v2815 = vunpack.c.l.b16 %v2790
    %v2816 = vunpack.c.l.b16 %v2791
    %v2817 = vunpack.c.l.b16 %v2792
    %v2818 = vpack.c.b16 %v2811, %v2810
    %v2819 = vpack.c.b16 %v2813, %v2812
    %v2820 = vpack.c.b16 %v2815, %v2814
    %v2821 = vpack.c.b16 %v2817, %v2816
    %v2827 = vsel %vm253, %v2795, 0
    %2829 = vmatprep.subr.bf16.mxu0 0
    %2830 = vmatpush1.bf16.msra.mxu0 %v2818
    %2831 = vmatprep.subr.bf16.mxu0 0
    %2832 = vmatpush1.bf16.msra.mxu0 %v2819
    %2833 = vmatprep.subr.bf16.mxu0 0
    %2834 = vmatpush1.bf16.msra.mxu0 %v2820
    %2835 = vmatprep.subr.bf16.mxu0 0
    %2836 = vmatpush1.bf16.msra.mxu0 %v2821
    %2837 = vmatprep.subr.bf16.mxu0 0
    %2838 = vmatpush1.bf16.msra.mxu0 0
    %2839 = vmatprep.subr.bf16.mxu0 0
    %2840 = vmatpush1.bf16.msra.mxu0 0
    %2841 = vmatprep.subr.bf16.mxu0 0
    %2842 = vmatpush1.bf16.msra.mxu0 0
    %2843 = vmatprep.subr.bf16.mxu0 0
    %2844 = vmatpush1.bf16.msra.mxu0 0
    %2845 = vmatprep.subr.bf16.mxu0 0
    %2846 = vmatpush1.bf16.msra.mxu0 0
    %2847 = vmatprep.subr.bf16.mxu0 0
    %2848 = vmatpush1.bf16.msra.mxu0 0
    %2849 = vmatprep.subr.bf16.mxu0 0
    %2850 = vmatpush1.bf16.msra.mxu0 0
    %2851 = vmatprep.subr.bf16.mxu0 0
    %2852 = vmatpush1.bf16.msra.mxu0 0
    %2853 = vmatprep.subr.bf16.mxu0 0
    %2854 = vmatpush1.bf16.msra.mxu0 0
    %2855 = vmatprep.subr.bf16.mxu0 0
    %2856 = vmatpush1.bf16.msra.mxu0 0
    %2857 = vmatprep.subr.bf16.mxu0 0
    %2858 = vmatpush1.bf16.msra.mxu0 0
    %2859 = vmatprep.subr.bf16.mxu0 0
    %2860 = vmatpush1.bf16.msra.mxu0 0
    %2861 = vmatprep.mubr.bf16.mxu0 0
    %2862 = vmatmul.mubr.bf16.gmra.mrb[0].mxu0 %v2827
    %v2863 = vpop.f32.mrb[0].mxu0
    %v2864 = vadd.f32 %v2800, %v2863
    %v2865 = vpop.f32.mrb[0].mxu0
    %v2866 = vpop.f32.mrb[0].mxu0
    %v2867 = vadd.f32 %v2800, %v2866
    %v2868 = vpop.f32.mrb[0].mxu0
    %2869 = vdwg.mxu0
    %v2870 = vadd.f32 %v2864, %v1743
    %v2871 = vadd.f32 %v2867, %v1744
    %s2872 = scalar_lea.vmem [#allocation14], 1
    %v2873 = vld [vmem:[%s2872] sm:$0x1]
    %s2874 = scalar_lea.vmem [#allocation15], 1
    %v2875 = vld [vmem:[%s2874] sm:$0x1]
    %v2876 = vsel %vm253, %v2870, 0.0
    %2877 = vadd.xlane.f32.xlu0 %v2876
    %v2878 = vpop.xlane.xlu0 %2877
    %v2879 = vsel %vm253, %v2871, 0.0
    %2880 = vadd.xlane.f32.xlu0 %v2879
    %v2881 = vpop.xlane.xlu0 %2880
    %v2882 = vmul.f32 %v2878, %v260
    %v2883 = vmul.f32 %v2881, %v260
    %v2884 = vsub.f32 %v2870, %v2882
    %v2885 = vsub.f32 %v2871, %v2883
    %v2886 = vmul.f32 %v2884, %v2884
    %v2887 = vmul.f32 %v2885, %v2885
    %v2888 = vsel %vm253, %v2886, 0.0
    %2889 = vadd.xlane.f32.xlu0 %v2888
    %v2890 = vpop.xlane.xlu0 %2889
    %v2891 = vsel %vm253, %v2887, 0.0
    %2892 = vadd.xlane.f32.xlu0 %v2891
    %v2893 = vpop.xlane.xlu0 %2892
    %v2894 = vmul.f32 %v2890, %v260
    %v2895 = vmul.f32 %v2893, %v260
    %v2896 = vadd.f32 %v2894, 1e-12
    %v2897 = vadd.f32 %v2895, 1e-12
    %v2898 = vrsqrt.pop %v2896
    %v2899 = vrsqrt.pop %v2897
    %v2900 = vmul.f32 %v2884, %v2898
    %v2901 = vmul.f32 %v2885, %v2899
    %v2903 = vlaneseq
    %v2904 = vshrl.u32 %v2903, 7
    %v2905 = vsub.s32 0, %v2904
    %v2906 = vrot.slane %v2873, %v2905
    %v2908 = vmul.f32 %v2900, %v2906
    %v2909 = vmul.f32 %v2901, %v2906
    %v2911 = vlaneseq
    %v2912 = vshrl.u32 %v2911, 7
    %v2913 = vsub.s32 0, %v2912
    %v2914 = vrot.slane %v2875, %v2913
    %v2916 = vadd.f32 %v2908, %v2914
    %v2917 = vadd.f32 %v2909, %v2914
    %s2918 = scalar_lea.vmem [#allocation17], 32
    %v2919 = vld [vmem:[%s2918] sm:$0xf]
    %v2920 = vld [vmem:[%s2918 + $0x4] sm:$0xf]
    %v2921 = vld [vmem:[%s2918 + $0x8] sm:$0xf]
    %v2922 = vld [vmem:[%s2918 + $0xc] sm:$0xf]
    %v2923 = vld [vmem:[%s2918 + $0x10] sm:$0xf]
    %v2924 = vld [vmem:[%s2918 + $0x14] sm:$0xf]
    %v2925 = vld [vmem:[%s2918 + $0x18] sm:$0xf]
    %v2926 = vld [vmem:[%s2918 + $0x1c] sm:$0xf]
    %s2927 = scalar_lea.vmem [#allocation18], 1
    %v2928 = vld [vmem:[%s2927] sm:$0x1]
    %v2929 = vpack.c.bf16 %v2917, %v2916
    %v2931 = vlaneseq
    %v2932 = vshrl.u32 %v2931, 7
    %v2933 = vsub.s32 0, %v2932
    %v2934 = vrot.slane %v2928, %v2933
    %v2944 = vunpack.c.l.b16 %v2919
    %v2945 = vunpack.c.l.b16 %v2920
    %v2946 = vunpack.c.l.b16 %v2921
    %v2947 = vunpack.c.l.b16 %v2922
    %v2948 = vunpack.c.l.b16 %v2923
    %v2949 = vunpack.c.l.b16 %v2924
    %v2950 = vunpack.c.l.b16 %v2925
    %v2951 = vunpack.c.l.b16 %v2926
    %v2952 = vpack.c.b16 %v2945, %v2944
    %v2953 = vpack.c.b16 %v2947, %v2946
    %v2954 = vpack.c.b16 %v2949, %v2948
    %v2955 = vpack.c.b16 %v2951, %v2950
    %v2961 = vsel %vm253, %v2929, 0
    %2963 = vmatprep.subr.bf16.mxu0 0
    %2964 = vmatpush1.bf16.msra.mxu0 %v2952
    %2965 = vmatprep.subr.bf16.mxu0 0
    %2966 = vmatpush1.bf16.msra.mxu0 %v2953
    %2967 = vmatprep.subr.bf16.mxu0 0
    %2968 = vmatpush1.bf16.msra.mxu0 %v2954
    %2969 = vmatprep.subr.bf16.mxu0 0
    %2970 = vmatpush1.bf16.msra.mxu0 %v2955
    %2971 = vmatprep.subr.bf16.mxu0 0
    %2972 = vmatpush1.bf16.msra.mxu0 0
    %2973 = vmatprep.subr.bf16.mxu0 0
    %2974 = vmatpush1.bf16.msra.mxu0 0
    %2975 = vmatprep.subr.bf16.mxu0 0
    %2976 = vmatpush1.bf16.msra.mxu0 0
    %2977 = vmatprep.subr.bf16.mxu0 0
    %2978 = vmatpush1.bf16.msra.mxu0 0
    %2979 = vmatprep.subr.bf16.mxu0 0
    %2980 = vmatpush1.bf16.msra.mxu0 0
    %2981 = vmatprep.subr.bf16.mxu0 0
    %2982 = vmatpush1.bf16.msra.mxu0 0
    %2983 = vmatprep.subr.bf16.mxu0 0
    %2984 = vmatpush1.bf16.msra.mxu0 0
    %2985 = vmatprep.subr.bf16.mxu0 0
    %2986 = vmatpush1.bf16.msra.mxu0 0
    %2987 = vmatprep.subr.bf16.mxu0 0
    %2988 = vmatpush1.bf16.msra.mxu0 0
    %2989 = vmatprep.subr.bf16.mxu0 0
    %2990 = vmatpush1.bf16.msra.mxu0 0
    %2991 = vmatprep.subr.bf16.mxu0 0
    %2992 = vmatpush1.bf16.msra.mxu0 0
    %2993 = vmatprep.subr.bf16.mxu0 0
    %2994 = vmatpush1.bf16.msra.mxu0 0
    %2995 = vmatprep.mubr.bf16.mxu0 0
    %2996 = vmatmul.mubr.bf16.gmra.mrb[0].mxu0 %v2961
    %v2997 = vpop.f32.mrb[0].mxu0
    %v2998 = vadd.f32 %v2934, %v2997
    %v2999 = vpop.f32.mrb[0].mxu0
    %v3000 = vpop.f32.mrb[0].mxu0
    %v3001 = vadd.f32 %v2934, %v3000
    %v3002 = vpop.f32.mrb[0].mxu0
    %3003 = vdwg.mxu0
    %v3004 = vmul.f32 %v2998, 0.5
    %v3005 = vmul.f32 %v3001, 0.5
    %v3006 = vmul.f32 %v2998, 0.044715
    %v3007 = vmul.f32 %v3001, 0.044715
    %v3008 = vmul.f32 %v3006, %v2998
    %v3009 = vmul.f32 %v3007, %v3001
    %v3010 = vmul.f32 %v3008, %v2998
    %v3011 = vmul.f32 %v3009, %v3001
    %v3012 = vadd.f32 %v2998, %v3010
    %v3013 = vadd.f32 %v3001, %v3011
    %v3014 = vmul.f32 %v3012, 0.7978846
    %v3015 = vmul.f32 %v3013, 0.7978846
    %v3016 = vtanh.pop %v3014
    %v3017 = vtanh.pop %v3015
    %v3018 = vadd.f32 %v3016, 1.0
    %v3019 = vadd.f32 %v3017, 1.0
    %v3020 = vmul.f32 %v3004, %v3018
    %v3021 = vmul.f32 %v3005, %v3019
    %s3022 = scalar_lea.vmem %s12, 64
    %v3023 = vld [vmem:[%s3022] sm:$0xf]
    %v3024 = vld [vmem:[%s3022 + $0x4] sm:$0xf]
    %v3025 = vld [vmem:[%s3022 + $0x8] sm:$0xf]
    %v3026 = vld [vmem:[%s3022 + $0xc] sm:$0xf]
    %v3027 = vld [vmem:[%s3022 + $0x10] sm:$0xf]
    %v3028 = vld [vmem:[%s3022 + $0x14] sm:$0xf]
    %v3029 = vld [vmem:[%s3022 + $0x18] sm:$0xf]
    %v3030 = vld [vmem:[%s3022 + $0x1c] sm:$0xf]
    %v3031 = vld [vmem:[%s3022 + $0x20] sm:$0xf]
    %v3032 = vld [vmem:[%s3022 + $0x24] sm:$0xf]
    %v3033 = vld [vmem:[%s3022 + $0x28] sm:$0xf]
    %v3034 = vld [vmem:[%s3022 + $0x2c] sm:$0xf]
    %v3035 = vld [vmem:[%s3022 + $0x30] sm:$0xf]
    %v3036 = vld [vmem:[%s3022 + $0x34] sm:$0xf]
    %v3037 = vld [vmem:[%s3022 + $0x38] sm:$0xf]
    %v3038 = vld [vmem:[%s3022 + $0x3c] sm:$0xf]
    %s3039 = scalar_lea.vmem [#allocation20], 1
    %v3040 = vld [vmem:[%s3039] sm:$0x1]
    %v3041 = vpack.c.bf16 %v3021, %v3020
    %v3043 = vlaneseq
    %v3044 = vshrl.u32 %v3043, 7
    %v3045 = vsub.s32 0, %v3044
    %v3046 = vrot.slane %v3040, %v3045
    %v3064 = vunpack.c.l.b16 %v3023
    %v3065 = vunpack.c.l.b16 %v3024
    %v3066 = vunpack.c.l.b16 %v3025
    %v3067 = vunpack.c.l.b16 %v3026
    %v3068 = vunpack.c.l.b16 %v3027
    %v3069 = vunpack.c.l.b16 %v3028
    %v3070 = vunpack.c.l.b16 %v3029
    %v3071 = vunpack.c.l.b16 %v3030
    %v3072 = vunpack.c.l.b16 %v3031
    %v3073 = vunpack.c.l.b16 %v3032
    %v3074 = vunpack.c.l.b16 %v3033
    %v3075 = vunpack.c.l.b16 %v3034
    %v3076 = vunpack.c.l.b16 %v3035
    %v3077 = vunpack.c.l.b16 %v3036
    %v3078 = vunpack.c.l.b16 %v3037
    %v3079 = vunpack.c.l.b16 %v3038
    %v3080 = vpack.c.b16 %v3065, %v3064
    %v3081 = vpack.c.b16 %v3067, %v3066
    %v3082 = vpack.c.b16 %v3069, %v3068
    %v3083 = vpack.c.b16 %v3071, %v3070
    %v3084 = vpack.c.b16 %v3073, %v3072
    %v3085 = vpack.c.b16 %v3075, %v3074
    %v3086 = vpack.c.b16 %v3077, %v3076
    %v3087 = vpack.c.b16 %v3079, %v3078
    %3096 = vmatprep.subr.bf16.mxu0 0
    %3097 = vmatpush1.bf16.msra.mxu0 %v3080
    %3098 = vmatprep.subr.bf16.mxu0 0
    %3099 = vmatpush1.bf16.msra.mxu0 %v3081
    %3100 = vmatprep.subr.bf16.mxu0 0
    %3101 = vmatpush1.bf16.msra.mxu0 %v3082
    %3102 = vmatprep.subr.bf16.mxu0 0
    %3103 = vmatpush1.bf16.msra.mxu0 %v3083
    %3104 = vmatprep.subr.bf16.mxu0 0
    %3105 = vmatpush1.bf16.msra.mxu0 %v3084
    %3106 = vmatprep.subr.bf16.mxu0 0
    %3107 = vmatpush1.bf16.msra.mxu0 %v3085
    %3108 = vmatprep.subr.bf16.mxu0 0
    %3109 = vmatpush1.bf16.msra.mxu0 %v3086
    %3110 = vmatprep.subr.bf16.mxu0 0
    %3111 = vmatpush1.bf16.msra.mxu0 %v3087
    %3112 = vmatprep.subr.bf16.mxu0 0
    %3113 = vmatpush1.bf16.msra.mxu0 0
    %3114 = vmatprep.subr.bf16.mxu0 0
    %3115 = vmatpush1.bf16.msra.mxu0 0
    %3116 = vmatprep.subr.bf16.mxu0 0
    %3117 = vmatpush1.bf16.msra.mxu0 0
    %3118 = vmatprep.subr.bf16.mxu0 0
    %3119 = vmatpush1.bf16.msra.mxu0 0
    %3120 = vmatprep.subr.bf16.mxu0 0
    %3121 = vmatpush1.bf16.msra.mxu0 0
    %3122 = vmatprep.subr.bf16.mxu0 0
    %3123 = vmatpush1.bf16.msra.mxu0 0
    %3124 = vmatprep.subr.bf16.mxu0 0
    %3125 = vmatpush1.bf16.msra.mxu0 0
    %3126 = vmatprep.subr.bf16.mxu0 0
    %3127 = vmatpush1.bf16.msra.mxu0 0
    %3128 = vmatprep.mubr.bf16.mxu0 0
    %3129 = vmatmul.mubr.bf16.gmra.mrb[0].mxu0 %v3041
    %v3130 = vpop.f32.mrb[0].mxu0
    %v3131 = vadd.f32 %v3046, %v3130
    %v3132 = vpop.f32.mrb[0].mxu0
    %v3133 = vpop.f32.mrb[0].mxu0
    %v3134 = vadd.f32 %v3046, %v3133
    %v3135 = vpop.f32.mrb[0].mxu0
    %3136 = vdwg.mxu0
    %v3137 = vadd.f32 %v3131, %v2916
    %v3138 = vadd.f32 %v3134, %v2917
    %s3139 = scalar_lea.vmem [#allocation21], 1
    %v3140 = vld [vmem:[%s3139] sm:$0x1]
    %s3141 = scalar_lea.vmem [#allocation23], 1
    %v3142 = vld [vmem:[%s3141] sm:$0x1]
    %v3143 = vsel %vm253, %v3137, 0.0
    %3144 = vadd.xlane.f32.xlu0 %v3143
    %v3145 = vpop.xlane.xlu0 %3144
    %v3146 = vsel %vm253, %v3138, 0.0
    %3147 = vadd.xlane.f32.xlu0 %v3146
    %v3148 = vpop.xlane.xlu0 %3147
    %v3149 = vmul.f32 %v3145, %v260
    %v3150 = vmul.f32 %v3148, %v260
    %v3151 = vsub.f32 %v3137, %v3149
    %v3152 = vsub.f32 %v3138, %v3150
    %v3153 = vmul.f32 %v3151, %v3151
    %v3154 = vmul.f32 %v3152, %v3152
    %v3155 = vsel %vm253, %v3153, 0.0
    %3156 = vadd.xlane.f32.xlu0 %v3155
    %v3157 = vpop.xlane.xlu0 %3156
    %v3158 = vsel %vm253, %v3154, 0.0
    %3159 = vadd.xlane.f32.xlu0 %v3158
    %v3160 = vpop.xlane.xlu0 %3159
    %v3161 = vmul.f32 %v3157, %v260
    %v3162 = vmul.f32 %v3160, %v260
    %v3163 = vadd.f32 %v3161, 1e-12
    %v3164 = vadd.f32 %v3162, 1e-12
    %v3165 = vrsqrt.pop %v3163
    %v3166 = vrsqrt.pop %v3164
    %v3167 = vmul.f32 %v3151, %v3165
    %v3168 = vmul.f32 %v3152, %v3166
    %v3170 = vlaneseq
    %v3171 = vshrl.u32 %v3170, 7
    %v3172 = vsub.s32 0, %v3171
    %v3173 = vrot.slane %v3140, %v3172
    %v3175 = vmul.f32 %v3167, %v3173
    %v3176 = vmul.f32 %v3168, %v3173
    %v3178 = vlaneseq
    %v3179 = vshrl.u32 %v3178, 7
    %v3180 = vsub.s32 0, %v3179
    %v3181 = vrot.slane %v3142, %v3180
    %v3183 = vadd.f32 %v3175, %v3181
    %v3184 = vadd.f32 %v3176, %v3181
    %v3185 = vld [vmem:[%s16] sm:$0xf]
    %v3186 = vld [vmem:[%s16 + $0x4] sm:$0xf]
    %v3187 = vld [vmem:[%s16 + $0x8] sm:$0xf]
    %v3188 = vld [vmem:[%s16 + $0xc] sm:$0xf]
    %v3189 = vld [vmem:[%s16 + $0x10] sm:$0xf]
    %v3190 = vld [vmem:[%s16 + $0x14] sm:$0xf]
    %v3191 = vld [vmem:[%s16 + $0x18] sm:$0xf]
    %v3192 = vld [vmem:[%s16 + $0x1c] sm:$0xf]
    %v3193 = vld [vmem:[#allocation24] sm:$0x1]
    %v3194 = vpack.c.bf16 %v3183, %v3183
    %v3203 = vunpack.c.l.b16 %v3185
    %v3204 = vunpack.c.l.b16 %v3186
    %v3205 = vunpack.c.l.b16 %v3187
    %v3206 = vunpack.c.l.b16 %v3188
    %v3207 = vunpack.c.l.b16 %v3189
    %v3208 = vunpack.c.l.b16 %v3190
    %v3209 = vunpack.c.l.b16 %v3191
    %v3210 = vunpack.c.l.b16 %v3192
    %v3211 = vpack.c.b16 %v3204, %v3203
    %v3212 = vpack.c.b16 %v3206, %v3205
    %v3213 = vpack.c.b16 %v3208, %v3207
    %v3214 = vpack.c.b16 %v3210, %v3209
    %v3220 = vsel %vm253, %v3194, 0
    %3222 = vmatprep.subr.bf16.mxu0 0
    %3223 = vmatpush1.bf16.msra.mxu0 %v3211
    %3224 = vmatprep.subr.bf16.mxu0 0
    %3225 = vmatpush1.bf16.msra.mxu0 %v3212
    %3226 = vmatprep.subr.bf16.mxu0 0
    %3227 = vmatpush1.bf16.msra.mxu0 %v3213
    %3228 = vmatprep.subr.bf16.mxu0 0
    %3229 = vmatpush1.bf16.msra.mxu0 %v3214
    %3230 = vmatprep.subr.bf16.mxu0 0
    %3231 = vmatpush1.bf16.msra.mxu0 0
    %3232 = vmatprep.subr.bf16.mxu0 0
    %3233 = vmatpush1.bf16.msra.mxu0 0
    %3234 = vmatprep.subr.bf16.mxu0 0
    %3235 = vmatpush1.bf16.msra.mxu0 0
    %3236 = vmatprep.subr.bf16.mxu0 0
    %3237 = vmatpush1.bf16.msra.mxu0 0
    %3238 = vmatprep.subr.bf16.mxu0 0
    %3239 = vmatpush1.bf16.msra.mxu0 0
    %3240 = vmatprep.subr.bf16.mxu0 0
    %3241 = vmatpush1.bf16.msra.mxu0 0
    %3242 = vmatprep.subr.bf16.mxu0 0
    %3243 = vmatpush1.bf16.msra.mxu0 0
    %3244 = vmatprep.subr.bf16.mxu0 0
    %3245 = vmatpush1.bf16.msra.mxu0 0
    %3246 = vmatprep.subr.bf16.mxu0 0
    %3247 = vmatpush1.bf16.msra.mxu0 0
    %3248 = vmatprep.subr.bf16.mxu0 0
    %3249 = vmatpush1.bf16.msra.mxu0 0
    %3250 = vmatprep.subr.bf16.mxu0 0
    %3251 = vmatpush1.bf16.msra.mxu0 0
    %3252 = vmatprep.subr.bf16.mxu0 0
    %3253 = vmatpush1.bf16.msra.mxu0 0
    %3254 = vmatprep.mubr.bf16.mxu0 0
    %3255 = vmatmul.mubr.bf16.gmra.mrb[0].mxu0 %v3220
    %v3256 = vpop.f32.mrb[0].mxu0
    %v3257 = vadd.f32 %v3193, %v3256
    %v3258 = vpop.f32.mrb[0].mxu0
    %v3259 = vpop.f32.mrb[0].mxu0
    %v3260 = vpop.f32.mrb[0].mxu0
    %3261 = vdwg.mxu0
    %v3262 = vtanh.pop %v3257
    %v3263 = vld [vmem:[%s18] sm:$0xf]
    %v3264 = vld [vmem:[%s18 + $0x4] sm:$0xf]
    %v3265 = vld [vmem:[%s18 + $0x8] sm:$0xf]
    %v3266 = vld [vmem:[%s18 + $0xc] sm:$0xf]
    %v3267 = vld [vmem:[%s18 + $0x10] sm:$0xf]
    %v3268 = vld [vmem:[%s18 + $0x14] sm:$0xf]
    %v3269 = vld [vmem:[%s18 + $0x18] sm:$0xf]
    %v3270 = vld [vmem:[%s18 + $0x1c] sm:$0xf]
    %v3271 = vld [vmem:[%s19] sm:$0x1]
    %v3272 = vpack.c.bf16 %v3262, %v3262
    %v3281 = vunpack.c.l.b16 %v3263
    %v3282 = vunpack.c.l.b16 %v3264
    %v3283 = vunpack.c.l.b16 %v3265
    %v3284 = vunpack.c.l.b16 %v3266
    %v3285 = vunpack.c.l.b16 %v3267
    %v3286 = vunpack.c.l.b16 %v3268
    %v3287 = vunpack.c.l.b16 %v3269
    %v3288 = vunpack.c.l.b16 %v3270
    %v3289 = vpack.c.b16 %v3282, %v3281
    %v3290 = vpack.c.b16 %v3284, %v3283
    %v3291 = vpack.c.b16 %v3286, %v3285
    %v3292 = vpack.c.b16 %v3288, %v3287
    %v3298 = vsel %vm253, %v3272, 0
    %3300 = vmatprep.subr.bf16.mxu0 0
    %3301 = vmatpush1.bf16.msra.mxu0 %v3289
    %3302 = vmatprep.subr.bf16.mxu0 0
    %3303 = vmatpush1.bf16.msra.mxu0 %v3290
    %3304 = vmatprep.subr.bf16.mxu0 0
    %3305 = vmatpush1.bf16.msra.mxu0 %v3291
    %3306 = vmatprep.subr.bf16.mxu0 0
    %3307 = vmatpush1.bf16.msra.mxu0 %v3292
    %3308 = vmatprep.subr.bf16.mxu0 0
    %3309 = vmatpush1.bf16.msra.mxu0 0
    %3310 = vmatprep.subr.bf16.mxu0 0
    %3311 = vmatpush1.bf16.msra.mxu0 0
    %3312 = vmatprep.subr.bf16.mxu0 0
    %3313 = vmatpush1.bf16.msra.mxu0 0
    %3314 = vmatprep.subr.bf16.mxu0 0
    %3315 = vmatpush1.bf16.msra.mxu0 0
    %3316 = vmatprep.subr.bf16.mxu0 0
    %3317 = vmatpush1.bf16.msra.mxu0 0
    %3318 = vmatprep.subr.bf16.mxu0 0
    %3319 = vmatpush1.bf16.msra.mxu0 0
    %3320 = vmatprep.subr.bf16.mxu0 0
    %3321 = vmatpush1.bf16.msra.mxu0 0
    %3322 = vmatprep.subr.bf16.mxu0 0
    %3323 = vmatpush1.bf16.msra.mxu0 0
    %3324 = vmatprep.subr.bf16.mxu0 0
    %3325 = vmatpush1.bf16.msra.mxu0 0
    %3326 = vmatprep.subr.bf16.mxu0 0
    %3327 = vmatpush1.bf16.msra.mxu0 0
    %3328 = vmatprep.subr.bf16.mxu0 0
    %3329 = vmatpush1.bf16.msra.mxu0 0
    %3330 = vmatprep.subr.bf16.mxu0 0
    %3331 = vmatpush1.bf16.msra.mxu0 0
    %3332 = vmatprep.mubr.bf16.mxu0 0
    %3333 = vmatmul.mubr.bf16.gmra.mrb[0].mxu0 %v3298
    %v3334 = vpop.f32.mrb[0].mxu0
    %v3335 = vadd.f32 %v3271, %v3334
    %v3336 = vpop.f32.mrb[0].mxu0
    %v3337 = vpop.f32.mrb[0].mxu0
    %v3338 = vpop.f32.mrb[0].mxu0
    %3339 = vdwg.mxu0
    %3340 = vst [vmem:[#allocation26] sm:$0x1] %v3335
    %v3341 = vld [vmem:[%s16] sm:$0xf]
    %v3342 = vld [vmem:[%s16 + $0x4] sm:$0xf]
    %v3343 = vld [vmem:[%s16 + $0x8] sm:$0xf]
    %v3344 = vld [vmem:[%s16 + $0xc] sm:$0xf]
    %v3345 = vld [vmem:[%s16 + $0x10] sm:$0xf]
    %v3346 = vld [vmem:[%s16 + $0x14] sm:$0xf]
    %v3347 = vld [vmem:[%s16 + $0x18] sm:$0xf]
    %v3348 = vld [vmem:[%s16 + $0x1c] sm:$0xf]
    %v3349 = vld [vmem:[#allocation24] sm:$0x1]
    %v3350 = vpack.c.bf16 %v3184, %v3184
    %v3359 = vunpack.c.l.b16 %v3341
    %v3360 = vunpack.c.l.b16 %v3342
    %v3361 = vunpack.c.l.b16 %v3343
    %v3362 = vunpack.c.l.b16 %v3344
    %v3363 = vunpack.c.l.b16 %v3345
    %v3364 = vunpack.c.l.b16 %v3346
    %v3365 = vunpack.c.l.b16 %v3347
    %v3366 = vunpack.c.l.b16 %v3348
    %v3367 = vpack.c.b16 %v3360, %v3359
    %v3368 = vpack.c.b16 %v3362, %v3361
    %v3369 = vpack.c.b16 %v3364, %v3363
    %v3370 = vpack.c.b16 %v3366, %v3365
    %v3376 = vsel %vm253, %v3350, 0
    %3378 = vmatprep.subr.bf16.mxu0 0
    %3379 = vmatpush1.bf16.msra.mxu0 %v3367
    %3380 = vmatprep.subr.bf16.mxu0 0
    %3381 = vmatpush1.bf16.msra.mxu0 %v3368
    %3382 = vmatprep.subr.bf16.mxu0 0
    %3383 = vmatpush1.bf16.msra.mxu0 %v3369
    %3384 = vmatprep.subr.bf16.mxu0 0
    %3385 = vmatpush1.bf16.msra.mxu0 %v3370
    %3386 = vmatprep.subr.bf16.mxu0 0
    %3387 = vmatpush1.bf16.msra.mxu0 0
    %3388 = vmatprep.subr.bf16.mxu0 0
    %3389 = vmatpush1.bf16.msra.mxu0 0
    %3390 = vmatprep.subr.bf16.mxu0 0
    %3391 = vmatpush1.bf16.msra.mxu0 0
    %3392 = vmatprep.subr.bf16.mxu0 0
    %3393 = vmatpush1.bf16.msra.mxu0 0
    %3394 = vmatprep.subr.bf16.mxu0 0
    %3395 = vmatpush1.bf16.msra.mxu0 0
    %3396 = vmatprep.subr.bf16.mxu0 0
    %3397 = vmatpush1.bf16.msra.mxu0 0
    %3398 = vmatprep.subr.bf16.mxu0 0
    %3399 = vmatpush1.bf16.msra.mxu0 0
    %3400 = vmatprep.subr.bf16.mxu0 0
    %3401 = vmatpush1.bf16.msra.mxu0 0
    %3402 = vmatprep.subr.bf16.mxu0 0
    %3403 = vmatpush1.bf16.msra.mxu0 0
    %3404 = vmatprep.subr.bf16.mxu0 0
    %3405 = vmatpush1.bf16.msra.mxu0 0
    %3406 = vmatprep.subr.bf16.mxu0 0
    %3407 = vmatpush1.bf16.msra.mxu0 0
    %3408 = vmatprep.subr.bf16.mxu0 0
    %3409 = vmatpush1.bf16.msra.mxu0 0
    %3410 = vmatprep.mubr.bf16.mxu0 0
    %3411 = vmatmul.mubr.bf16.gmra.mrb[0].mxu0 %v3376
    %v3412 = vpop.f32.mrb[0].mxu0
    %v3413 = vadd.f32 %v3349, %v3412
    %v3414 = vpop.f32.mrb[0].mxu0
    %v3415 = vpop.f32.mrb[0].mxu0
    %v3416 = vpop.f32.mrb[0].mxu0
    %3417 = vdwg.mxu0
    %v3418 = vtanh.pop %v3413
    %v3419 = vld [vmem:[%s18] sm:$0xf]
    %v3420 = vld [vmem:[%s18 + $0x4] sm:$0xf]
    %v3421 = vld [vmem:[%s18 + $0x8] sm:$0xf]
    %v3422 = vld [vmem:[%s18 + $0xc] sm:$0xf]
    %v3423 = vld [vmem:[%s18 + $0x10] sm:$0xf]
    %v3424 = vld [vmem:[%s18 + $0x14] sm:$0xf]
    %v3425 = vld [vmem:[%s18 + $0x18] sm:$0xf]
    %v3426 = vld [vmem:[%s18 + $0x1c] sm:$0xf]
    %v3427 = vld [vmem:[%s19] sm:$0x1]
    %v3428 = vpack.c.bf16 %v3418, %v3418
    %v3437 = vunpack.c.l.b16 %v3419
    %v3438 = vunpack.c.l.b16 %v3420
    %v3439 = vunpack.c.l.b16 %v3421
    %v3440 = vunpack.c.l.b16 %v3422
    %v3441 = vunpack.c.l.b16 %v3423
    %v3442 = vunpack.c.l.b16 %v3424
    %v3443 = vunpack.c.l.b16 %v3425
    %v3444 = vunpack.c.l.b16 %v3426
    %v3445 = vpack.c.b16 %v3438, %v3437
    %v3446 = vpack.c.b16 %v3440, %v3439
    %v3447 = vpack.c.b16 %v3442, %v3441
    %v3448 = vpack.c.b16 %v3444, %v3443
    %v3454 = vsel %vm253, %v3428, 0
    %3456 = vmatprep.subr.bf16.mxu0 0
    %3457 = vmatpush1.bf16.msra.mxu0 %v3445
    %3458 = vmatprep.subr.bf16.mxu0 0
    %3459 = vmatpush1.bf16.msra.mxu0 %v3446
    %3460 = vmatprep.subr.bf16.mxu0 0
    %3461 = vmatpush1.bf16.msra.mxu0 %v3447
    %3462 = vmatprep.subr.bf16.mxu0 0
    %3463 = vmatpush1.bf16.msra.mxu0 %v3448
    %3464 = vmatprep.subr.bf16.mxu0 0
    %3465 = vmatpush1.bf16.msra.mxu0 0
    %3466 = vmatprep.subr.bf16.mxu0 0
    %3467 = vmatpush1.bf16.msra.mxu0 0
    %3468 = vmatprep.subr.bf16.mxu0 0
    %3469 = vmatpush1.bf16.msra.mxu0 0
    %3470 = vmatprep.subr.bf16.mxu0 0
    %3471 = vmatpush1.bf16.msra.mxu0 0
    %3472 = vmatprep.subr.bf16.mxu0 0
    %3473 = vmatpush1.bf16.msra.mxu0 0
    %3474 = vmatprep.subr.bf16.mxu0 0
    %3475 = vmatpush1.bf16.msra.mxu0 0
    %3476 = vmatprep.subr.bf16.mxu0 0
    %3477 = vmatpush1.bf16.msra.mxu0 0
    %3478 = vmatprep.subr.bf16.mxu0 0
    %3479 = vmatpush1.bf16.msra.mxu0 0
    %3480 = vmatprep.subr.bf16.mxu0 0
    %3481 = vmatpush1.bf16.msra.mxu0 0
    %3482 = vmatprep.subr.bf16.mxu0 0
    %3483 = vmatpush1.bf16.msra.mxu0 0
    %3484 = vmatprep.subr.bf16.mxu0 0
    %3485 = vmatpush1.bf16.msra.mxu0 0
    %3486 = vmatprep.subr.bf16.mxu0 0
    %3487 = vmatpush1.bf16.msra.mxu0 0
    %3488 = vmatprep.mubr.bf16.mxu0 0
    %3489 = vmatmul.mubr.bf16.gmra.mrb[0].mxu0 %v3454
    %v3490 = vpop.f32.mrb[0].mxu0
    %v3491 = vadd.f32 %v3427, %v3490
    %v3492 = vpop.f32.mrb[0].mxu0
    %v3493 = vpop.f32.mrb[0].mxu0
    %v3494 = vpop.f32.mrb[0].mxu0
    %3495 = vdwg.mxu0
    %3496 = vst [vmem:[#allocation26 + $0x1] sm:$0x1] %v3491
    // Predicated region
    $region138: #{tpu_custom_call.1} parent=1 // pred_check
      _
    $region139: #{tpu_custom_call.1} parent=1 // pred_check_branch
      %3498 = sbr.rel (0) target = $region141
    $region140: #{tpu_custom_call.1} parent=1 // pred_region
      %s3500 = ssub.s32 32, 32
      %3501 = vsyncadd [#allocation5], %s3500
      %s3503 = sshll.u32 [#allocation26], 4
      %s3504 = int_to_ptr.vmem [resolvable:$true] %s3503
      %3506 = dma.vmem_to_hbm [thread:$0]  %s3504, 32, %s20, [#allocation5]
    $region141: #{tpu_custom_call.1} parent=1 // pred_fallthru
      _
    // Predicated region
    $region142: #{tpu_custom_call.1} parent=1 // pred_check
      _
    $region143: #{tpu_custom_call.1} parent=1 // pred_check_branch
      %3508 = sbr.rel (0) target = $region145
    $region144: #{tpu_custom_call.1} parent=1 // pred_region
      %3509 = dma.done [#allocation5], 32
    $region145: #{tpu_custom_call.1} parent=1 // pred_fallthru
      _
    %3510 = vsyncpa [#allocation4], 1
    %3511 = vsyncpa [#allocation7], 1
    %3512 = vsyncpa [#allocation10], 1
    %3513 = vsyncpa [#allocation13], 1
    %3514 = vsyncpa [#allocation16], 1
    %3515 = vsyncpa [#allocation19], 1
    %3516 = vsyncpa [#allocation22], 1
    %3517 = vsyncpa [#allocation25], 1
    %3518 = vsyncpa [#allocation5], 1

</llo_original>
